<compile_context>
chip_gen: v6e
topology: v6e:2x2x1
jax: 0.10.0
libtpu: 0.0.40
codegen_flags: <defaults>
</compile_context>

<pallas_src>
import functools

import numpy as np

import jax
import jax.numpy as jnp
from jax import lax
from jax.experimental import pallas as pl
from jax.experimental.pallas import tpu as pltpu

LEAKY_SLOPE = 0.01   # nn.LeakyReLU default negative_slope
IN_EPS = 1e-5        # nn.InstanceNorm3d default eps


def _round_up(x, m):
    return ((x + m - 1) // m) * m


def _compiler_params(dim_sem, vmem_mb=48):
    # 48 MiB is far above every block footprint used here, above v5e's 16 MiB scoped
    # default, and below the physical VMEM of every generation (64 MiB on v7x).
    return pltpu.CompilerParams(dimension_semantics=dim_sem,
                                vmem_limit_bytes=vmem_mb * 1024 * 1024)


# ---------------------------------------------------------------------------
# 2x linear interpolation (align_corners=True) helpers -- built at trace time.
# ---------------------------------------------------------------------------
def _linear_taps(n):
    """Per-output (i0, w0, i1, w1) Python constants for 2x, align_corners=True."""
    m = 2 * n
    taps = []
    for o in range(m):
        pos = o * (float(n - 1) / float(m - 1))
        i0 = int(np.floor(pos))
        i1 = min(i0 + 1, n - 1)
        t = pos - i0
        taps.append((i0, 1.0 - t, i1, t))
    return tuple(taps)


def _upsample_matrix(n):
    """U (n, 2n) with out[o] = sum_i U[i, o] * in[i]."""
    U = np.zeros((n, 2 * n), dtype=np.float32)
    for o, (i0, w0, i1, w1) in enumerate(_linear_taps(n)):
        U[i0, o] += w0
        U[i1, o] += w1
    return U


# ---------------------------------------------------------------------------
# Kernel 1: fused trilinear 2x upsample + LeakyReLU   (one HBM read, one bf16 write)
# ---------------------------------------------------------------------------
def _upsample_leaky_kernel(x_ref, uhT_ref, uw_ref, o_ref, *, d_taps, slope):
    # x_ref: (1, 1, D, H, W) f32    uhT_ref: (2H, H) bf16    uw_ref: (W, 2W) bf16
    # o_ref: (1, 1, 2D, 2H, 2W) bf16
    x = x_ref[0, 0].astype(jnp.bfloat16)                           # (D, H, W)
    d = x.shape[0]
    uhT_b = jnp.broadcast_to(uhT_ref[...], (d,) + uhT_ref.shape)   # (D, 2H, H)
    uw_b = jnp.broadcast_to(uw_ref[...], (d,) + uw_ref.shape)      # (D, W, 2W)
    # H upsample: batched (over D) bf16 matmul, f32 accumulation.
    yh = jnp.einsum('dkh,dhw->dkw', uhT_b, x,
                    preferred_element_type=jnp.float32).astype(jnp.bfloat16)  # (D,2H,W)
    # W upsample: batched (over D) bf16 matmul, f32 accumulation.
    yhw = jnp.einsum('dhw,dwv->dhv', yh, uw_b,
                     preferred_element_type=jnp.float32)           # (D, 2H, 2W) f32
    # D upsample: static 2-tap linear combine on the VPU + fused LeakyReLU epilogue.
    for k, (i0, w0, i1, w1) in enumerate(d_taps):
        if w1 == 0.0:
            plane = yhw[i0] if w0 == 1.0 else yhw[i0] * w0
        else:
            plane = yhw[i0] * w0 + yhw[i1] * w1
        plane = jnp.where(plane >= 0, plane, plane * slope)
        o_ref[0, 0, k] = plane.astype(o_ref.dtype)


def upsample2x_leaky(x):
    """Fused 2x trilinear upsample (align_corners=True) + LeakyReLU -> bf16 NCDHW."""
    N, C, D, H, W = x.shape
    uhT = jnp.asarray(_upsample_matrix(H).T, dtype=jnp.bfloat16)   # (2H, H)
    uw = jnp.asarray(_upsample_matrix(W), dtype=jnp.bfloat16)      # (W, 2W)
    kern = functools.partial(_upsample_leaky_kernel,
                             d_taps=_linear_taps(D), slope=LEAKY_SLOPE)
    return pl.pallas_call(
        kern,
        out_shape=jax.ShapeDtypeStruct((N, C, 2 * D, 2 * H, 2 * W), jnp.bfloat16),
        grid=(N, C),
        in_specs=[
            pl.BlockSpec((1, 1, D, H, W), lambda n, c: (n, c, 0, 0, 0)),
            pl.BlockSpec((2 * H, H), lambda n, c: (0, 0)),
            pl.BlockSpec((W, 2 * W), lambda n, c: (0, 0)),
        ],
        out_specs=pl.BlockSpec((1, 1, 2 * D, 2 * H, 2 * W),
                               lambda n, c: (n, c, 0, 0, 0)),
        compiler_params=_compiler_params(("parallel", "parallel"), vmem_mb=48),
    )(x, uhT, uw)


# ---------------------------------------------------------------------------
# Kernel 2/3: spatially tiled Conv3d GEMM + chunked InstanceNorm statistics,
#             then the affine normalization sweep.
# ---------------------------------------------------------------------------
def _conv_stats_kernel(a_ref, w_ref, y_ref, s1_ref, s2_ref):
    # a_ref: (1, Kp, TM) bf16   w_ref: (Cout, Kp) bf16
    # y_ref: (1, Cout, TM) bf16   s1/s2_ref: (1, 1, Cout, 1) f32
    y = jnp.dot(w_ref[...], a_ref[0], preferred_element_type=jnp.float32)  # (Cout, TM)
    y_ref[0] = y.astype(y_ref.dtype)
    # Padded lanes / padded K rows are exact zeros, so the partial sums are exact.
    s1_ref[0, 0] = jnp.sum(y, axis=1, keepdims=True)
    s2_ref[0, 0] = jnp.sum(y * y, axis=1, keepdims=True)


def _norm_affine_kernel(y_ref, sc_ref, sh_ref, o_ref):
    # y_ref: (1, Cout, TM) bf16   sc/sh_ref: (1, Cout, 1) f32   o_ref: (1, Cout, TM) bf16
    o_ref[0] = (y_ref[0].astype(jnp.float32) * sc_ref[0] + sh_ref[0]).astype(o_ref.dtype)


def conv3d_instancenorm(act, w, gamma, beta, stride=1, padding=0, dilation=1):
    """Conv3d(bias=False) + affine InstanceNorm3d on a (pre-activated) NCDHW bf16 input.
    Transposed GEMM layout out[Cout, M=Do*Ho*Wo], M tiled lane-dense; bf16 output."""
    N, Cin, D, H, W = act.shape
    Cout, Cin_w, kd, kh, kw = w.shape
    assert Cin == Cin_w
    s, p, dl = stride, padding, dilation
    Do = (D + 2 * p - dl * (kd - 1) - 1) // s + 1
    Ho = (H + 2 * p - dl * (kh - 1) - 1) // s + 1
    Wo = (W + 2 * p - dl * (kw - 1) - 1) // s + 1
    Msp = Do * Ho * Wo

    if kd == kh == kw == 1 and s == 1 and p == 0:
        # ScNas usage: 1x1x1 conv -> the [K, M] operand is a free reshape (no im2col).
        K = Cin
        a_t = act.reshape(N, K, Msp)
    else:
        # TODO(synk): move the k^3 tap loop inside the kernel (manual DMA of shifted
        #             windows) to avoid this k^3 x HBM im2col materialization.
        xp = act if p == 0 else jnp.pad(act, ((0, 0), (0, 0), (p, p), (p, p), (p, p)))
        taps = []
        for i in range(kd):
            for j in range(kh):
                for l in range(kw):
                    taps.append(xp[:, :,
                                   i * dl: i * dl + s * (Do - 1) + 1: s,
                                   j * dl: j * dl + s * (Ho - 1) + 1: s,
                                   l * dl: l * dl + s * (Wo - 1) + 1: s])
        K = Cin * kd * kh * kw
        a_t = jnp.stack(taps, axis=2).reshape(N, K, Msp)

    a_t = a_t.astype(jnp.bfloat16)
    w2 = w.reshape(Cout, K).astype(jnp.bfloat16)

    # Only pad K to a sublane multiple (realistic Cin is already a multiple -> no-op).
    Kp = _round_up(K, 8)
    if Kp != K:
        a_t = jnp.pad(a_t, ((0, 0), (0, Kp - K), (0, 0)))
        w2 = jnp.pad(w2, ((0, 0), (0, Kp - K)))

    # Lane-dense spatial tiles sized for VMEM (incl. double buffering of in + out).
    budget = 4 * 1024 * 1024                       # bytes per single (a + y) buffer pair
    tm = max(128, min(2048, (budget // (2 * (Kp + Cout)) // 128) * 128))
    tm = min(tm, _round_up(Msp, 128))
    Mp = _round_up(Msp, tm)
    if Mp != Msp:                                  # only pad when not already aligned
        a_t = jnp.pad(a_t, ((0, 0), (0, 0), (0, Mp - Msp)))
    nmt = Mp // tm

    # Pass A: conv GEMM tile + per-tile partial sums (chunked IN statistics).
    y_conv, s1, s2 = pl.pallas_call(
        _conv_stats_kernel,
        out_shape=(jax.ShapeDtypeStruct((N, Cout, Mp), jnp.bfloat16),
                   jax.ShapeDtypeStruct((N, nmt, Cout, 1), jnp.float32),
                   jax.ShapeDtypeStruct((N, nmt, Cout, 1), jnp.float32)),
        grid=(N, nmt),
        in_specs=[pl.BlockSpec((1, Kp, tm), lambda n, m: (n, 0, m)),
                  pl.BlockSpec((Cout, Kp), lambda n, m: (0, 0))],
        out_specs=(pl.BlockSpec((1, Cout, tm), lambda n, m: (n, 0, m)),
                   pl.BlockSpec((1, 1, Cout, 1), lambda n, m: (n, m, 0, 0)),
                   pl.BlockSpec((1, 1, Cout, 1), lambda n, m: (n, m, 0, 0))),
        compiler_params=_compiler_params(("parallel", "parallel"), vmem_mb=48),
    )(a_t, w2)

    # Tiny f32 combine of the chunked partials -> per-(n,c) mean / biased var -> affine.
    s1 = jnp.sum(s1[..., 0], axis=1)               # (N, Cout)
    s2 = jnp.sum(s2[..., 0], axis=1)
    mean = s1 / float(Msp)
    var = jnp.maximum(s2 / float(Msp) - mean * mean, 0.0)   # biased variance (PyTorch IN)
    scale = gamma[None, :].astype(jnp.float32) * lax.rsqrt(var + IN_EPS)
    shift = beta[None, :].astype(jnp.float32) - mean * scale
    scale = scale[:, :, None]                      # (N, Cout, 1)
    shift = shift[:, :, None]

    # Pass B: apply the affine instance norm, bf16 output (halves the final HBM store).
    out = pl.pallas_call(
        _norm_affine_kernel,
        out_shape=jax.ShapeDtypeStruct((N, Cout, Mp), jnp.bfloat16),
        grid=(N, nmt),
        in_specs=[pl.BlockSpec((1, Cout, tm), lambda n, m: (n, 0, m)),
                  pl.BlockSpec((1, Cout, 1), lambda n, m: (n, 0, 0)),
                  pl.BlockSpec((1, Cout, 1), lambda n, m: (n, 0, 0))],
        out_specs=pl.BlockSpec((1, Cout, tm), lambda n, m: (n, 0, m)),
        compiler_params=_compiler_params(("parallel", "parallel"), vmem_mb=32),
    )(y_conv, scale, shift)

    if Mp != Msp:
        out = out[:, :, :Msp]
    return out.reshape(N, Cout, Do, Ho, Wo)


# ---------------------------------------------------------------------------
# UpReLUConvBN forward
# ---------------------------------------------------------------------------
def up_relu_conv_bn(params, x, kernel_size, stride, padding):
    """x: (N, C_in, D, H, W) f32 -> (N, C_out, 2D/s', ...) bf16 after 2x trilinear
    upsample, LeakyReLU, Conv3d (no bias) and affine InstanceNorm3d."""
    assert params['conv_w'].shape[2] == kernel_size
    act = upsample2x_leaky(x)                                   # upsample + LeakyReLU
    return conv3d_instancenorm(act, params['conv_w'], params['gamma'], params['beta'],
                               stride=stride, padding=padding)  # conv + InstanceNorm


def init_up_relu_conv_bn(key, C_in, C_out, kernel_size):
    k_w, _ = jax.random.split(key)
    return {
        'conv_w': jax.random.normal(
            k_w, (C_out, C_in, kernel_size, kernel_size, kernel_size), jnp.float32) * 0.1,
        # InstanceNorm3d(affine=True) PyTorch init: weight = 1, bias = 0
        'gamma': jnp.ones((C_out,), jnp.float32),
        'beta': jnp.zeros((C_out,), jnp.float32),
    }


# ---------------------------------------------------------------------------
# Plain-JAX float32 reference (mirrors the PyTorch module)
# ---------------------------------------------------------------------------
def up_relu_conv_bn_reference(params, x, kernel_size, stride, padding):
    N, C, D, H, W = x.shape
    hi = lax.Precision.HIGHEST
    Ud = jnp.asarray(_upsample_matrix(D))
    Uh = jnp.asarray(_upsample_matrix(H))
    Uw = jnp.asarray(_upsample_matrix(W))
    u = jnp.einsum('ncdhw,dk->nckhw', x.astype(jnp.float32), Ud, precision=hi)
    u = jnp.einsum('ncdhw,hk->ncdkw', u, Uh, precision=hi)
    u = jnp.einsum('ncdhw,wk->ncdhk', u, Uw, precision=hi)
    u = jnp.where(u >= 0, u, LEAKY_SLOPE * u)
    y = lax.conv_general_dilated(
        u, params['conv_w'].astype(jnp.float32),
        window_strides=(stride,) * 3, padding=[(padding, padding)] * 3,
        dimension_numbers=('NCDHW', 'OIDHW', 'NCDHW'), precision=hi)
    mean = jnp.mean(y, axis=(2, 3, 4), keepdims=True)
    var = jnp.mean((y - mean) ** 2, axis=(2, 3, 4), keepdims=True)
    yn = (y - mean) * lax.rsqrt(var + IN_EPS)
    g = params['gamma'].astype(jnp.float32)[None, :, None, None, None]
    b = params['beta'].astype(jnp.float32)[None, :, None, None, None]
    return yn * g + b


if __name__ == "__main__":
    key = jax.random.PRNGKey(0)
    k_x, k_p1, k_p2 = jax.random.split(key, 3)

    # UpReLUConvBN(C_in=4, C_out=8, kernel_size=1, stride=1, padding=0)  (ScNas usage)
    N, Cin, D, H, W = 2, 4, 8, 8, 8
    Cout = 8
    x = jax.random.normal(k_x, (N, Cin, D, H, W), jnp.float32)

    fwd = jax.jit(up_relu_conv_bn, static_argnums=(2, 3, 4))

    params = init_up_relu_conv_bn(k_p1, Cin, Cout, kernel_size=1)
    out = jax.block_until_ready(fwd(params, x, 1, 1, 0))
    assert out.shape == (N, Cout, 2 * D, 2 * H, 2 * W), out.shape
    ref = up_relu_conv_bn_reference(params, x, 1, 1, 0)
    err = float(jnp.max(jnp.abs(out.astype(jnp.float32) - ref)))
    assert err < 0.2, f"kernel_size=1 max abs err {err}"

    # Secondary config exercising the general kernel_size > 1 (im2col fallback) path.
    params3 = init_up_relu_conv_bn(k_p2, Cin, 6, kernel_size=3)
    out3 = jax.block_until_ready(fwd(params3, x, 3, 1, 1))
    assert out3.shape == (N, 6, 2 * D, 2 * H, 2 * W), out3.shape
    ref3 = up_relu_conv_bn_reference(params3, x, 3, 1, 1)
    err3 = float(jnp.max(jnp.abs(out3.astype(jnp.float32) - ref3)))
    assert err3 < 0.2, f"kernel_size=3 max abs err {err3}"

    print("KERNEL_OK")
</pallas_src>

<mosaic_0001>
module attributes {stable_mosaic.version = 11 : i64} {
  func.func @_upsample_leaky_kernel(%arg0: i32, %arg1: i32, %arg2: memref<1x1x8x8x8xf32, #tpu.memory_space<vmem>>, %arg3: memref<16x8xbf16, #tpu.memory_space<vmem>>, %arg4: memref<8x16xbf16, #tpu.memory_space<vmem>>, %arg5: memref<1x1x16x16x16xbf16, #tpu.memory_space<vmem>>) attributes {dimension_semantics = [#tpu.dimension_semantics<parallel>, #tpu.dimension_semantics<parallel>], iteration_bounds = array<i64: 2, 4>, scalar_prefetch = 0 : i64, scratch_operands = 0 : i64, tpu.core_type = #tpu.core_type<tc>, window_params = [{transform_indices = @transform_0, window_bounds = array<i64: 1, 1, 8, 8, 8>}, {pipeline_mode = #tpu.pipeline_mode<synchronous>, transform_indices = @transform_1, window_bounds = array<i64: 16, 8>}, {pipeline_mode = #tpu.pipeline_mode<synchronous>, transform_indices = @transform_2, window_bounds = array<i64: 8, 16>}, {transform_indices = @transform_3, window_bounds = array<i64: 1, 1, 16, 16, 16>}]} {
    %c0 = arith.constant 0 : index
    %c0_0 = arith.constant 0 : index
    %c0_1 = arith.constant 0 : index
    %c0_2 = arith.constant 0 : index
    %c0_3 = arith.constant 0 : index
    %0 = vector.load %arg2[%c0, %c0_0, %c0_1, %c0_2, %c0_3] : memref<1x1x8x8x8xf32, #tpu.memory_space<vmem>>, vector<1x1x8x8x8xf32>
    %1 = vector.shape_cast %0 : vector<1x1x8x8x8xf32> to vector<8x8x8xf32>
    %2 = arith.truncf %1 : vector<8x8x8xf32> to vector<8x8x8xbf16>
    %c0_4 = arith.constant 0 : index
    %c0_5 = arith.constant 0 : index
    %3 = vector.load %arg3[%c0_4, %c0_5] : memref<16x8xbf16, #tpu.memory_space<vmem>>, vector<16x8xbf16>
    %4 = vector.shape_cast %3 : vector<16x8xbf16> to vector<1x16x8xbf16>
    %5 = vector.broadcast %4 : vector<1x16x8xbf16> to vector<8x16x8xbf16>
    %c0_6 = arith.constant 0 : index
    %c0_7 = arith.constant 0 : index
    %6 = vector.load %arg4[%c0_6, %c0_7] : memref<8x16xbf16, #tpu.memory_space<vmem>>, vector<8x16xbf16>
    %7 = vector.shape_cast %6 : vector<8x16xbf16> to vector<1x8x16xbf16>
    %8 = vector.broadcast %7 : vector<1x8x16xbf16> to vector<8x8x16xbf16>
    "tpu.trace_start"() <{level = 10 : i32, message = "dkh,dhw->dkw"}> : () -> ()
    %cst = arith.constant dense<0.000000e+00> : vector<8x16x8xf32>
    %9 = tpu.matmul %5, %2, %cst {dimension_numbers = #tpu.dot_dimension_numbers<[2], [1], [1], [2], [0, 0, 0, 1, 1, 2], [0], [0]>} : vector<8x16x8xbf16>, vector<8x8x8xbf16>, vector<8x16x8xf32> -> vector<8x16x8xf32>
    "tpu.trace_stop"() : () -> ()
    %10 = arith.truncf %9 : vector<8x16x8xf32> to vector<8x16x8xbf16>
    "tpu.trace_start"() <{level = 10 : i32, message = "dhw,dwv->dhv"}> : () -> ()
    %cst_8 = arith.constant dense<0.000000e+00> : vector<8x16x16xf32>
    %11 = tpu.matmul %10, %8, %cst_8 {dimension_numbers = #tpu.dot_dimension_numbers<[2], [1], [1], [2], [0, 0, 0, 1, 1, 2], [0], [0]>} : vector<8x16x8xbf16>, vector<8x8x16xbf16>, vector<8x16x16xf32> -> vector<8x16x16xf32>
    "tpu.trace_stop"() : () -> ()
    %12 = vector.extract_strided_slice %11 {offsets = [0, 0, 0], sizes = [1, 16, 16], strides = [1, 1, 1]} : vector<8x16x16xf32> to vector<1x16x16xf32>
    %13 = vector.shape_cast %12 : vector<1x16x16xf32> to vector<16x16xf32>
    %cst_9 = arith.constant 0.000000e+00 : f32
    %14 = vector.broadcast %cst_9 : f32 to vector<16x16xf32>
    %15 = arith.cmpf oge, %13, %14 : vector<16x16xf32>
    %cst_10 = arith.constant 0.00999999977 : f32
    %16 = vector.broadcast %cst_10 : f32 to vector<16x16xf32>
    %17 = arith.mulf %13, %16 : vector<16x16xf32>
    %18 = arith.select %15, %13, %17 : vector<16x16xi1>, vector<16x16xf32>
    %19 = arith.truncf %18 : vector<16x16xf32> to vector<16x16xbf16>
    %c0_11 = arith.constant 0 : index
    %c0_12 = arith.constant 0 : index
    %c0_13 = arith.constant 0 : index
    %c0_14 = arith.constant 0 : index
    %c0_15 = arith.constant 0 : index
    %20 = vector.load %arg5[%c0_11, %c0_12, %c0_13, %c0_14, %c0_15] : memref<1x1x16x16x16xbf16, #tpu.memory_space<vmem>>, vector<1x1x1x16x16xbf16>
    %21 = vector.shape_cast %20 : vector<1x1x1x16x16xbf16> to vector<16x16xbf16>
    %22 = vector.shape_cast %19 : vector<16x16xbf16> to vector<1x1x1x16x16xbf16>
    tpu.vector_store %arg5[%c0_11, %c0_12, %c0_13, %c0_14, %c0_15], %22 {strides = array<i32>} : memref<1x1x16x16x16xbf16, #tpu.memory_space<vmem>>, vector<1x1x1x16x16xbf16>,
    %23 = vector.extract_strided_slice %11 {offsets = [0, 0, 0], sizes = [1, 16, 16], strides = [1, 1, 1]} : vector<8x16x16xf32> to vector<1x16x16xf32>
    %24 = vector.shape_cast %23 : vector<1x16x16xf32> to vector<16x16xf32>
    %cst_16 = arith.constant 0.533333361 : f32
    %25 = vector.broadcast %cst_16 : f32 to vector<16x16xf32>
    %26 = arith.mulf %24, %25 : vector<16x16xf32>
    %27 = vector.extract_strided_slice %11 {offsets = [1, 0, 0], sizes = [1, 16, 16], strides = [1, 1, 1]} : vector<8x16x16xf32> to vector<1x16x16xf32>
    %28 = vector.shape_cast %27 : vector<1x16x16xf32> to vector<16x16xf32>
    %cst_17 = arith.constant 0.466666669 : f32
    %29 = vector.broadcast %cst_17 : f32 to vector<16x16xf32>
    %30 = arith.mulf %28, %29 : vector<16x16xf32>
    %31 = arith.addf %26, %30 : vector<16x16xf32>
    %cst_18 = arith.constant 0.000000e+00 : f32
    %32 = vector.broadcast %cst_18 : f32 to vector<16x16xf32>
    %33 = arith.cmpf oge, %31, %32 : vector<16x16xf32>
    %cst_19 = arith.constant 0.00999999977 : f32
    %34 = vector.broadcast %cst_19 : f32 to vector<16x16xf32>
    %35 = arith.mulf %31, %34 : vector<16x16xf32>
    %36 = arith.select %33, %31, %35 : vector<16x16xi1>, vector<16x16xf32>
    %37 = arith.truncf %36 : vector<16x16xf32> to vector<16x16xbf16>
    %c0_20 = arith.constant 0 : index
    %c0_21 = arith.constant 0 : index
    %c1 = arith.constant 1 : index
    %c0_22 = arith.constant 0 : index
    %c0_23 = arith.constant 0 : index
    %38 = vector.load %arg5[%c0_20, %c0_21, %c1, %c0_22, %c0_23] : memref<1x1x16x16x16xbf16, #tpu.memory_space<vmem>>, vector<1x1x1x16x16xbf16>
    %39 = vector.shape_cast %38 : vector<1x1x1x16x16xbf16> to vector<16x16xbf16>
    %40 = vector.shape_cast %37 : vector<16x16xbf16> to vector<1x1x1x16x16xbf16>
    tpu.vector_store %arg5[%c0_20, %c0_21, %c1, %c0_22, %c0_23], %40 {strides = array<i32>} : memref<1x1x16x16x16xbf16, #tpu.memory_space<vmem>>, vector<1x1x1x16x16xbf16>,
    %41 = vector.extract_strided_slice %11 {offsets = [0, 0, 0], sizes = [1, 16, 16], strides = [1, 1, 1]} : vector<8x16x16xf32> to vector<1x16x16xf32>
    %42 = vector.shape_cast %41 : vector<1x16x16xf32> to vector<16x16xf32>
    %cst_24 = arith.constant 0.0666666701 : f32
    %43 = vector.broadcast %cst_24 : f32 to vector<16x16xf32>
    %44 = arith.mulf %42, %43 : vector<16x16xf32>
    %45 = vector.extract_strided_slice %11 {offsets = [1, 0, 0], sizes = [1, 16, 16], strides = [1, 1, 1]} : vector<8x16x16xf32> to vector<1x16x16xf32>
    %46 = vector.shape_cast %45 : vector<1x16x16xf32> to vector<16x16xf32>
    %cst_25 = arith.constant 0.933333337 : f32
    %47 = vector.broadcast %cst_25 : f32 to vector<16x16xf32>
    %48 = arith.mulf %46, %47 : vector<16x16xf32>
    %49 = arith.addf %44, %48 : vector<16x16xf32>
    %cst_26 = arith.constant 0.000000e+00 : f32
    %50 = vector.broadcast %cst_26 : f32 to vector<16x16xf32>
    %51 = arith.cmpf oge, %49, %50 : vector<16x16xf32>
    %cst_27 = arith.constant 0.00999999977 : f32
    %52 = vector.broadcast %cst_27 : f32 to vector<16x16xf32>
    %53 = arith.mulf %49, %52 : vector<16x16xf32>
    %54 = arith.select %51, %49, %53 : vector<16x16xi1>, vector<16x16xf32>
    %55 = arith.truncf %54 : vector<16x16xf32> to vector<16x16xbf16>
    %c0_28 = arith.constant 0 : index
    %c0_29 = arith.constant 0 : index
    %c2 = arith.constant 2 : index
    %c0_30 = arith.constant 0 : index
    %c0_31 = arith.constant 0 : index
    %56 = vector.load %arg5[%c0_28, %c0_29, %c2, %c0_30, %c0_31] : memref<1x1x16x16x16xbf16, #tpu.memory_space<vmem>>, vector<1x1x1x16x16xbf16>
    %57 = vector.shape_cast %56 : vector<1x1x1x16x16xbf16> to vector<16x16xbf16>
    %58 = vector.shape_cast %55 : vector<16x16xbf16> to vector<1x1x1x16x16xbf16>
    tpu.vector_store %arg5[%c0_28, %c0_29, %c2, %c0_30, %c0_31], %58 {strides = array<i32>} : memref<1x1x16x16x16xbf16, #tpu.memory_space<vmem>>, vector<1x1x1x16x16xbf16>,
    %59 = vector.extract_strided_slice %11 {offsets = [1, 0, 0], sizes = [1, 16, 16], strides = [1, 1, 1]} : vector<8x16x16xf32> to vector<1x16x16xf32>
    %60 = vector.shape_cast %59 : vector<1x16x16xf32> to vector<16x16xf32>
    %cst_32 = arith.constant 6.000000e-01 : f32
    %61 = vector.broadcast %cst_32 : f32 to vector<16x16xf32>
    %62 = arith.mulf %60, %61 : vector<16x16xf32>
    %63 = vector.extract_strided_slice %11 {offsets = [2, 0, 0], sizes = [1, 16, 16], strides = [1, 1, 1]} : vector<8x16x16xf32> to vector<1x16x16xf32>
    %64 = vector.shape_cast %63 : vector<1x16x16xf32> to vector<16x16xf32>
    %cst_33 = arith.constant 4.000000e-01 : f32
    %65 = vector.broadcast %cst_33 : f32 to vector<16x16xf32>
    %66 = arith.mulf %64, %65 : vector<16x16xf32>
    %67 = arith.addf %62, %66 : vector<16x16xf32>
    %cst_34 = arith.constant 0.000000e+00 : f32
    %68 = vector.broadcast %cst_34 : f32 to vector<16x16xf32>
    %69 = arith.cmpf oge, %67, %68 : vector<16x16xf32>
    %cst_35 = arith.constant 0.00999999977 : f32
    %70 = vector.broadcast %cst_35 : f32 to vector<16x16xf32>
    %71 = arith.mulf %67, %70 : vector<16x16xf32>
    %72 = arith.select %69, %67, %71 : vector<16x16xi1>, vector<16x16xf32>
    %73 = arith.truncf %72 : vector<16x16xf32> to vector<16x16xbf16>
    %c0_36 = arith.constant 0 : index
    %c0_37 = arith.constant 0 : index
    %c3 = arith.constant 3 : index
    %c0_38 = arith.constant 0 : index
    %c0_39 = arith.constant 0 : index
    %74 = vector.load %arg5[%c0_36, %c0_37, %c3, %c0_38, %c0_39] : memref<1x1x16x16x16xbf16, #tpu.memory_space<vmem>>, vector<1x1x1x16x16xbf16>
    %75 = vector.shape_cast %74 : vector<1x1x1x16x16xbf16> to vector<16x16xbf16>
    %76 = vector.shape_cast %73 : vector<16x16xbf16> to vector<1x1x1x16x16xbf16>
    tpu.vector_store %arg5[%c0_36, %c0_37, %c3, %c0_38, %c0_39], %76 {strides = array<i32>} : memref<1x1x16x16x16xbf16, #tpu.memory_space<vmem>>, vector<1x1x1x16x16xbf16>,
    %77 = vector.extract_strided_slice %11 {offsets = [1, 0, 0], sizes = [1, 16, 16], strides = [1, 1, 1]} : vector<8x16x16xf32> to vector<1x16x16xf32>
    %78 = vector.shape_cast %77 : vector<1x16x16xf32> to vector<16x16xf32>
    %cst_40 = arith.constant 0.13333334 : f32
    %79 = vector.broadcast %cst_40 : f32 to vector<16x16xf32>
    %80 = arith.mulf %78, %79 : vector<16x16xf32>
    %81 = vector.extract_strided_slice %11 {offsets = [2, 0, 0], sizes = [1, 16, 16], strides = [1, 1, 1]} : vector<8x16x16xf32> to vector<1x16x16xf32>
    %82 = vector.shape_cast %81 : vector<1x16x16xf32> to vector<16x16xf32>
    %cst_41 = arith.constant 0.866666674 : f32
    %83 = vector.broadcast %cst_41 : f32 to vector<16x16xf32>
    %84 = arith.mulf %82, %83 : vector<16x16xf32>
    %85 = arith.addf %80, %84 : vector<16x16xf32>
    %cst_42 = arith.constant 0.000000e+00 : f32
    %86 = vector.broadcast %cst_42 : f32 to vector<16x16xf32>
    %87 = arith.cmpf oge, %85, %86 : vector<16x16xf32>
    %cst_43 = arith.constant 0.00999999977 : f32
    %88 = vector.broadcast %cst_43 : f32 to vector<16x16xf32>
    %89 = arith.mulf %85, %88 : vector<16x16xf32>
    %90 = arith.select %87, %85, %89 : vector<16x16xi1>, vector<16x16xf32>
    %91 = arith.truncf %90 : vector<16x16xf32> to vector<16x16xbf16>
    %c0_44 = arith.constant 0 : index
    %c0_45 = arith.constant 0 : index
    %c4 = arith.constant 4 : index
    %c0_46 = arith.constant 0 : index
    %c0_47 = arith.constant 0 : index
    %92 = vector.load %arg5[%c0_44, %c0_45, %c4, %c0_46, %c0_47] : memref<1x1x16x16x16xbf16, #tpu.memory_space<vmem>>, vector<1x1x1x16x16xbf16>
    %93 = vector.shape_cast %92 : vector<1x1x1x16x16xbf16> to vector<16x16xbf16>
    %94 = vector.shape_cast %91 : vector<16x16xbf16> to vector<1x1x1x16x16xbf16>
    tpu.vector_store %arg5[%c0_44, %c0_45, %c4, %c0_46, %c0_47], %94 {strides = array<i32>} : memref<1x1x16x16x16xbf16, #tpu.memory_space<vmem>>, vector<1x1x1x16x16xbf16>,
    %95 = vector.extract_strided_slice %11 {offsets = [2, 0, 0], sizes = [1, 16, 16], strides = [1, 1, 1]} : vector<8x16x16xf32> to vector<1x16x16xf32>
    %96 = vector.shape_cast %95 : vector<1x16x16xf32> to vector<16x16xf32>
    %cst_48 = arith.constant 0.666666686 : f32
    %97 = vector.broadcast %cst_48 : f32 to vector<16x16xf32>
    %98 = arith.mulf %96, %97 : vector<16x16xf32>
    %99 = vector.extract_strided_slice %11 {offsets = [3, 0, 0], sizes = [1, 16, 16], strides = [1, 1, 1]} : vector<8x16x16xf32> to vector<1x16x16xf32>
    %100 = vector.shape_cast %99 : vector<1x16x16xf32> to vector<16x16xf32>
    %cst_49 = arith.constant 0.333333343 : f32
    %101 = vector.broadcast %cst_49 : f32 to vector<16x16xf32>
    %102 = arith.mulf %100, %101 : vector<16x16xf32>
    %103 = arith.addf %98, %102 : vector<16x16xf32>
    %cst_50 = arith.constant 0.000000e+00 : f32
    %104 = vector.broadcast %cst_50 : f32 to vector<16x16xf32>
    %105 = arith.cmpf oge, %103, %104 : vector<16x16xf32>
    %cst_51 = arith.constant 0.00999999977 : f32
    %106 = vector.broadcast %cst_51 : f32 to vector<16x16xf32>
    %107 = arith.mulf %103, %106 : vector<16x16xf32>
    %108 = arith.select %105, %103, %107 : vector<16x16xi1>, vector<16x16xf32>
    %109 = arith.truncf %108 : vector<16x16xf32> to vector<16x16xbf16>
    %c0_52 = arith.constant 0 : index
    %c0_53 = arith.constant 0 : index
    %c5 = arith.constant 5 : index
    %c0_54 = arith.constant 0 : index
    %c0_55 = arith.constant 0 : index
    %110 = vector.load %arg5[%c0_52, %c0_53, %c5, %c0_54, %c0_55] : memref<1x1x16x16x16xbf16, #tpu.memory_space<vmem>>, vector<1x1x1x16x16xbf16>
    %111 = vector.shape_cast %110 : vector<1x1x1x16x16xbf16> to vector<16x16xbf16>
    %112 = vector.shape_cast %109 : vector<16x16xbf16> to vector<1x1x1x16x16xbf16>
    tpu.vector_store %arg5[%c0_52, %c0_53, %c5, %c0_54, %c0_55], %112 {strides = array<i32>} : memref<1x1x16x16x16xbf16, #tpu.memory_space<vmem>>, vector<1x1x1x16x16xbf16>,
    %113 = vector.extract_strided_slice %11 {offsets = [2, 0, 0], sizes = [1, 16, 16], strides = [1, 1, 1]} : vector<8x16x16xf32> to vector<1x16x16xf32>
    %114 = vector.shape_cast %113 : vector<1x16x16xf32> to vector<16x16xf32>
    %cst_56 = arith.constant 2.000000e-01 : f32
    %115 = vector.broadcast %cst_56 : f32 to vector<16x16xf32>
    %116 = arith.mulf %114, %115 : vector<16x16xf32>
    %117 = vector.extract_strided_slice %11 {offsets = [3, 0, 0], sizes = [1, 16, 16], strides = [1, 1, 1]} : vector<8x16x16xf32> to vector<1x16x16xf32>
    %118 = vector.shape_cast %117 : vector<1x16x16xf32> to vector<16x16xf32>
    %cst_57 = arith.constant 8.000000e-01 : f32
    %119 = vector.broadcast %cst_57 : f32 to vector<16x16xf32>
    %120 = arith.mulf %118, %119 : vector<16x16xf32>
    %121 = arith.addf %116, %120 : vector<16x16xf32>
    %cst_58 = arith.constant 0.000000e+00 : f32
    %122 = vector.broadcast %cst_58 : f32 to vector<16x16xf32>
    %123 = arith.cmpf oge, %121, %122 : vector<16x16xf32>
    %cst_59 = arith.constant 0.00999999977 : f32
    %124 = vector.broadcast %cst_59 : f32 to vector<16x16xf32>
    %125 = arith.mulf %121, %124 : vector<16x16xf32>
    %126 = arith.select %123, %121, %125 : vector<16x16xi1>, vector<16x16xf32>
    %127 = arith.truncf %126 : vector<16x16xf32> to vector<16x16xbf16>
    %c0_60 = arith.constant 0 : index
    %c0_61 = arith.constant 0 : index
    %c6 = arith.constant 6 : index
    %c0_62 = arith.constant 0 : index
    %c0_63 = arith.constant 0 : index
    %128 = vector.load %arg5[%c0_60, %c0_61, %c6, %c0_62, %c0_63] : memref<1x1x16x16x16xbf16, #tpu.memory_space<vmem>>, vector<1x1x1x16x16xbf16>
    %129 = vector.shape_cast %128 : vector<1x1x1x16x16xbf16> to vector<16x16xbf16>
    %130 = vector.shape_cast %127 : vector<16x16xbf16> to vector<1x1x1x16x16xbf16>
    tpu.vector_store %arg5[%c0_60, %c0_61, %c6, %c0_62, %c0_63], %130 {strides = array<i32>} : memref<1x1x16x16x16xbf16, #tpu.memory_space<vmem>>, vector<1x1x1x16x16xbf16>,
    %131 = vector.extract_strided_slice %11 {offsets = [3, 0, 0], sizes = [1, 16, 16], strides = [1, 1, 1]} : vector<8x16x16xf32> to vector<1x16x16xf32>
    %132 = vector.shape_cast %131 : vector<1x16x16xf32> to vector<16x16xf32>
    %cst_64 = arith.constant 0.733333349 : f32
    %133 = vector.broadcast %cst_64 : f32 to vector<16x16xf32>
    %134 = arith.mulf %132, %133 : vector<16x16xf32>
    %135 = vector.extract_strided_slice %11 {offsets = [4, 0, 0], sizes = [1, 16, 16], strides = [1, 1, 1]} : vector<8x16x16xf32> to vector<1x16x16xf32>
    %136 = vector.shape_cast %135 : vector<1x16x16xf32> to vector<16x16xf32>
    %cst_65 = arith.constant 0.266666681 : f32
    %137 = vector.broadcast %cst_65 : f32 to vector<16x16xf32>
    %138 = arith.mulf %136, %137 : vector<16x16xf32>
    %139 = arith.addf %134, %138 : vector<16x16xf32>
    %cst_66 = arith.constant 0.000000e+00 : f32
    %140 = vector.broadcast %cst_66 : f32 to vector<16x16xf32>
    %141 = arith.cmpf oge, %139, %140 : vector<16x16xf32>
    %cst_67 = arith.constant 0.00999999977 : f32
    %142 = vector.broadcast %cst_67 : f32 to vector<16x16xf32>
    %143 = arith.mulf %139, %142 : vector<16x16xf32>
    %144 = arith.select %141, %139, %143 : vector<16x16xi1>, vector<16x16xf32>
    %145 = arith.truncf %144 : vector<16x16xf32> to vector<16x16xbf16>
    %c0_68 = arith.constant 0 : index
    %c0_69 = arith.constant 0 : index
    %c7 = arith.constant 7 : index
    %c0_70 = arith.constant 0 : index
    %c0_71 = arith.constant 0 : index
    %146 = vector.load %arg5[%c0_68, %c0_69, %c7, %c0_70, %c0_71] : memref<1x1x16x16x16xbf16, #tpu.memory_space<vmem>>, vector<1x1x1x16x16xbf16>
    %147 = vector.shape_cast %146 : vector<1x1x1x16x16xbf16> to vector<16x16xbf16>
    %148 = vector.shape_cast %145 : vector<16x16xbf16> to vector<1x1x1x16x16xbf16>
    tpu.vector_store %arg5[%c0_68, %c0_69, %c7, %c0_70, %c0_71], %148 {strides = array<i32>} : memref<1x1x16x16x16xbf16, #tpu.memory_space<vmem>>, vector<1x1x1x16x16xbf16>,
    %149 = vector.extract_strided_slice %11 {offsets = [3, 0, 0], sizes = [1, 16, 16], strides = [1, 1, 1]} : vector<8x16x16xf32> to vector<1x16x16xf32>
    %150 = vector.shape_cast %149 : vector<1x16x16xf32> to vector<16x16xf32>
    %cst_72 = arith.constant 0.266666681 : f32
    %151 = vector.broadcast %cst_72 : f32 to vector<16x16xf32>
    %152 = arith.mulf %150, %151 : vector<16x16xf32>
    %153 = vector.extract_strided_slice %11 {offsets = [4, 0, 0], sizes = [1, 16, 16], strides = [1, 1, 1]} : vector<8x16x16xf32> to vector<1x16x16xf32>
    %154 = vector.shape_cast %153 : vector<1x16x16xf32> to vector<16x16xf32>
    %cst_73 = arith.constant 0.733333349 : f32
    %155 = vector.broadcast %cst_73 : f32 to vector<16x16xf32>
    %156 = arith.mulf %154, %155 : vector<16x16xf32>
    %157 = arith.addf %152, %156 : vector<16x16xf32>
    %cst_74 = arith.constant 0.000000e+00 : f32
    %158 = vector.broadcast %cst_74 : f32 to vector<16x16xf32>
    %159 = arith.cmpf oge, %157, %158 : vector<16x16xf32>
    %cst_75 = arith.constant 0.00999999977 : f32
    %160 = vector.broadcast %cst_75 : f32 to vector<16x16xf32>
    %161 = arith.mulf %157, %160 : vector<16x16xf32>
    %162 = arith.select %159, %157, %161 : vector<16x16xi1>, vector<16x16xf32>
    %163 = arith.truncf %162 : vector<16x16xf32> to vector<16x16xbf16>
    %c0_76 = arith.constant 0 : index
    %c0_77 = arith.constant 0 : index
    %c8 = arith.constant 8 : index
    %c0_78 = arith.constant 0 : index
    %c0_79 = arith.constant 0 : index
    %164 = vector.load %arg5[%c0_76, %c0_77, %c8, %c0_78, %c0_79] : memref<1x1x16x16x16xbf16, #tpu.memory_space<vmem>>, vector<1x1x1x16x16xbf16>
    %165 = vector.shape_cast %164 : vector<1x1x1x16x16xbf16> to vector<16x16xbf16>
    %166 = vector.shape_cast %163 : vector<16x16xbf16> to vector<1x1x1x16x16xbf16>
    tpu.vector_store %arg5[%c0_76, %c0_77, %c8, %c0_78, %c0_79], %166 {strides = array<i32>} : memref<1x1x16x16x16xbf16, #tpu.memory_space<vmem>>, vector<1x1x1x16x16xbf16>,
    %167 = vector.extract_strided_slice %11 {offsets = [4, 0, 0], sizes = [1, 16, 16], strides = [1, 1, 1]} : vector<8x16x16xf32> to vector<1x16x16xf32>
    %168 = vector.shape_cast %167 : vector<1x16x16xf32> to vector<16x16xf32>
    %cst_80 = arith.constant 8.000000e-01 : f32
    %169 = vector.broadcast %cst_80 : f32 to vector<16x16xf32>
    %170 = arith.mulf %168, %169 : vector<16x16xf32>
    %171 = vector.extract_strided_slice %11 {offsets = [5, 0, 0], sizes = [1, 16, 16], strides = [1, 1, 1]} : vector<8x16x16xf32> to vector<1x16x16xf32>
    %172 = vector.shape_cast %171 : vector<1x16x16xf32> to vector<16x16xf32>
    %cst_81 = arith.constant 2.000000e-01 : f32
    %173 = vector.broadcast %cst_81 : f32 to vector<16x16xf32>
    %174 = arith.mulf %172, %173 : vector<16x16xf32>
    %175 = arith.addf %170, %174 : vector<16x16xf32>
    %cst_82 = arith.constant 0.000000e+00 : f32
    %176 = vector.broadcast %cst_82 : f32 to vector<16x16xf32>
    %177 = arith.cmpf oge, %175, %176 : vector<16x16xf32>
    %cst_83 = arith.constant 0.00999999977 : f32
    %178 = vector.broadcast %cst_83 : f32 to vector<16x16xf32>
    %179 = arith.mulf %175, %178 : vector<16x16xf32>
    %180 = arith.select %177, %175, %179 : vector<16x16xi1>, vector<16x16xf32>
    %181 = arith.truncf %180 : vector<16x16xf32> to vector<16x16xbf16>
    %c0_84 = arith.constant 0 : index
    %c0_85 = arith.constant 0 : index
    %c9 = arith.constant 9 : index
    %c0_86 = arith.constant 0 : index
    %c0_87 = arith.constant 0 : index
    %182 = vector.load %arg5[%c0_84, %c0_85, %c9, %c0_86, %c0_87] : memref<1x1x16x16x16xbf16, #tpu.memory_space<vmem>>, vector<1x1x1x16x16xbf16>
    %183 = vector.shape_cast %182 : vector<1x1x1x16x16xbf16> to vector<16x16xbf16>
    %184 = vector.shape_cast %181 : vector<16x16xbf16> to vector<1x1x1x16x16xbf16>
    tpu.vector_store %arg5[%c0_84, %c0_85, %c9, %c0_86, %c0_87], %184 {strides = array<i32>} : memref<1x1x16x16x16xbf16, #tpu.memory_space<vmem>>, vector<1x1x1x16x16xbf16>,
    %185 = vector.extract_strided_slice %11 {offsets = [4, 0, 0], sizes = [1, 16, 16], strides = [1, 1, 1]} : vector<8x16x16xf32> to vector<1x16x16xf32>
    %186 = vector.shape_cast %185 : vector<1x16x16xf32> to vector<16x16xf32>
    %cst_88 = arith.constant 0.333333343 : f32
    %187 = vector.broadcast %cst_88 : f32 to vector<16x16xf32>
    %188 = arith.mulf %186, %187 : vector<16x16xf32>
    %189 = vector.extract_strided_slice %11 {offsets = [5, 0, 0], sizes = [1, 16, 16], strides = [1, 1, 1]} : vector<8x16x16xf32> to vector<1x16x16xf32>
    %190 = vector.shape_cast %189 : vector<1x16x16xf32> to vector<16x16xf32>
    %cst_89 = arith.constant 0.666666686 : f32
    %191 = vector.broadcast %cst_89 : f32 to vector<16x16xf32>
    %192 = arith.mulf %190, %191 : vector<16x16xf32>
    %193 = arith.addf %188, %192 : vector<16x16xf32>
    %cst_90 = arith.constant 0.000000e+00 : f32
    %194 = vector.broadcast %cst_90 : f32 to vector<16x16xf32>
    %195 = arith.cmpf oge, %193, %194 : vector<16x16xf32>
    %cst_91 = arith.constant 0.00999999977 : f32
    %196 = vector.broadcast %cst_91 : f32 to vector<16x16xf32>
    %197 = arith.mulf %193, %196 : vector<16x16xf32>
    %198 = arith.select %195, %193, %197 : vector<16x16xi1>, vector<16x16xf32>
    %199 = arith.truncf %198 : vector<16x16xf32> to vector<16x16xbf16>
    %c0_92 = arith.constant 0 : index
    %c0_93 = arith.constant 0 : index
    %c10 = arith.constant 10 : index
    %c0_94 = arith.constant 0 : index
    %c0_95 = arith.constant 0 : index
    %200 = vector.load %arg5[%c0_92, %c0_93, %c10, %c0_94, %c0_95] : memref<1x1x16x16x16xbf16, #tpu.memory_space<vmem>>, vector<1x1x1x16x16xbf16>
    %201 = vector.shape_cast %200 : vector<1x1x1x16x16xbf16> to vector<16x16xbf16>
    %202 = vector.shape_cast %199 : vector<16x16xbf16> to vector<1x1x1x16x16xbf16>
    tpu.vector_store %arg5[%c0_92, %c0_93, %c10, %c0_94, %c0_95], %202 {strides = array<i32>} : memref<1x1x16x16x16xbf16, #tpu.memory_space<vmem>>, vector<1x1x1x16x16xbf16>,
    %203 = vector.extract_strided_slice %11 {offsets = [5, 0, 0], sizes = [1, 16, 16], strides = [1, 1, 1]} : vector<8x16x16xf32> to vector<1x16x16xf32>
    %204 = vector.shape_cast %203 : vector<1x16x16xf32> to vector<16x16xf32>
    %cst_96 = arith.constant 0.866666674 : f32
    %205 = vector.broadcast %cst_96 : f32 to vector<16x16xf32>
    %206 = arith.mulf %204, %205 : vector<16x16xf32>
    %207 = vector.extract_strided_slice %11 {offsets = [6, 0, 0], sizes = [1, 16, 16], strides = [1, 1, 1]} : vector<8x16x16xf32> to vector<1x16x16xf32>
    %208 = vector.shape_cast %207 : vector<1x16x16xf32> to vector<16x16xf32>
    %cst_97 = arith.constant 0.13333334 : f32
    %209 = vector.broadcast %cst_97 : f32 to vector<16x16xf32>
    %210 = arith.mulf %208, %209 : vector<16x16xf32>
    %211 = arith.addf %206, %210 : vector<16x16xf32>
    %cst_98 = arith.constant 0.000000e+00 : f32
    %212 = vector.broadcast %cst_98 : f32 to vector<16x16xf32>
    %213 = arith.cmpf oge, %211, %212 : vector<16x16xf32>
    %cst_99 = arith.constant 0.00999999977 : f32
    %214 = vector.broadcast %cst_99 : f32 to vector<16x16xf32>
    %215 = arith.mulf %211, %214 : vector<16x16xf32>
    %216 = arith.select %213, %211, %215 : vector<16x16xi1>, vector<16x16xf32>
    %217 = arith.truncf %216 : vector<16x16xf32> to vector<16x16xbf16>
    %c0_100 = arith.constant 0 : index
    %c0_101 = arith.constant 0 : index
    %c11 = arith.constant 11 : index
    %c0_102 = arith.constant 0 : index
    %c0_103 = arith.constant 0 : index
    %218 = vector.load %arg5[%c0_100, %c0_101, %c11, %c0_102, %c0_103] : memref<1x1x16x16x16xbf16, #tpu.memory_space<vmem>>, vector<1x1x1x16x16xbf16>
    %219 = vector.shape_cast %218 : vector<1x1x1x16x16xbf16> to vector<16x16xbf16>
    %220 = vector.shape_cast %217 : vector<16x16xbf16> to vector<1x1x1x16x16xbf16>
    tpu.vector_store %arg5[%c0_100, %c0_101, %c11, %c0_102, %c0_103], %220 {strides = array<i32>} : memref<1x1x16x16x16xbf16, #tpu.memory_space<vmem>>, vector<1x1x1x16x16xbf16>,
    %221 = vector.extract_strided_slice %11 {offsets = [5, 0, 0], sizes = [1, 16, 16], strides = [1, 1, 1]} : vector<8x16x16xf32> to vector<1x16x16xf32>
    %222 = vector.shape_cast %221 : vector<1x16x16xf32> to vector<16x16xf32>
    %cst_104 = arith.constant 4.000000e-01 : f32
    %223 = vector.broadcast %cst_104 : f32 to vector<16x16xf32>
    %224 = arith.mulf %222, %223 : vector<16x16xf32>
    %225 = vector.extract_strided_slice %11 {offsets = [6, 0, 0], sizes = [1, 16, 16], strides = [1, 1, 1]} : vector<8x16x16xf32> to vector<1x16x16xf32>
    %226 = vector.shape_cast %225 : vector<1x16x16xf32> to vector<16x16xf32>
    %cst_105 = arith.constant 6.000000e-01 : f32
    %227 = vector.broadcast %cst_105 : f32 to vector<16x16xf32>
    %228 = arith.mulf %226, %227 : vector<16x16xf32>
    %229 = arith.addf %224, %228 : vector<16x16xf32>
    %cst_106 = arith.constant 0.000000e+00 : f32
    %230 = vector.broadcast %cst_106 : f32 to vector<16x16xf32>
    %231 = arith.cmpf oge, %229, %230 : vector<16x16xf32>
    %cst_107 = arith.constant 0.00999999977 : f32
    %232 = vector.broadcast %cst_107 : f32 to vector<16x16xf32>
    %233 = arith.mulf %229, %232 : vector<16x16xf32>
    %234 = arith.select %231, %229, %233 : vector<16x16xi1>, vector<16x16xf32>
    %235 = arith.truncf %234 : vector<16x16xf32> to vector<16x16xbf16>
    %c0_108 = arith.constant 0 : index
    %c0_109 = arith.constant 0 : index
    %c12 = arith.constant 12 : index
    %c0_110 = arith.constant 0 : index
    %c0_111 = arith.constant 0 : index
    %236 = vector.load %arg5[%c0_108, %c0_109, %c12, %c0_110, %c0_111] : memref<1x1x16x16x16xbf16, #tpu.memory_space<vmem>>, vector<1x1x1x16x16xbf16>
    %237 = vector.shape_cast %236 : vector<1x1x1x16x16xbf16> to vector<16x16xbf16>
    %238 = vector.shape_cast %235 : vector<16x16xbf16> to vector<1x1x1x16x16xbf16>
    tpu.vector_store %arg5[%c0_108, %c0_109, %c12, %c0_110, %c0_111], %238 {strides = array<i32>} : memref<1x1x16x16x16xbf16, #tpu.memory_space<vmem>>, vector<1x1x1x16x16xbf16>,
    %239 = vector.extract_strided_slice %11 {offsets = [6, 0, 0], sizes = [1, 16, 16], strides = [1, 1, 1]} : vector<8x16x16xf32> to vector<1x16x16xf32>
    %240 = vector.shape_cast %239 : vector<1x16x16xf32> to vector<16x16xf32>
    %cst_112 = arith.constant 0.933333337 : f32
    %241 = vector.broadcast %cst_112 : f32 to vector<16x16xf32>
    %242 = arith.mulf %240, %241 : vector<16x16xf32>
    %243 = vector.extract_strided_slice %11 {offsets = [7, 0, 0], sizes = [1, 16, 16], strides = [1, 1, 1]} : vector<8x16x16xf32> to vector<1x16x16xf32>
    %244 = vector.shape_cast %243 : vector<1x16x16xf32> to vector<16x16xf32>
    %cst_113 = arith.constant 0.0666666701 : f32
    %245 = vector.broadcast %cst_113 : f32 to vector<16x16xf32>
    %246 = arith.mulf %244, %245 : vector<16x16xf32>
    %247 = arith.addf %242, %246 : vector<16x16xf32>
    %cst_114 = arith.constant 0.000000e+00 : f32
    %248 = vector.broadcast %cst_114 : f32 to vector<16x16xf32>
    %249 = arith.cmpf oge, %247, %248 : vector<16x16xf32>
    %cst_115 = arith.constant 0.00999999977 : f32
    %250 = vector.broadcast %cst_115 : f32 to vector<16x16xf32>
    %251 = arith.mulf %247, %250 : vector<16x16xf32>
    %252 = arith.select %249, %247, %251 : vector<16x16xi1>, vector<16x16xf32>
    %253 = arith.truncf %252 : vector<16x16xf32> to vector<16x16xbf16>
    %c0_116 = arith.constant 0 : index
    %c0_117 = arith.constant 0 : index
    %c13 = arith.constant 13 : index
    %c0_118 = arith.constant 0 : index
    %c0_119 = arith.constant 0 : index
    %254 = vector.load %arg5[%c0_116, %c0_117, %c13, %c0_118, %c0_119] : memref<1x1x16x16x16xbf16, #tpu.memory_space<vmem>>, vector<1x1x1x16x16xbf16>
    %255 = vector.shape_cast %254 : vector<1x1x1x16x16xbf16> to vector<16x16xbf16>
    %256 = vector.shape_cast %253 : vector<16x16xbf16> to vector<1x1x1x16x16xbf16>
    tpu.vector_store %arg5[%c0_116, %c0_117, %c13, %c0_118, %c0_119], %256 {strides = array<i32>} : memref<1x1x16x16x16xbf16, #tpu.memory_space<vmem>>, vector<1x1x1x16x16xbf16>,
    %257 = vector.extract_strided_slice %11 {offsets = [6, 0, 0], sizes = [1, 16, 16], strides = [1, 1, 1]} : vector<8x16x16xf32> to vector<1x16x16xf32>
    %258 = vector.shape_cast %257 : vector<1x16x16xf32> to vector<16x16xf32>
    %cst_120 = arith.constant 0.466666669 : f32
    %259 = vector.broadcast %cst_120 : f32 to vector<16x16xf32>
    %260 = arith.mulf %258, %259 : vector<16x16xf32>
    %261 = vector.extract_strided_slice %11 {offsets = [7, 0, 0], sizes = [1, 16, 16], strides = [1, 1, 1]} : vector<8x16x16xf32> to vector<1x16x16xf32>
    %262 = vector.shape_cast %261 : vector<1x16x16xf32> to vector<16x16xf32>
    %cst_121 = arith.constant 0.533333361 : f32
    %263 = vector.broadcast %cst_121 : f32 to vector<16x16xf32>
    %264 = arith.mulf %262, %263 : vector<16x16xf32>
    %265 = arith.addf %260, %264 : vector<16x16xf32>
    %cst_122 = arith.constant 0.000000e+00 : f32
    %266 = vector.broadcast %cst_122 : f32 to vector<16x16xf32>
    %267 = arith.cmpf oge, %265, %266 : vector<16x16xf32>
    %cst_123 = arith.constant 0.00999999977 : f32
    %268 = vector.broadcast %cst_123 : f32 to vector<16x16xf32>
    %269 = arith.mulf %265, %268 : vector<16x16xf32>
    %270 = arith.select %267, %265, %269 : vector<16x16xi1>, vector<16x16xf32>
    %271 = arith.truncf %270 : vector<16x16xf32> to vector<16x16xbf16>
    %c0_124 = arith.constant 0 : index
    %c0_125 = arith.constant 0 : index
    %c14 = arith.constant 14 : index
    %c0_126 = arith.constant 0 : index
    %c0_127 = arith.constant 0 : index
    %272 = vector.load %arg5[%c0_124, %c0_125, %c14, %c0_126, %c0_127] : memref<1x1x16x16x16xbf16, #tpu.memory_space<vmem>>, vector<1x1x1x16x16xbf16>
    %273 = vector.shape_cast %272 : vector<1x1x1x16x16xbf16> to vector<16x16xbf16>
    %274 = vector.shape_cast %271 : vector<16x16xbf16> to vector<1x1x1x16x16xbf16>
    tpu.vector_store %arg5[%c0_124, %c0_125, %c14, %c0_126, %c0_127], %274 {strides = array<i32>} : memref<1x1x16x16x16xbf16, #tpu.memory_space<vmem>>, vector<1x1x1x16x16xbf16>,
    %275 = vector.extract_strided_slice %11 {offsets = [7, 0, 0], sizes = [1, 16, 16], strides = [1, 1, 1]} : vector<8x16x16xf32> to vector<1x16x16xf32>
    %276 = vector.shape_cast %275 : vector<1x16x16xf32> to vector<16x16xf32>
    %cst_128 = arith.constant 0.000000e+00 : f32
    %277 = vector.broadcast %cst_128 : f32 to vector<16x16xf32>
    %278 = arith.cmpf oge, %276, %277 : vector<16x16xf32>
    %cst_129 = arith.constant 0.00999999977 : f32
    %279 = vector.broadcast %cst_129 : f32 to vector<16x16xf32>
    %280 = arith.mulf %276, %279 : vector<16x16xf32>
    %281 = arith.select %278, %276, %280 : vector<16x16xi1>, vector<16x16xf32>
    %282 = arith.truncf %281 : vector<16x16xf32> to vector<16x16xbf16>
    %c0_130 = arith.constant 0 : index
    %c0_131 = arith.constant 0 : index
    %c15 = arith.constant 15 : index
    %c0_132 = arith.constant 0 : index
    %c0_133 = arith.constant 0 : index
    %283 = vector.load %arg5[%c0_130, %c0_131, %c15, %c0_132, %c0_133] : memref<1x1x16x16x16xbf16, #tpu.memory_space<vmem>>, vector<1x1x1x16x16xbf16>
    %284 = vector.shape_cast %283 : vector<1x1x1x16x16xbf16> to vector<16x16xbf16>
    %285 = vector.shape_cast %282 : vector<16x16xbf16> to vector<1x1x1x16x16xbf16>
    tpu.vector_store %arg5[%c0_130, %c0_131, %c15, %c0_132, %c0_133], %285 {strides = array<i32>} : memref<1x1x16x16x16xbf16, #tpu.memory_space<vmem>>, vector<1x1x1x16x16xbf16>,
    return
  }
  func.func @transform_0(%arg0: i32, %arg1: i32) -> (i32, i32, i32, i32, i32) {
    %c0_i32 = arith.constant 0 : i32
    %c0_i32_0 = arith.constant 0 : i32
    %c0_i32_1 = arith.constant 0 : i32
    %c0_i32_2 = arith.constant 0 : i32
    return %arg0, %arg1, %c0_i32, %c0_i32_0, %c0_i32_1 : i32, i32, i32, i32, i32
  }
  func.func @transform_1(%arg0: i32, %arg1: i32) -> (i32, i32) {
    %c0_i32 = arith.constant 0 : i32
    %c0_i32_0 = arith.constant 0 : i32
    %c0_i32_1 = arith.constant 0 : i32
    return %c0_i32, %c0_i32_0 : i32, i32
  }
  func.func @transform_2(%arg0: i32, %arg1: i32) -> (i32, i32) {
    %c0_i32 = arith.constant 0 : i32
    %c0_i32_0 = arith.constant 0 : i32
    %c0_i32_1 = arith.constant 0 : i32
    return %c0_i32, %c0_i32_0 : i32, i32
  }
  func.func @transform_3(%arg0: i32, %arg1: i32) -> (i32, i32, i32, i32, i32) {
    %c0_i32 = arith.constant 0 : i32
    %c0_i32_0 = arith.constant 0 : i32
    %c0_i32_1 = arith.constant 0 : i32
    %c0_i32_2 = arith.constant 0 : i32
    return %arg0, %arg1, %c0_i32, %c0_i32_0, %c0_i32_1 : i32, i32, i32, i32, i32
  }
}

module attributes {stable_mosaic.version = 11 : i64} {
  func.func @_conv_stats_kernel(%arg0: i32, %arg1: i32, %arg2: memref<1x8x2048xbf16, #tpu.memory_space<vmem>>, %arg3: memref<8x8xbf16, #tpu.memory_space<vmem>>, %arg4: memref<1x8x2048xbf16, #tpu.memory_space<vmem>>, %arg5: memref<1x1x8x1xf32, #tpu.memory_space<vmem>>, %arg6: memref<1x1x8x1xf32, #tpu.memory_space<vmem>>) attributes {dimension_semantics = [#tpu.dimension_semantics<parallel>, #tpu.dimension_semantics<parallel>], iteration_bounds = array<i64: 2, 2>, scalar_prefetch = 0 : i64, scratch_operands = 0 : i64, tpu.core_type = #tpu.core_type<tc>, window_params = [{transform_indices = @transform_0, window_bounds = array<i64: 1, 8, 2048>}, {pipeline_mode = #tpu.pipeline_mode<synchronous>, transform_indices = @transform_1, window_bounds = array<i64: 8, 8>}, {transform_indices = @transform_2, window_bounds = array<i64: 1, 8, 2048>}, {transform_indices = @transform_3, window_bounds = array<i64: 1, 1, 8, 1>}, {transform_indices = @transform_4, window_bounds = array<i64: 1, 1, 8, 1>}]} {
    %c0 = arith.constant 0 : index
    %c0_0 = arith.constant 0 : index
    %0 = vector.load %arg3[%c0, %c0_0] : memref<8x8xbf16, #tpu.memory_space<vmem>>, vector<8x8xbf16>
    %c0_1 = arith.constant 0 : index
    %c0_2 = arith.constant 0 : index
    %c0_3 = arith.constant 0 : index
    %1 = vector.load %arg2[%c0_1, %c0_2, %c0_3] : memref<1x8x2048xbf16, #tpu.memory_space<vmem>>, vector<1x8x2048xbf16>
    %2 = vector.shape_cast %1 : vector<1x8x2048xbf16> to vector<8x2048xbf16>
    %cst = arith.constant dense<0.000000e+00> : vector<8x2048xf32>
    %3 = tpu.matmul %0, %2, %cst {dimension_numbers = #tpu.dot_dimension_numbers<[1], [0], [0], [1], [0, 0, 1, 1], [], []>} : vector<8x8xbf16>, vector<8x2048xbf16>, vector<8x2048xf32> -> vector<8x2048xf32>
    %4 = arith.truncf %3 : vector<8x2048xf32> to vector<8x2048xbf16>
    %c0_4 = arith.constant 0 : index
    %c0_5 = arith.constant 0 : index
    %c0_6 = arith.constant 0 : index
    %5 = vector.load %arg4[%c0_4, %c0_5, %c0_6] : memref<1x8x2048xbf16, #tpu.memory_space<vmem>>, vector<1x8x2048xbf16>
    %6 = vector.shape_cast %5 : vector<1x8x2048xbf16> to vector<8x2048xbf16>
    %7 = vector.shape_cast %4 : vector<8x2048xbf16> to vector<1x8x2048xbf16>
    tpu.vector_store %arg4[%c0_4, %c0_5, %c0_6], %7 {strides = array<i32>} : memref<1x8x2048xbf16, #tpu.memory_space<vmem>>, vector<1x8x2048xbf16>,
    %cst_7 = arith.constant dense<0.000000e+00> : vector<8xf32>
    %8 = vector.multi_reduction <add>, %3, %cst_7 [1] : vector<8x2048xf32> to vector<8xf32>
    %9 = vector.shape_cast %8 : vector<8xf32> to vector<8x1xf32>
    %c0_8 = arith.constant 0 : index
    %c0_9 = arith.constant 0 : index
    %c0_10 = arith.constant 0 : index
    %c0_11 = arith.constant 0 : index
    %10 = vector.load %arg5[%c0_8, %c0_9, %c0_10, %c0_11] : memref<1x1x8x1xf32, #tpu.memory_space<vmem>>, vector<1x1x8x1xf32>
    %11 = vector.shape_cast %10 : vector<1x1x8x1xf32> to vector<8x1xf32>
    %12 = vector.shape_cast %9 : vector<8x1xf32> to vector<1x1x8x1xf32>
    tpu.vector_store %arg5[%c0_8, %c0_9, %c0_10, %c0_11], %12 {strides = array<i32>} : memref<1x1x8x1xf32, #tpu.memory_space<vmem>>, vector<1x1x8x1xf32>,
    %13 = arith.mulf %3, %3 : vector<8x2048xf32>
    %cst_12 = arith.constant dense<0.000000e+00> : vector<8xf32>
    %14 = vector.multi_reduction <add>, %13, %cst_12 [1] : vector<8x2048xf32> to vector<8xf32>
    %15 = vector.shape_cast %14 : vector<8xf32> to vector<8x1xf32>
    %c0_13 = arith.constant 0 : index
    %c0_14 = arith.constant 0 : index
    %c0_15 = arith.constant 0 : index
    %c0_16 = arith.constant 0 : index
    %16 = vector.load %arg6[%c0_13, %c0_14, %c0_15, %c0_16] : memref<1x1x8x1xf32, #tpu.memory_space<vmem>>, vector<1x1x8x1xf32>
    %17 = vector.shape_cast %16 : vector<1x1x8x1xf32> to vector<8x1xf32>
    %18 = vector.shape_cast %15 : vector<8x1xf32> to vector<1x1x8x1xf32>
    tpu.vector_store %arg6[%c0_13, %c0_14, %c0_15, %c0_16], %18 {strides = array<i32>} : memref<1x1x8x1xf32, #tpu.memory_space<vmem>>, vector<1x1x8x1xf32>,
    return
  }
  func.func @transform_0(%arg0: i32, %arg1: i32) -> (i32, i32, i32) {
    %c0_i32 = arith.constant 0 : i32
    %c0_i32_0 = arith.constant 0 : i32
    return %arg0, %c0_i32, %arg1 : i32, i32, i32
  }
  func.func @transform_1(%arg0: i32, %arg1: i32) -> (i32, i32) {
    %c0_i32 = arith.constant 0 : i32
    %c0_i32_0 = arith.constant 0 : i32
    %c0_i32_1 = arith.constant 0 : i32
    return %c0_i32, %c0_i32_0 : i32, i32
  }
  func.func @transform_2(%arg0: i32, %arg1: i32) -> (i32, i32, i32) {
    %c0_i32 = arith.constant 0 : i32
    %c0_i32_0 = arith.constant 0 : i32
    return %arg0, %c0_i32, %arg1 : i32, i32, i32
  }
  func.func @transform_3(%arg0: i32, %arg1: i32) -> (i32, i32, i32, i32) {
    %c0_i32 = arith.constant 0 : i32
    %c0_i32_0 = arith.constant 0 : i32
    %c0_i32_1 = arith.constant 0 : i32
    return %arg0, %arg1, %c0_i32, %c0_i32_0 : i32, i32, i32, i32
  }
  func.func @transform_4(%arg0: i32, %arg1: i32) -> (i32, i32, i32, i32) {
    %c0_i32 = arith.constant 0 : i32
    %c0_i32_0 = arith.constant 0 : i32
    %c0_i32_1 = arith.constant 0 : i32
    return %arg0, %arg1, %c0_i32, %c0_i32_0 : i32, i32, i32, i32
  }
}

module attributes {stable_mosaic.version = 11 : i64} {
  func.func @_norm_affine_kernel(%arg0: i32, %arg1: i32, %arg2: memref<1x8x2048xbf16, #tpu.memory_space<vmem>>, %arg3: memref<1x8x1xf32, #tpu.memory_space<vmem>>, %arg4: memref<1x8x1xf32, #tpu.memory_space<vmem>>, %arg5: memref<1x8x2048xbf16, #tpu.memory_space<vmem>>) attributes {dimension_semantics = [#tpu.dimension_semantics<parallel>, #tpu.dimension_semantics<parallel>], iteration_bounds = array<i64: 2, 2>, scalar_prefetch = 0 : i64, scratch_operands = 0 : i64, tpu.core_type = #tpu.core_type<tc>, window_params = [{transform_indices = @transform_0, window_bounds = array<i64: 1, 8, 2048>}, {transform_indices = @transform_1, window_bounds = array<i64: 1, 8, 1>}, {transform_indices = @transform_2, window_bounds = array<i64: 1, 8, 1>}, {transform_indices = @transform_3, window_bounds = array<i64: 1, 8, 2048>}]} {
    %c0 = arith.constant 0 : index
    %c0_0 = arith.constant 0 : index
    %c0_1 = arith.constant 0 : index
    %0 = vector.load %arg2[%c0, %c0_0, %c0_1] : memref<1x8x2048xbf16, #tpu.memory_space<vmem>>, vector<1x8x2048xbf16>
    %1 = vector.shape_cast %0 : vector<1x8x2048xbf16> to vector<8x2048xbf16>
    %2 = arith.extf %1 : vector<8x2048xbf16> to vector<8x2048xf32>
    %c0_2 = arith.constant 0 : index
    %c0_3 = arith.constant 0 : index
    %c0_4 = arith.constant 0 : index
    %3 = vector.load %arg3[%c0_2, %c0_3, %c0_4] : memref<1x8x1xf32, #tpu.memory_space<vmem>>, vector<1x8x1xf32>
    %4 = vector.shape_cast %3 : vector<1x8x1xf32> to vector<8x1xf32>
    %5 = vector.broadcast %4 : vector<8x1xf32> to vector<8x2048xf32>
    %6 = arith.mulf %2, %5 : vector<8x2048xf32>
    %c0_5 = arith.constant 0 : index
    %c0_6 = arith.constant 0 : index
    %c0_7 = arith.constant 0 : index
    %7 = vector.load %arg4[%c0_5, %c0_6, %c0_7] : memref<1x8x1xf32, #tpu.memory_space<vmem>>, vector<1x8x1xf32>
    %8 = vector.shape_cast %7 : vector<1x8x1xf32> to vector<8x1xf32>
    %9 = vector.broadcast %8 : vector<8x1xf32> to vector<8x2048xf32>
    %10 = arith.addf %6, %9 : vector<8x2048xf32>
    %11 = arith.truncf %10 : vector<8x2048xf32> to vector<8x2048xbf16>
    %c0_8 = arith.constant 0 : index
    %c0_9 = arith.constant 0 : index
    %c0_10 = arith.constant 0 : index
    %12 = vector.load %arg5[%c0_8, %c0_9, %c0_10] : memref<1x8x2048xbf16, #tpu.memory_space<vmem>>, vector<1x8x2048xbf16>
    %13 = vector.shape_cast %12 : vector<1x8x2048xbf16> to vector<8x2048xbf16>
    %14 = vector.shape_cast %11 : vector<8x2048xbf16> to vector<1x8x2048xbf16>
    tpu.vector_store %arg5[%c0_8, %c0_9, %c0_10], %14 {strides = array<i32>} : memref<1x8x2048xbf16, #tpu.memory_space<vmem>>, vector<1x8x2048xbf16>,
    return
  }
  func.func @transform_0(%arg0: i32, %arg1: i32) -> (i32, i32, i32) {
    %c0_i32 = arith.constant 0 : i32
    %c0_i32_0 = arith.constant 0 : i32
    return %arg0, %c0_i32, %arg1 : i32, i32, i32
  }
  func.func @transform_1(%arg0: i32, %arg1: i32) -> (i32, i32, i32) {
    %c0_i32 = arith.constant 0 : i32
    %c0_i32_0 = arith.constant 0 : i32
    %c0_i32_1 = arith.constant 0 : i32
    return %arg0, %c0_i32, %c0_i32_0 : i32, i32, i32
  }
  func.func @transform_2(%arg0: i32, %arg1: i32) -> (i32, i32, i32) {
    %c0_i32 = arith.constant 0 : i32
    %c0_i32_0 = arith.constant 0 : i32
    %c0_i32_1 = arith.constant 0 : i32
    return %arg0, %c0_i32, %c0_i32_0 : i32, i32, i32
  }
  func.func @transform_3(%arg0: i32, %arg1: i32) -> (i32, i32, i32) {
    %c0_i32 = arith.constant 0 : i32
    %c0_i32_0 = arith.constant 0 : i32
    return %arg0, %c0_i32, %arg1 : i32, i32, i32
  }
}

</mosaic_0001>

<llo_original>
// kernel: up_relu_conv_bn.5
$region0: #{up_relu_conv_bn.5}
  #allocation0 [shape = 'u32[]', space=smem, size = 0x4, offset = 0x4, fixed_abs, tag = 'smem constant byte address 0x4 - core index']
  #allocation1 [shape = 'u32[144,128]{1,0:T(1,128)}', space=vmem, size = 0x12000, scoped, tag = 'internal scratch']
  %s0 = inlined_call_operand.vmem [shape: bf16[2,8,4096], index: 0, kind: input, shape index: {}]
  %s1 = inlined_call_operand.vmem [shape: f32[2,8,1], index: 1, kind: input, shape index: {}]
  %s2 = inlined_call_operand.vmem [shape: f32[2,8,1], index: 2, kind: input, shape index: {}]
  %s3 = inlined_call_operand.vmem [shape: bf16[2,8,4096], index: 3, kind: output, shape index: {}]
  %s4 = sld [smem:[#allocation0]]
  $region45: #{up_relu_conv_bn.5} parent=0
    _
  %s6 = ssub.s32 1, %s4
  %s7 = scalar_select 0, %s6, %s4
  loop: start=0, step=1, limit=6
  $region2: #{up_relu_conv_bn.5} parent=0 // loop_pre_header
    _
  $region3: #{up_relu_conv_bn.5} parent=0 // loop_header
    %s9 = sphi 0, %s13
    %p10 = scmp.ge.s32.totalorder %s9, 6
    %s16 = sphi 0, %s28
    %s17 = sphi 0, %s24
    %s18 = sphi 0, %s16
    %s19 = sphi 0, %s17
    %s20 = sphi 0, %s18
    %s21 = sphi 0, %s19
    %s33 = sphi 0, %s35
    %s36 = sphi 0, %s33
    %s37 = sphi 0, %s36
    %s53 = sphi 0, %s37
    %s59 = sphi 0, %s61
    %s62 = sphi 0, %s59
    %s63 = sphi 0, %s62
    %s79 = sphi 0, %s63
    %s85 = sphi 0, %s87
    %s88 = sphi 0, %s85
    %s89 = sphi 0, %s88
    %s105 = sphi 0, %s89
    %s113 = sphi 0, %s115
    %s116 = sphi 0, %s113
    %s117 = sphi 0, %s116
    %s133 = sphi 0, %s117
  $region4: #{up_relu_conv_bn.5} parent=0 // loop_header_branch
    %12 = sbr.rel (%p10) target = $region8
  $region5: #{up_relu_conv_bn.5} parent=0 // loop_body
    %s14 = ssub.s32 %s9, 1
    %s15 = ssub.s32 %s9, 2
    %s22 = sadd.s32 1, %s17
    %p23 = scmp.ge.s32.totalorder %s22, 2
    %s24 = scalar_select %p23, 0, %s22
    %s25 = sadd.s32 1, %s16
    %s26 = scalar_select %p23, %s25, %s16
    %p27 = scmp.ge.s32.totalorder %s26, 2
    %s28 = scalar_select %p27, 0, %s26
    %s29 = ssub.s32 %s16, %s28
    %s30 = ssub.s32 %s17, %s24
    %s31 = sor.u32 %s29, %s30
    %p32 = scmp.eq.s32.totalorder %s31, 0
    %s34 = sadd.s32 %s33, 1
    %s35 = scalar_select %p32, %s33, %s34
    %p38 = pneg %p32
    %p39 = scmp.eq.s32.totalorder %s9, 3
    %p40 = por %p38, %p39
    %p41 = scmp.ne.s32.totalorder %s33, %s36
    %p42 = scmp.eq.s32.totalorder %s9, 0
    %p43 = por %p41, %p42
    %p44 = scmp.ne.s32.totalorder %s33, %s36
    %p45 = scmp.eq.s32.totalorder %s14, 3
    %p46 = por %p44, %p45
    %p47 = scmp.ne.s32.totalorder %s36, %s37
    %p48 = scmp.eq.s32.totalorder %s14, 0
    %p49 = por %p47, %p48
    %p50 = scmp.ne.s32.totalorder %s36, %s37
    %p51 = scmp.eq.s32.totalorder %s15, 3
    %p52 = por %p50, %p51
    %p54 = scmp.ne.s32.totalorder %s37, %s53
    %p55 = scmp.eq.s32.totalorder %s15, 0
    %p56 = por %p54, %p55
    %s57 = ssub.s32 %s16, %s28
    %p58 = scmp.eq.s32.totalorder %s57, 0
    %s60 = sadd.s32 %s59, 1
    %s61 = scalar_select %p58, %s59, %s60
    %p64 = pneg %p58
    %p65 = scmp.eq.s32.totalorder %s9, 3
    %p66 = por %p64, %p65
    %p67 = scmp.ne.s32.totalorder %s59, %s62
    %p68 = scmp.eq.s32.totalorder %s9, 0
    %p69 = por %p67, %p68
    %p70 = scmp.ne.s32.totalorder %s59, %s62
    %p71 = scmp.eq.s32.totalorder %s14, 3
    %p72 = por %p70, %p71
    %p73 = scmp.ne.s32.totalorder %s62, %s63
    %p74 = scmp.eq.s32.totalorder %s14, 0
    %p75 = por %p73, %p74
    %p76 = scmp.ne.s32.totalorder %s62, %s63
    %p77 = scmp.eq.s32.totalorder %s15, 3
    %p78 = por %p76, %p77
    %p80 = scmp.ne.s32.totalorder %s63, %s79
    %p81 = scmp.eq.s32.totalorder %s15, 0
    %p82 = por %p80, %p81
    %s83 = ssub.s32 %s16, %s28
    %p84 = scmp.eq.s32.totalorder %s83, 0
    %s86 = sadd.s32 %s85, 1
    %s87 = scalar_select %p84, %s85, %s86
    %p90 = pneg %p84
    %p91 = scmp.eq.s32.totalorder %s9, 3
    %p92 = por %p90, %p91
    %p93 = scmp.ne.s32.totalorder %s85, %s88
    %p94 = scmp.eq.s32.totalorder %s9, 0
    %p95 = por %p93, %p94
    %p96 = scmp.ne.s32.totalorder %s85, %s88
    %p97 = scmp.eq.s32.totalorder %s14, 3
    %p98 = por %p96, %p97
    %p99 = scmp.ne.s32.totalorder %s88, %s89
    %p100 = scmp.eq.s32.totalorder %s14, 0
    %p101 = por %p99, %p100
    %p102 = scmp.ne.s32.totalorder %s88, %s89
    %p103 = scmp.eq.s32.totalorder %s15, 3
    %p104 = por %p102, %p103
    %p106 = scmp.ne.s32.totalorder %s89, %s105
    %p107 = scmp.eq.s32.totalorder %s15, 0
    %p108 = por %p106, %p107
    %s109 = ssub.s32 %s16, %s28
    %s110 = ssub.s32 %s17, %s24
    %s111 = sor.u32 %s109, %s110
    %p112 = scmp.eq.s32.totalorder %s111, 0
    %s114 = sadd.s32 %s113, 1
    %s115 = scalar_select %p112, %s113, %s114
    %p118 = pneg %p112
    %p119 = scmp.eq.s32.totalorder %s9, 3
    %p120 = por %p118, %p119
    %p121 = scmp.ne.s32.totalorder %s113, %s116
    %p122 = scmp.eq.s32.totalorder %s9, 0
    %p123 = por %p121, %p122
    %p124 = scmp.ne.s32.totalorder %s113, %s116
    %p125 = scmp.eq.s32.totalorder %s14, 3
    %p126 = por %p124, %p125
    %p127 = scmp.ne.s32.totalorder %s116, %s117
    %p128 = scmp.eq.s32.totalorder %s14, 0
    %p129 = por %p127, %p128
    %p130 = scmp.ne.s32.totalorder %s116, %s117
    %p131 = scmp.eq.s32.totalorder %s15, 3
    %p132 = por %p130, %p131
    %p134 = scmp.ne.s32.totalorder %s117, %s133
    %p135 = scmp.eq.s32.totalorder %s15, 0
    %p136 = por %p134, %p135
    %p137 = scmp.le.s32.totalorder 1, %s9
    %p138 = scmp.lt.s32.totalorder %s9, 5
    %p139 = pnand %p137, %p138
    %p140 = pneg %p139
    // Predicated region
    $region9: #{up_relu_conv_bn.5} parent=5 // pred_check
      _
    $region10: #{up_relu_conv_bn.5} parent=5 // pred_check_branch
      %142 = sbr.rel (%p139) target = $region12
    $region11: #{up_relu_conv_bn.5} parent=5 // pred_region
      %s143 = ssub.s32 %s9, 1
    $region12: #{up_relu_conv_bn.5} parent=5 // pred_fallthru
      _
    %p144 = scmp.lt.s32.totalorder %s9, 4
    // Predicated region
    $region13: #{up_relu_conv_bn.5} parent=5 // pred_check
      %p145 = pneg %p144
    $region14: #{up_relu_conv_bn.5} parent=5 // pred_check_branch
      %147 = sbr.rel (%p145) target = $region16
    $region15: #{up_relu_conv_bn.5} parent=5 // pred_region
      // Predicated region
      $region17: #{up_relu_conv_bn.5} parent=15 // pred_check
        %p148 = pneg %p43
      $region18: #{up_relu_conv_bn.5} parent=15 // pred_check_branch
        %150 = sbr.rel (%p148) target = $region20
      $region19: #{up_relu_conv_bn.5} parent=15 // pred_region
        %s151 = smul.u32 16, %s17
        %p152 = scmp.lt.s32.totalorder %s16, 1
        %s153 = scalar_select %p152, %s16, 1
        %p154 = scmp.lt.s32.totalorder %s151, 31
        %s155 = scalar_select %p154, %s151, 31
        %s156 = smul.addr %s153, 32
        %s157 = sadd.s32 %s155, %s156
        %s158 = smul.addr %s157, 4
        %s159 = scalar_lea.vmem %s0, %s158
        %s160 = smul.u32 16, %s17
      $region20: #{up_relu_conv_bn.5} parent=15 // pred_fallthru
        _
      // Predicated region
      $region21: #{up_relu_conv_bn.5} parent=15 // pred_check
        %p161 = pneg %p69
      $region22: #{up_relu_conv_bn.5} parent=15 // pred_check_branch
        %163 = sbr.rel (%p161) target = $region24
      $region23: #{up_relu_conv_bn.5} parent=15 // pred_region
        %p164 = scmp.lt.s32.totalorder %s16, 1
        %s165 = scalar_select %p164, %s16, 1
        %s166 = smul.addr %s165, 8
        %s167 = scalar_lea.vmem %s1, %s166
      $region24: #{up_relu_conv_bn.5} parent=15 // pred_fallthru
        _
      // Predicated region
      $region25: #{up_relu_conv_bn.5} parent=15 // pred_check
        %p168 = pneg %p95
      $region26: #{up_relu_conv_bn.5} parent=15 // pred_check_branch
        %170 = sbr.rel (%p168) target = $region28
      $region27: #{up_relu_conv_bn.5} parent=15 // pred_region
        %p171 = scmp.lt.s32.totalorder %s16, 1
        %s172 = scalar_select %p171, %s16, 1
        %s173 = smul.addr %s172, 8
        %s174 = scalar_lea.vmem %s2, %s173
      $region28: #{up_relu_conv_bn.5} parent=15 // pred_fallthru
        _
    $region16: #{up_relu_conv_bn.5} parent=5 // pred_fallthru
      _
    %p175 = scmp.le.s32.totalorder 1, %s9
    %p176 = scmp.lt.s32.totalorder %s9, 5
    %p177 = pnand %p175, %p176
    %p178 = pneg %p177
    // Predicated region
    $region29: #{up_relu_conv_bn.5} parent=5 // pred_check
      _
    $region30: #{up_relu_conv_bn.5} parent=5 // pred_check_branch
      %180 = sbr.rel (%p177) target = $region32
    $region31: #{up_relu_conv_bn.5} parent=5 // pred_region
      %s181 = ssub.s32 %s9, 1
      %s182 = smul.u32 16, %s19
      %p183 = scmp.lt.s32.totalorder %s18, 1
      %s184 = scalar_select %p183, %s18, 1
      %p185 = scmp.lt.s32.totalorder %s182, 31
      %s186 = scalar_select %p185, %s182, 31
      %s187 = smul.addr %s184, 32
      %s188 = sadd.s32 %s186, %s187
      %s189 = smul.addr %s188, 4
      %s190 = scalar_lea.vmem %s0, %s189
      %p191 = pneg %p49
      %p192 = pneg %p46
      %p193 = scmp.lt.s32.totalorder %s18, 1
      %s194 = scalar_select %p193, %s18, 1
      %s195 = smul.addr %s194, 8
      %s196 = scalar_lea.vmem %s1, %s195
      %p197 = pneg %p75
      %p198 = pneg %p72
      %p199 = scmp.lt.s32.totalorder %s18, 1
      %s200 = scalar_select %p199, %s18, 1
      %s201 = smul.addr %s200, 8
      %s202 = scalar_lea.vmem %s2, %s201
      %p203 = pneg %p101
      %p204 = pneg %p98
      %p205 = pneg %p129
      %p206 = pneg %p126
      %s207 = smul.u32 16, %s19
      %p208 = scmp.lt.s32.totalorder %s18, 1
      %s209 = scalar_select %p208, %s18, 1
      %p210 = scmp.lt.s32.totalorder %s207, 31
      %s211 = scalar_select %p210, %s207, 31
      %s212 = smul.addr %s209, 32
      %s213 = sadd.s32 %s211, %s212
      %s214 = smul.addr %s213, 4
      %s215 = scalar_lea.vmem %s3, %s214
      %s216 = smul.u32 16, %s19
      %p217 = scmp.lt.s32.totalorder %s18, 1
      %s218 = scalar_select %p217, %s18, 1
      %p219 = scmp.lt.s32.totalorder %s216, 31
      %s220 = scalar_select %p219, %s216, 31
      %s221 = smul.addr %s218, 32
      %s222 = sadd.s32 %s220, %s221
      %s223 = smul.addr %s222, 4
      %s224 = scalar_lea.vmem %s0, %s223
      %s225 = smul.u32 16, %s19
      %p226 = scmp.lt.s32.totalorder %s18, 1
      %s227 = scalar_select %p226, %s18, 1
      %s228 = smul.addr %s227, 8
      %s229 = scalar_lea.vmem %s1, %s228
      %p230 = scmp.lt.s32.totalorder %s18, 1
      %s231 = scalar_select %p230, %s18, 1
      %s232 = smul.addr %s231, 8
      %s233 = scalar_lea.vmem %s2, %s232
      %s234 = smul.u32 16, %s19
      %p235 = scmp.lt.s32.totalorder %s18, 1
      %s236 = scalar_select %p235, %s18, 1
      %p237 = scmp.lt.s32.totalorder %s234, 31
      %s238 = scalar_select %p237, %s234, 31
      %s239 = smul.addr %s236, 32
      %s240 = sadd.s32 %s238, %s239
      %s241 = smul.addr %s240, 4
      %s242 = scalar_lea.vmem %s3, %s241
      %s243 = smul.u32 16, %s19
      %v244 = vld [vmem:[%s224] sm:$0xff]
      %v245 = vld [vmem:[%s224 + $0x8] sm:$0xff]
      %v246 = vld [vmem:[%s224 + $0x10] sm:$0xff]
      %v247 = vld [vmem:[%s224 + $0x18] sm:$0xff]
      %v248 = vld [vmem:[%s224 + $0x20] sm:$0xff]
      %v249 = vld [vmem:[%s224 + $0x28] sm:$0xff]
      %v250 = vld [vmem:[%s224 + $0x30] sm:$0xff]
      %v251 = vld [vmem:[%s224 + $0x38] sm:$0xff]
      %v252 = vunpack.c.l.bf16 %v244
      %v253 = vunpack.c.h.bf16 %v244
      %v254 = vunpack.c.l.bf16 %v245
      %v255 = vunpack.c.h.bf16 %v245
      %v256 = vunpack.c.l.bf16 %v246
      %v257 = vunpack.c.h.bf16 %v246
      %v258 = vunpack.c.l.bf16 %v247
      %v259 = vunpack.c.h.bf16 %v247
      %v260 = vunpack.c.l.bf16 %v248
      %v261 = vunpack.c.h.bf16 %v248
      %v262 = vunpack.c.l.bf16 %v249
      %v263 = vunpack.c.h.bf16 %v249
      %v264 = vunpack.c.l.bf16 %v250
      %v265 = vunpack.c.h.bf16 %v250
      %v266 = vunpack.c.l.bf16 %v251
      %v267 = vunpack.c.h.bf16 %v251
      %v268 = vld [vmem:[%s229] sm:$0xff]
      %270 = vset.pattern.permute.xlu0 0
      %271 = vperm.xlu0 %270, %v268
      %v272 = vpop.permute.xlu0 %271
      %v274 = vmul.f32 %v252, %v272
      %v275 = vmul.f32 %v253, %v272
      %v276 = vmul.f32 %v254, %v272
      %v277 = vmul.f32 %v255, %v272
      %v278 = vmul.f32 %v256, %v272
      %v279 = vmul.f32 %v257, %v272
      %v280 = vmul.f32 %v258, %v272
      %v281 = vmul.f32 %v259, %v272
      %v282 = vmul.f32 %v260, %v272
      %v283 = vmul.f32 %v261, %v272
      %v284 = vmul.f32 %v262, %v272
      %v285 = vmul.f32 %v263, %v272
      %v286 = vmul.f32 %v264, %v272
      %v287 = vmul.f32 %v265, %v272
      %v288 = vmul.f32 %v266, %v272
      %v289 = vmul.f32 %v267, %v272
      %v290 = vld [vmem:[%s233] sm:$0xff]
      %292 = vset.pattern.permute.xlu0 0
      %293 = vperm.xlu0 %292, %v290
      %v294 = vpop.permute.xlu0 %293
      %v296 = vadd.f32 %v274, %v294
      %v297 = vadd.f32 %v275, %v294
      %v298 = vadd.f32 %v276, %v294
      %v299 = vadd.f32 %v277, %v294
      %v300 = vadd.f32 %v278, %v294
      %v301 = vadd.f32 %v279, %v294
      %v302 = vadd.f32 %v280, %v294
      %v303 = vadd.f32 %v281, %v294
      %v304 = vadd.f32 %v282, %v294
      %v305 = vadd.f32 %v283, %v294
      %v306 = vadd.f32 %v284, %v294
      %v307 = vadd.f32 %v285, %v294
      %v308 = vadd.f32 %v286, %v294
      %v309 = vadd.f32 %v287, %v294
      %v310 = vadd.f32 %v288, %v294
      %v311 = vadd.f32 %v289, %v294
      %v312 = vpack.c.bf16 %v296, %v296
      %v313 = vpack.c.bf16 %v297, %v297
      %v314 = vpack.c.bf16 %v298, %v298
      %v315 = vpack.c.bf16 %v299, %v299
      %v316 = vpack.c.bf16 %v300, %v300
      %v317 = vpack.c.bf16 %v301, %v301
      %v318 = vpack.c.bf16 %v302, %v302
      %v319 = vpack.c.bf16 %v303, %v303
      %v320 = vpack.c.bf16 %v304, %v304
      %v321 = vpack.c.bf16 %v305, %v305
      %v322 = vpack.c.bf16 %v306, %v306
      %v323 = vpack.c.bf16 %v307, %v307
      %v324 = vpack.c.bf16 %v308, %v308
      %v325 = vpack.c.bf16 %v309, %v309
      %v326 = vpack.c.bf16 %v310, %v310
      %v327 = vpack.c.bf16 %v311, %v311
      %v344 = vunpack.c.l.b16 %v312
      %v345 = vunpack.c.l.b16 %v313
      %v346 = vunpack.c.l.b16 %v314
      %v347 = vunpack.c.l.b16 %v315
      %v348 = vunpack.c.l.b16 %v316
      %v349 = vunpack.c.l.b16 %v317
      %v350 = vunpack.c.l.b16 %v318
      %v351 = vunpack.c.l.b16 %v319
      %v352 = vunpack.c.l.b16 %v320
      %v353 = vunpack.c.l.b16 %v321
      %v354 = vunpack.c.l.b16 %v322
      %v355 = vunpack.c.l.b16 %v323
      %v356 = vunpack.c.l.b16 %v324
      %v357 = vunpack.c.l.b16 %v325
      %v358 = vunpack.c.l.b16 %v326
      %v359 = vunpack.c.l.b16 %v327
      %v360 = vpack.c.b16 %v345, %v344
      %v361 = vpack.c.b16 %v347, %v346
      %v362 = vpack.c.b16 %v349, %v348
      %v363 = vpack.c.b16 %v351, %v350
      %v364 = vpack.c.b16 %v353, %v352
      %v365 = vpack.c.b16 %v355, %v354
      %v366 = vpack.c.b16 %v357, %v356
      %v367 = vpack.c.b16 %v359, %v358
      %376 = vst [vmem:[%s242] sm:$0xff] %v360
      %377 = vst [vmem:[%s242 + $0x8] sm:$0xff] %v361
      %378 = vst [vmem:[%s242 + $0x10] sm:$0xff] %v362
      %379 = vst [vmem:[%s242 + $0x18] sm:$0xff] %v363
      %380 = vst [vmem:[%s242 + $0x20] sm:$0xff] %v364
      %381 = vst [vmem:[%s242 + $0x28] sm:$0xff] %v365
      %382 = vst [vmem:[%s242 + $0x30] sm:$0xff] %v366
      %383 = vst [vmem:[%s242 + $0x38] sm:$0xff] %v367
      %s384 = smul.u32 16, %s19
      %p385 = scmp.lt.s32.totalorder %s18, 1
      %s386 = scalar_select %p385, %s18, 1
      %p387 = scmp.lt.s32.totalorder %s384, 31
      %s388 = scalar_select %p387, %s384, 31
      %s389 = smul.addr %s386, 32
      %s390 = sadd.s32 %s388, %s389
      %s391 = smul.addr %s390, 4
      %s392 = scalar_lea.vmem %s3, %s391
      // Predicated region
      $region33: #{up_relu_conv_bn.5} parent=31 // pred_check
        %p393 = pneg %p126
      $region34: #{up_relu_conv_bn.5} parent=31 // pred_check_branch
        %395 = sbr.rel (%p393) target = $region36
      $region35: #{up_relu_conv_bn.5} parent=31 // pred_region
        %s396 = smul.u32 16, %s19
      $region36: #{up_relu_conv_bn.5} parent=31 // pred_fallthru
        _
    $region32: #{up_relu_conv_bn.5} parent=5 // pred_fallthru
      _
    %p397 = scmp.le.s32.totalorder 2, %s9
    // Predicated region
    $region37: #{up_relu_conv_bn.5} parent=5 // pred_check
      %p398 = pneg %p397
    $region38: #{up_relu_conv_bn.5} parent=5 // pred_check_branch
      %400 = sbr.rel (%p398) target = $region40
    $region39: #{up_relu_conv_bn.5} parent=5 // pred_region
      %s401 = ssub.s32 %s9, 2
      // Predicated region
      $region41: #{up_relu_conv_bn.5} parent=39 // pred_check
        %p402 = pneg %p132
      $region42: #{up_relu_conv_bn.5} parent=39 // pred_check_branch
        %404 = sbr.rel (%p402) target = $region44
      $region43: #{up_relu_conv_bn.5} parent=39 // pred_region
        %s405 = smul.u32 16, %s21
        %p406 = scmp.lt.s32.totalorder %s20, 1
        %s407 = scalar_select %p406, %s20, 1
        %p408 = scmp.lt.s32.totalorder %s405, 31
        %s409 = scalar_select %p408, %s405, 31
        %s410 = smul.addr %s407, 32
        %s411 = sadd.s32 %s409, %s410
        %s412 = smul.addr %s411, 4
        %s413 = scalar_lea.vmem %s3, %s412
      $region44: #{up_relu_conv_bn.5} parent=39 // pred_fallthru
        _
    $region40: #{up_relu_conv_bn.5} parent=5 // pred_fallthru
      _
  $region6: #{up_relu_conv_bn.5} parent=0 // loop_footer
    %s13 = sadd.s32 1, %s9
  $region7: #{up_relu_conv_bn.5} parent=0 // loop_footer_branch
    %8 = sbr.rel target = $region3
  $region8: #{up_relu_conv_bn.5} parent=0 // loop_exit
    _

// kernel: up_relu_conv_bn.4
$region0: #{up_relu_conv_bn.4}
  #allocation0 [shape = 'u32[]', space=smem, size = 0x4, offset = 0x4, fixed_abs, tag = 'smem constant byte address 0x4 - core index']
  #allocation1 [shape = 'u32[144,128]{1,0:T(1,128)}', space=vmem, size = 0x12000, scoped, tag = 'internal scratch']
  %s0 = inlined_call_operand.vmem [shape: bf16[2,8,4096], index: 0, kind: input, shape index: {}]
  %s1 = inlined_call_operand.vmem [shape: bf16[8,8], index: 1, kind: input, shape index: {}]
  %s2 = inlined_call_operand.vmem [shape: bf16[2,8,4096], index: 2, kind: output, shape index: {0}]
  %s3 = inlined_call_operand.vmem [shape: f32[2,2,8,1], index: 3, kind: output, shape index: {1}]
  %s4 = inlined_call_operand.vmem [shape: f32[2,2,8,1], index: 4, kind: output, shape index: {2}]
  %5 = xla_tuple %s2, %s3, %s4
  %s6 = sld [smem:[#allocation0]]
  $region57: #{up_relu_conv_bn.4} parent=0
    _
  %s8 = ssub.s32 1, %s6
  %s9 = scalar_select 0, %s8, %s6
  loop: start=0, step=1, limit=6
  $region2: #{up_relu_conv_bn.4} parent=0 // loop_pre_header
    _
  $region3: #{up_relu_conv_bn.4} parent=0 // loop_header
    %s11 = sphi 0, %s15
    %p12 = scmp.ge.s32.totalorder %s11, 6
    %s18 = sphi 0, %s30
    %s19 = sphi 0, %s26
    %s20 = sphi 0, %s18
    %s21 = sphi 0, %s19
    %s22 = sphi 0, %s20
    %s23 = sphi 0, %s21
    %s35 = sphi 0, %s37
    %s38 = sphi 0, %s35
    %s39 = sphi 0, %s38
    %s55 = sphi 0, %s39
    %s59 = sphi 0, %s59
    %s61 = sphi 0, %s59
    %s62 = sphi 0, %s61
    %s76 = sphi 0, %s62
    %s84 = sphi 0, %s86
    %s87 = sphi 0, %s84
    %s88 = sphi 0, %s87
    %s104 = sphi 0, %s88
    %s112 = sphi 0, %s114
    %s115 = sphi 0, %s112
    %s116 = sphi 0, %s115
    %s132 = sphi 0, %s116
    %s140 = sphi 0, %s142
    %s143 = sphi 0, %s140
    %s144 = sphi 0, %s143
    %s160 = sphi 0, %s144
  $region4: #{up_relu_conv_bn.4} parent=0 // loop_header_branch
    %14 = sbr.rel (%p12) target = $region8
  $region5: #{up_relu_conv_bn.4} parent=0 // loop_body
    %s16 = ssub.s32 %s11, 1
    %s17 = ssub.s32 %s11, 2
    %s24 = sadd.s32 1, %s19
    %p25 = scmp.ge.s32.totalorder %s24, 2
    %s26 = scalar_select %p25, 0, %s24
    %s27 = sadd.s32 1, %s18
    %s28 = scalar_select %p25, %s27, %s18
    %p29 = scmp.ge.s32.totalorder %s28, 2
    %s30 = scalar_select %p29, 0, %s28
    %s31 = ssub.s32 %s18, %s30
    %s32 = ssub.s32 %s19, %s26
    %s33 = sor.u32 %s31, %s32
    %p34 = scmp.eq.s32.totalorder %s33, 0
    %s36 = sadd.s32 %s35, 1
    %s37 = scalar_select %p34, %s35, %s36
    %p40 = pneg %p34
    %p41 = scmp.eq.s32.totalorder %s11, 3
    %p42 = por %p40, %p41
    %p43 = scmp.ne.s32.totalorder %s35, %s38
    %p44 = scmp.eq.s32.totalorder %s11, 0
    %p45 = por %p43, %p44
    %p46 = scmp.ne.s32.totalorder %s35, %s38
    %p47 = scmp.eq.s32.totalorder %s16, 3
    %p48 = por %p46, %p47
    %p49 = scmp.ne.s32.totalorder %s38, %s39
    %p50 = scmp.eq.s32.totalorder %s16, 0
    %p51 = por %p49, %p50
    %p52 = scmp.ne.s32.totalorder %s38, %s39
    %p53 = scmp.eq.s32.totalorder %s17, 3
    %p54 = por %p52, %p53
    %p56 = scmp.ne.s32.totalorder %s39, %s55
    %p57 = scmp.eq.s32.totalorder %s17, 0
    %p58 = por %p56, %p57
    %s60 = sadd.s32 %s59, 1
    %p63 = scmp.eq.s32.totalorder %s11, 3
    %p64 = scmp.ne.s32.totalorder %s59, %s61
    %p65 = scmp.eq.s32.totalorder %s11, 0
    %p66 = por %p64, %p65
    %p67 = scmp.ne.s32.totalorder %s59, %s61
    %p68 = scmp.eq.s32.totalorder %s16, 3
    %p69 = por %p67, %p68
    %p70 = scmp.ne.s32.totalorder %s61, %s62
    %p71 = scmp.eq.s32.totalorder %s16, 0
    %p72 = por %p70, %p71
    %p73 = scmp.ne.s32.totalorder %s61, %s62
    %p74 = scmp.eq.s32.totalorder %s17, 3
    %p75 = por %p73, %p74
    %p77 = scmp.ne.s32.totalorder %s62, %s76
    %p78 = scmp.eq.s32.totalorder %s17, 0
    %p79 = por %p77, %p78
    %s80 = ssub.s32 %s18, %s30
    %s81 = ssub.s32 %s19, %s26
    %s82 = sor.u32 %s80, %s81
    %p83 = scmp.eq.s32.totalorder %s82, 0
    %s85 = sadd.s32 %s84, 1
    %s86 = scalar_select %p83, %s84, %s85
    %p89 = pneg %p83
    %p90 = scmp.eq.s32.totalorder %s11, 3
    %p91 = por %p89, %p90
    %p92 = scmp.ne.s32.totalorder %s84, %s87
    %p93 = scmp.eq.s32.totalorder %s11, 0
    %p94 = por %p92, %p93
    %p95 = scmp.ne.s32.totalorder %s84, %s87
    %p96 = scmp.eq.s32.totalorder %s16, 3
    %p97 = por %p95, %p96
    %p98 = scmp.ne.s32.totalorder %s87, %s88
    %p99 = scmp.eq.s32.totalorder %s16, 0
    %p100 = por %p98, %p99
    %p101 = scmp.ne.s32.totalorder %s87, %s88
    %p102 = scmp.eq.s32.totalorder %s17, 3
    %p103 = por %p101, %p102
    %p105 = scmp.ne.s32.totalorder %s88, %s104
    %p106 = scmp.eq.s32.totalorder %s17, 0
    %p107 = por %p105, %p106
    %s108 = ssub.s32 %s18, %s30
    %s109 = ssub.s32 %s19, %s26
    %s110 = sor.u32 %s108, %s109
    %p111 = scmp.eq.s32.totalorder %s110, 0
    %s113 = sadd.s32 %s112, 1
    %s114 = scalar_select %p111, %s112, %s113
    %p117 = pneg %p111
    %p118 = scmp.eq.s32.totalorder %s11, 3
    %p119 = por %p117, %p118
    %p120 = scmp.ne.s32.totalorder %s112, %s115
    %p121 = scmp.eq.s32.totalorder %s11, 0
    %p122 = por %p120, %p121
    %p123 = scmp.ne.s32.totalorder %s112, %s115
    %p124 = scmp.eq.s32.totalorder %s16, 3
    %p125 = por %p123, %p124
    %p126 = scmp.ne.s32.totalorder %s115, %s116
    %p127 = scmp.eq.s32.totalorder %s16, 0
    %p128 = por %p126, %p127
    %p129 = scmp.ne.s32.totalorder %s115, %s116
    %p130 = scmp.eq.s32.totalorder %s17, 3
    %p131 = por %p129, %p130
    %p133 = scmp.ne.s32.totalorder %s116, %s132
    %p134 = scmp.eq.s32.totalorder %s17, 0
    %p135 = por %p133, %p134
    %s136 = ssub.s32 %s18, %s30
    %s137 = ssub.s32 %s19, %s26
    %s138 = sor.u32 %s136, %s137
    %p139 = scmp.eq.s32.totalorder %s138, 0
    %s141 = sadd.s32 %s140, 1
    %s142 = scalar_select %p139, %s140, %s141
    %p145 = pneg %p139
    %p146 = scmp.eq.s32.totalorder %s11, 3
    %p147 = por %p145, %p146
    %p148 = scmp.ne.s32.totalorder %s140, %s143
    %p149 = scmp.eq.s32.totalorder %s11, 0
    %p150 = por %p148, %p149
    %p151 = scmp.ne.s32.totalorder %s140, %s143
    %p152 = scmp.eq.s32.totalorder %s16, 3
    %p153 = por %p151, %p152
    %p154 = scmp.ne.s32.totalorder %s143, %s144
    %p155 = scmp.eq.s32.totalorder %s16, 0
    %p156 = por %p154, %p155
    %p157 = scmp.ne.s32.totalorder %s143, %s144
    %p158 = scmp.eq.s32.totalorder %s17, 3
    %p159 = por %p157, %p158
    %p161 = scmp.ne.s32.totalorder %s144, %s160
    %p162 = scmp.eq.s32.totalorder %s17, 0
    %p163 = por %p161, %p162
    %p164 = scmp.le.s32.totalorder 1, %s11
    %p165 = scmp.lt.s32.totalorder %s11, 5
    %p166 = pnand %p164, %p165
    %p167 = pneg %p166
    // Predicated region
    $region9: #{up_relu_conv_bn.4} parent=5 // pred_check
      _
    $region10: #{up_relu_conv_bn.4} parent=5 // pred_check_branch
      %169 = sbr.rel (%p166) target = $region12
    $region11: #{up_relu_conv_bn.4} parent=5 // pred_region
      %s170 = ssub.s32 %s11, 1
      // Predicated region
      $region13: #{up_relu_conv_bn.4} parent=11 // pred_check
        %p171 = pneg %p72
      $region14: #{up_relu_conv_bn.4} parent=11 // pred_check_branch
        %173 = sbr.rel (%p171) target = $region16
      $region15: #{up_relu_conv_bn.4} parent=11 // pred_region
        _
      $region16: #{up_relu_conv_bn.4} parent=11 // pred_fallthru
        _
    $region12: #{up_relu_conv_bn.4} parent=5 // pred_fallthru
      _
    %p174 = scmp.lt.s32.totalorder %s11, 4
    // Predicated region
    $region17: #{up_relu_conv_bn.4} parent=5 // pred_check
      %p175 = pneg %p174
    $region18: #{up_relu_conv_bn.4} parent=5 // pred_check_branch
      %177 = sbr.rel (%p175) target = $region20
    $region19: #{up_relu_conv_bn.4} parent=5 // pred_region
      // Predicated region
      $region21: #{up_relu_conv_bn.4} parent=19 // pred_check
        %p178 = pneg %p45
      $region22: #{up_relu_conv_bn.4} parent=19 // pred_check_branch
        %180 = sbr.rel (%p178) target = $region24
      $region23: #{up_relu_conv_bn.4} parent=19 // pred_region
        %s181 = smul.u32 16, %s19
        %p182 = scmp.lt.s32.totalorder %s18, 1
        %s183 = scalar_select %p182, %s18, 1
        %p184 = scmp.lt.s32.totalorder %s181, 31
        %s185 = scalar_select %p184, %s181, 31
        %s186 = smul.addr %s183, 32
        %s187 = sadd.s32 %s185, %s186
        %s188 = smul.addr %s187, 4
        %s189 = scalar_lea.vmem %s0, %s188
        %s190 = smul.u32 16, %s19
      $region24: #{up_relu_conv_bn.4} parent=19 // pred_fallthru
        _
    $region20: #{up_relu_conv_bn.4} parent=5 // pred_fallthru
      _
    %p191 = scmp.le.s32.totalorder 1, %s11
    %p192 = scmp.lt.s32.totalorder %s11, 5
    %p193 = pnand %p191, %p192
    %p194 = pneg %p193
    // Predicated region
    $region25: #{up_relu_conv_bn.4} parent=5 // pred_check
      _
    $region26: #{up_relu_conv_bn.4} parent=5 // pred_check_branch
      %196 = sbr.rel (%p193) target = $region28
    $region27: #{up_relu_conv_bn.4} parent=5 // pred_region
      %s197 = ssub.s32 %s11, 1
      %s198 = smul.u32 16, %s21
      %p199 = scmp.lt.s32.totalorder %s20, 1
      %s200 = scalar_select %p199, %s20, 1
      %p201 = scmp.lt.s32.totalorder %s198, 31
      %s202 = scalar_select %p201, %s198, 31
      %s203 = smul.addr %s200, 32
      %s204 = sadd.s32 %s202, %s203
      %s205 = smul.addr %s204, 4
      %s206 = scalar_lea.vmem %s0, %s205
      %p207 = pneg %p51
      %p208 = pneg %p48
      %p209 = pneg %p72
      %p210 = pneg %p69
      %p211 = pneg %p100
      %p212 = pneg %p97
      %s213 = smul.u32 16, %s21
      %p214 = scmp.lt.s32.totalorder %s20, 1
      %s215 = scalar_select %p214, %s20, 1
      %p216 = scmp.lt.s32.totalorder %s213, 31
      %s217 = scalar_select %p216, %s213, 31
      %s218 = smul.addr %s215, 32
      %s219 = sadd.s32 %s217, %s218
      %s220 = smul.addr %s219, 4
      %s221 = scalar_lea.vmem %s2, %s220
      %p222 = pneg %p128
      %p223 = pneg %p125
      %p224 = scmp.lt.s32.totalorder %s20, 1
      %s225 = scalar_select %p224, %s20, 1
      %p226 = scmp.lt.s32.totalorder %s21, 1
      %s227 = scalar_select %p226, %s21, 1
      %s228 = smul.addr %s225, 2
      %s229 = sadd.s32 %s227, %s228
      %s230 = smul.addr %s229, 8
      %s231 = scalar_lea.vmem %s3, %s230
      %p232 = pneg %p156
      %p233 = pneg %p153
      %p234 = scmp.lt.s32.totalorder %s20, 1
      %s235 = scalar_select %p234, %s20, 1
      %p236 = scmp.lt.s32.totalorder %s21, 1
      %s237 = scalar_select %p236, %s21, 1
      %s238 = smul.addr %s235, 2
      %s239 = sadd.s32 %s237, %s238
      %s240 = smul.addr %s239, 8
      %s241 = scalar_lea.vmem %s4, %s240
      %s242 = smul.u32 16, %s21
      %p243 = scmp.lt.s32.totalorder %s20, 1
      %s244 = scalar_select %p243, %s20, 1
      %p245 = scmp.lt.s32.totalorder %s242, 31
      %s246 = scalar_select %p245, %s242, 31
      %s247 = smul.addr %s244, 32
      %s248 = sadd.s32 %s246, %s247
      %s249 = smul.addr %s248, 4
      %s250 = scalar_lea.vmem %s0, %s249
      %s251 = smul.u32 16, %s21
      %s252 = smul.u32 16, %s21
      %p253 = scmp.lt.s32.totalorder %s20, 1
      %s254 = scalar_select %p253, %s20, 1
      %p255 = scmp.lt.s32.totalorder %s252, 31
      %s256 = scalar_select %p255, %s252, 31
      %s257 = smul.addr %s254, 32
      %s258 = sadd.s32 %s256, %s257
      %s259 = smul.addr %s258, 4
      %s260 = scalar_lea.vmem %s2, %s259
      %s261 = smul.u32 16, %s21
      %p262 = scmp.lt.s32.totalorder %s20, 1
      %s263 = scalar_select %p262, %s20, 1
      %p264 = scmp.lt.s32.totalorder %s21, 1
      %s265 = scalar_select %p264, %s21, 1
      %s266 = smul.addr %s263, 2
      %s267 = sadd.s32 %s265, %s266
      %s268 = smul.addr %s267, 8
      %s269 = scalar_lea.vmem %s3, %s268
      %p270 = scmp.lt.s32.totalorder %s20, 1
      %s271 = scalar_select %p270, %s20, 1
      %p272 = scmp.lt.s32.totalorder %s21, 1
      %s273 = scalar_select %p272, %s21, 1
      %s274 = smul.addr %s271, 2
      %s275 = sadd.s32 %s273, %s274
      %s276 = smul.addr %s275, 8
      %s277 = scalar_lea.vmem %s4, %s276
      %v279 = vld [vmem:[%s1] sm:$0xf]
      %v280 = vld [vmem:[%s250] sm:$0xff]
      %v281 = vld [vmem:[%s250 + $0x8] sm:$0xff]
      %v282 = vld [vmem:[%s250 + $0x10] sm:$0xff]
      %v283 = vld [vmem:[%s250 + $0x18] sm:$0xff]
      %v284 = vld [vmem:[%s250 + $0x20] sm:$0xff]
      %v285 = vld [vmem:[%s250 + $0x28] sm:$0xff]
      %v286 = vld [vmem:[%s250 + $0x30] sm:$0xff]
      %v287 = vld [vmem:[%s250 + $0x38] sm:$0xff]
      %v296 = vunpack.c.l.b16 %v280
      %v297 = vunpack.c.h.b16 %v280
      %v298 = vunpack.c.l.b16 %v281
      %v299 = vunpack.c.h.b16 %v281
      %v300 = vunpack.c.l.b16 %v282
      %v301 = vunpack.c.h.b16 %v282
      %v302 = vunpack.c.l.b16 %v283
      %v303 = vunpack.c.h.b16 %v283
      %v304 = vunpack.c.l.b16 %v284
      %v305 = vunpack.c.h.b16 %v284
      %v306 = vunpack.c.l.b16 %v285
      %v307 = vunpack.c.h.b16 %v285
      %v308 = vunpack.c.l.b16 %v286
      %v309 = vunpack.c.h.b16 %v286
      %v310 = vunpack.c.l.b16 %v287
      %v311 = vunpack.c.h.b16 %v287
      %v312 = vpack.c.b16 %v296, %v296
      %v313 = vpack.c.b16 %v297, %v297
      %v314 = vpack.c.b16 %v298, %v298
      %v315 = vpack.c.b16 %v299, %v299
      %v316 = vpack.c.b16 %v300, %v300
      %v317 = vpack.c.b16 %v301, %v301
      %v318 = vpack.c.b16 %v302, %v302
      %v319 = vpack.c.b16 %v303, %v303
      %v320 = vpack.c.b16 %v304, %v304
      %v321 = vpack.c.b16 %v305, %v305
      %v322 = vpack.c.b16 %v306, %v306
      %v323 = vpack.c.b16 %v307, %v307
      %v324 = vpack.c.b16 %v308, %v308
      %v325 = vpack.c.b16 %v309, %v309
      %v326 = vpack.c.b16 %v310, %v310
      %v327 = vpack.c.b16 %v311, %v311
      %vm328 = vcmask 64512
      %v330 = vsel %vm328, %v279, 0
      %vm332 = vcmask 1043456
      %v334 = vsel %vm332, %v312, 0
      %v337 = vsel %vm332, %v313, 0
      %v340 = vsel %vm332, %v314, 0
      %v343 = vsel %vm332, %v315, 0
      %v346 = vsel %vm332, %v316, 0
      %v349 = vsel %vm332, %v317, 0
      %v352 = vsel %vm332, %v318, 0
      %v355 = vsel %vm332, %v319, 0
      %v358 = vsel %vm332, %v320, 0
      %v361 = vsel %vm332, %v321, 0
      %v364 = vsel %vm332, %v322, 0
      %v367 = vsel %vm332, %v323, 0
      %v370 = vsel %vm332, %v324, 0
      %v373 = vsel %vm332, %v325, 0
      %v376 = vsel %vm332, %v326, 0
      %v379 = vsel %vm332, %v327, 0
      %381 = vmatprep.subr.bf16.mxu0 0
      %382 = vmatpush1.bf16.msra.mxu0 0
      %383 = vmatprep.subr.bf16.mxu0 0
      %384 = vmatpush1.bf16.msra.mxu0 0
      %385 = vmatprep.subr.bf16.mxu0 0
      %386 = vmatpush1.bf16.msra.mxu0 0
      %387 = vmatprep.subr.bf16.mxu0 0
      %388 = vmatpush1.bf16.msra.mxu0 0
      %389 = vmatprep.subr.bf16.mxu0 0
      %390 = vmatpush1.bf16.msra.mxu0 0
      %391 = vmatprep.subr.bf16.mxu0 0
      %392 = vmatpush1.bf16.msra.mxu0 0
      %393 = vmatprep.subr.bf16.mxu0 0
      %394 = vmatpush1.bf16.msra.mxu0 0
      %395 = vmatprep.subr.bf16.mxu0 %v337
      %396 = vmatpush1.bf16.msra.mxu0 %v334
      %397 = vmatprep.subr.bf16.mxu0 0
      %398 = vmatpush2.bf16.msra.mxu0 0
      %399 = vmatprep.subr.bf16.mxu0 0
      %400 = vmatpush2.bf16.msra.mxu0 0
      %401 = vmatprep.subr.bf16.mxu0 0
      %402 = vmatpush2.bf16.msra.mxu0 0
      %403 = vmatprep.subr.bf16.mxu0 0
      %404 = vmatpush2.bf16.msra.mxu0 0
      %405 = vmatprep.subr.bf16.mxu0 0
      %406 = vmatpush2.bf16.msra.mxu0 0
      %407 = vmatprep.subr.bf16.mxu0 0
      %408 = vmatpush2.bf16.msra.mxu0 0
      %409 = vmatprep.subr.bf16.mxu0 0
      %410 = vmatpush2.bf16.msra.mxu0 0
      %411 = vmatprep.subr.bf16.mxu0 0
      %412 = vmatpush2.bf16.msra.mxu0 0
      %413 = vmatprep.mubr.bf16.mxu0 0
      %414 = vmatmul.mubr.bf16.gmra.mxu0 %v330
      %v415 = vpop.f32.mrf.mxu0
      %v416 = vadd.f32 0.0, %v415
      %v417 = vpop.f32.mrf.mxu0
      %v418 = vadd.f32 0.0, %v417
      %v419 = vpop.f32.mrf.mxu0
      %v420 = vpop.f32.mrf.mxu0
      %421 = vdwg.mxu0
      %422 = vmatprep.subr.bf16.mxu0 0
      %423 = vmatpush1.bf16.msra.mxu0 0
      %424 = vmatprep.subr.bf16.mxu0 0
      %425 = vmatpush1.bf16.msra.mxu0 0
      %426 = vmatprep.subr.bf16.mxu0 0
      %427 = vmatpush1.bf16.msra.mxu0 0
      %428 = vmatprep.subr.bf16.mxu0 0
      %429 = vmatpush1.bf16.msra.mxu0 0
      %430 = vmatprep.subr.bf16.mxu0 0
      %431 = vmatpush1.bf16.msra.mxu0 0
      %432 = vmatprep.subr.bf16.mxu0 0
      %433 = vmatpush1.bf16.msra.mxu0 0
      %434 = vmatprep.subr.bf16.mxu0 0
      %435 = vmatpush1.bf16.msra.mxu0 0
      %436 = vmatprep.subr.bf16.mxu0 %v343
      %437 = vmatpush1.bf16.msra.mxu0 %v340
      %438 = vmatprep.subr.bf16.mxu0 0
      %439 = vmatpush2.bf16.msra.mxu0 0
      %440 = vmatprep.subr.bf16.mxu0 0
      %441 = vmatpush2.bf16.msra.mxu0 0
      %442 = vmatprep.subr.bf16.mxu0 0
      %443 = vmatpush2.bf16.msra.mxu0 0
      %444 = vmatprep.subr.bf16.mxu0 0
      %445 = vmatpush2.bf16.msra.mxu0 0
      %446 = vmatprep.subr.bf16.mxu0 0
      %447 = vmatpush2.bf16.msra.mxu0 0
      %448 = vmatprep.subr.bf16.mxu0 0
      %449 = vmatpush2.bf16.msra.mxu0 0
      %450 = vmatprep.subr.bf16.mxu0 0
      %451 = vmatpush2.bf16.msra.mxu0 0
      %452 = vmatprep.subr.bf16.mxu0 0
      %453 = vmatpush2.bf16.msra.mxu0 0
      %454 = vmatprep.mubr.bf16.mxu0 0
      %455 = vmatmul.mubr.bf16.gmra.mxu0 %v330
      %v456 = vpop.f32.mrf.mxu0
      %v457 = vadd.f32 0.0, %v456
      %v458 = vpop.f32.mrf.mxu0
      %v459 = vadd.f32 0.0, %v458
      %v460 = vpop.f32.mrf.mxu0
      %v461 = vpop.f32.mrf.mxu0
      %462 = vdwg.mxu0
      %463 = vmatprep.subr.bf16.mxu0 0
      %464 = vmatpush1.bf16.msra.mxu0 0
      %465 = vmatprep.subr.bf16.mxu0 0
      %466 = vmatpush1.bf16.msra.mxu0 0
      %467 = vmatprep.subr.bf16.mxu0 0
      %468 = vmatpush1.bf16.msra.mxu0 0
      %469 = vmatprep.subr.bf16.mxu0 0
      %470 = vmatpush1.bf16.msra.mxu0 0
      %471 = vmatprep.subr.bf16.mxu0 0
      %472 = vmatpush1.bf16.msra.mxu0 0
      %473 = vmatprep.subr.bf16.mxu0 0
      %474 = vmatpush1.bf16.msra.mxu0 0
      %475 = vmatprep.subr.bf16.mxu0 0
      %476 = vmatpush1.bf16.msra.mxu0 0
      %477 = vmatprep.subr.bf16.mxu0 %v349
      %478 = vmatpush1.bf16.msra.mxu0 %v346
      %479 = vmatprep.subr.bf16.mxu0 0
      %480 = vmatpush2.bf16.msra.mxu0 0
      %481 = vmatprep.subr.bf16.mxu0 0
      %482 = vmatpush2.bf16.msra.mxu0 0
      %483 = vmatprep.subr.bf16.mxu0 0
      %484 = vmatpush2.bf16.msra.mxu0 0
      %485 = vmatprep.subr.bf16.mxu0 0
      %486 = vmatpush2.bf16.msra.mxu0 0
      %487 = vmatprep.subr.bf16.mxu0 0
      %488 = vmatpush2.bf16.msra.mxu0 0
      %489 = vmatprep.subr.bf16.mxu0 0
      %490 = vmatpush2.bf16.msra.mxu0 0
      %491 = vmatprep.subr.bf16.mxu0 0
      %492 = vmatpush2.bf16.msra.mxu0 0
      %493 = vmatprep.subr.bf16.mxu0 0
      %494 = vmatpush2.bf16.msra.mxu0 0
      %495 = vmatprep.mubr.bf16.mxu0 0
      %496 = vmatmul.mubr.bf16.gmra.mxu0 %v330
      %v497 = vpop.f32.mrf.mxu0
      %v498 = vadd.f32 0.0, %v497
      %v499 = vpop.f32.mrf.mxu0
      %v500 = vadd.f32 0.0, %v499
      %v501 = vpop.f32.mrf.mxu0
      %v502 = vpop.f32.mrf.mxu0
      %503 = vdwg.mxu0
      %504 = vmatprep.subr.bf16.mxu0 0
      %505 = vmatpush1.bf16.msra.mxu0 0
      %506 = vmatprep.subr.bf16.mxu0 0
      %507 = vmatpush1.bf16.msra.mxu0 0
      %508 = vmatprep.subr.bf16.mxu0 0
      %509 = vmatpush1.bf16.msra.mxu0 0
      %510 = vmatprep.subr.bf16.mxu0 0
      %511 = vmatpush1.bf16.msra.mxu0 0
      %512 = vmatprep.subr.bf16.mxu0 0
      %513 = vmatpush1.bf16.msra.mxu0 0
      %514 = vmatprep.subr.bf16.mxu0 0
      %515 = vmatpush1.bf16.msra.mxu0 0
      %516 = vmatprep.subr.bf16.mxu0 0
      %517 = vmatpush1.bf16.msra.mxu0 0
      %518 = vmatprep.subr.bf16.mxu0 %v355
      %519 = vmatpush1.bf16.msra.mxu0 %v352
      %520 = vmatprep.subr.bf16.mxu0 0
      %521 = vmatpush2.bf16.msra.mxu0 0
      %522 = vmatprep.subr.bf16.mxu0 0
      %523 = vmatpush2.bf16.msra.mxu0 0
      %524 = vmatprep.subr.bf16.mxu0 0
      %525 = vmatpush2.bf16.msra.mxu0 0
      %526 = vmatprep.subr.bf16.mxu0 0
      %527 = vmatpush2.bf16.msra.mxu0 0
      %528 = vmatprep.subr.bf16.mxu0 0
      %529 = vmatpush2.bf16.msra.mxu0 0
      %530 = vmatprep.subr.bf16.mxu0 0
      %531 = vmatpush2.bf16.msra.mxu0 0
      %532 = vmatprep.subr.bf16.mxu0 0
      %533 = vmatpush2.bf16.msra.mxu0 0
      %534 = vmatprep.subr.bf16.mxu0 0
      %535 = vmatpush2.bf16.msra.mxu0 0
      %536 = vmatprep.mubr.bf16.mxu0 0
      %537 = vmatmul.mubr.bf16.gmra.mxu0 %v330
      %v538 = vpop.f32.mrf.mxu0
      %v539 = vadd.f32 0.0, %v538
      %v540 = vpop.f32.mrf.mxu0
      %v541 = vadd.f32 0.0, %v540
      %v542 = vpop.f32.mrf.mxu0
      %v543 = vpop.f32.mrf.mxu0
      %544 = vdwg.mxu0
      %545 = vmatprep.subr.bf16.mxu0 0
      %546 = vmatpush1.bf16.msra.mxu0 0
      %547 = vmatprep.subr.bf16.mxu0 0
      %548 = vmatpush1.bf16.msra.mxu0 0
      %549 = vmatprep.subr.bf16.mxu0 0
      %550 = vmatpush1.bf16.msra.mxu0 0
      %551 = vmatprep.subr.bf16.mxu0 0
      %552 = vmatpush1.bf16.msra.mxu0 0
      %553 = vmatprep.subr.bf16.mxu0 0
      %554 = vmatpush1.bf16.msra.mxu0 0
      %555 = vmatprep.subr.bf16.mxu0 0
      %556 = vmatpush1.bf16.msra.mxu0 0
      %557 = vmatprep.subr.bf16.mxu0 0
      %558 = vmatpush1.bf16.msra.mxu0 0
      %559 = vmatprep.subr.bf16.mxu0 %v361
      %560 = vmatpush1.bf16.msra.mxu0 %v358
      %561 = vmatprep.subr.bf16.mxu0 0
      %562 = vmatpush2.bf16.msra.mxu0 0
      %563 = vmatprep.subr.bf16.mxu0 0
      %564 = vmatpush2.bf16.msra.mxu0 0
      %565 = vmatprep.subr.bf16.mxu0 0
      %566 = vmatpush2.bf16.msra.mxu0 0
      %567 = vmatprep.subr.bf16.mxu0 0
      %568 = vmatpush2.bf16.msra.mxu0 0
      %569 = vmatprep.subr.bf16.mxu0 0
      %570 = vmatpush2.bf16.msra.mxu0 0
      %571 = vmatprep.subr.bf16.mxu0 0
      %572 = vmatpush2.bf16.msra.mxu0 0
      %573 = vmatprep.subr.bf16.mxu0 0
      %574 = vmatpush2.bf16.msra.mxu0 0
      %575 = vmatprep.subr.bf16.mxu0 0
      %576 = vmatpush2.bf16.msra.mxu0 0
      %577 = vmatprep.mubr.bf16.mxu0 0
      %578 = vmatmul.mubr.bf16.gmra.mxu0 %v330
      %v579 = vpop.f32.mrf.mxu0
      %v580 = vadd.f32 0.0, %v579
      %v581 = vpop.f32.mrf.mxu0
      %v582 = vadd.f32 0.0, %v581
      %v583 = vpop.f32.mrf.mxu0
      %v584 = vpop.f32.mrf.mxu0
      %585 = vdwg.mxu0
      %586 = vmatprep.subr.bf16.mxu0 0
      %587 = vmatpush1.bf16.msra.mxu0 0
      %588 = vmatprep.subr.bf16.mxu0 0
      %589 = vmatpush1.bf16.msra.mxu0 0
      %590 = vmatprep.subr.bf16.mxu0 0
      %591 = vmatpush1.bf16.msra.mxu0 0
      %592 = vmatprep.subr.bf16.mxu0 0
      %593 = vmatpush1.bf16.msra.mxu0 0
      %594 = vmatprep.subr.bf16.mxu0 0
      %595 = vmatpush1.bf16.msra.mxu0 0
      %596 = vmatprep.subr.bf16.mxu0 0
      %597 = vmatpush1.bf16.msra.mxu0 0
      %598 = vmatprep.subr.bf16.mxu0 0
      %599 = vmatpush1.bf16.msra.mxu0 0
      %600 = vmatprep.subr.bf16.mxu0 %v367
      %601 = vmatpush1.bf16.msra.mxu0 %v364
      %602 = vmatprep.subr.bf16.mxu0 0
      %603 = vmatpush2.bf16.msra.mxu0 0
      %604 = vmatprep.subr.bf16.mxu0 0
      %605 = vmatpush2.bf16.msra.mxu0 0
      %606 = vmatprep.subr.bf16.mxu0 0
      %607 = vmatpush2.bf16.msra.mxu0 0
      %608 = vmatprep.subr.bf16.mxu0 0
      %609 = vmatpush2.bf16.msra.mxu0 0
      %610 = vmatprep.subr.bf16.mxu0 0
      %611 = vmatpush2.bf16.msra.mxu0 0
      %612 = vmatprep.subr.bf16.mxu0 0
      %613 = vmatpush2.bf16.msra.mxu0 0
      %614 = vmatprep.subr.bf16.mxu0 0
      %615 = vmatpush2.bf16.msra.mxu0 0
      %616 = vmatprep.subr.bf16.mxu0 0
      %617 = vmatpush2.bf16.msra.mxu0 0
      %618 = vmatprep.mubr.bf16.mxu0 0
      %619 = vmatmul.mubr.bf16.gmra.mxu0 %v330
      %v620 = vpop.f32.mrf.mxu0
      %v621 = vadd.f32 0.0, %v620
      %v622 = vpop.f32.mrf.mxu0
      %v623 = vadd.f32 0.0, %v622
      %v624 = vpop.f32.mrf.mxu0
      %v625 = vpop.f32.mrf.mxu0
      %626 = vdwg.mxu0
      %627 = vmatprep.subr.bf16.mxu0 0
      %628 = vmatpush1.bf16.msra.mxu0 0
      %629 = vmatprep.subr.bf16.mxu0 0
      %630 = vmatpush1.bf16.msra.mxu0 0
      %631 = vmatprep.subr.bf16.mxu0 0
      %632 = vmatpush1.bf16.msra.mxu0 0
      %633 = vmatprep.subr.bf16.mxu0 0
      %634 = vmatpush1.bf16.msra.mxu0 0
      %635 = vmatprep.subr.bf16.mxu0 0
      %636 = vmatpush1.bf16.msra.mxu0 0
      %637 = vmatprep.subr.bf16.mxu0 0
      %638 = vmatpush1.bf16.msra.mxu0 0
      %639 = vmatprep.subr.bf16.mxu0 0
      %640 = vmatpush1.bf16.msra.mxu0 0
      %641 = vmatprep.subr.bf16.mxu0 %v373
      %642 = vmatpush1.bf16.msra.mxu0 %v370
      %643 = vmatprep.subr.bf16.mxu0 0
      %644 = vmatpush2.bf16.msra.mxu0 0
      %645 = vmatprep.subr.bf16.mxu0 0
      %646 = vmatpush2.bf16.msra.mxu0 0
      %647 = vmatprep.subr.bf16.mxu0 0
      %648 = vmatpush2.bf16.msra.mxu0 0
      %649 = vmatprep.subr.bf16.mxu0 0
      %650 = vmatpush2.bf16.msra.mxu0 0
      %651 = vmatprep.subr.bf16.mxu0 0
      %652 = vmatpush2.bf16.msra.mxu0 0
      %653 = vmatprep.subr.bf16.mxu0 0
      %654 = vmatpush2.bf16.msra.mxu0 0
      %655 = vmatprep.subr.bf16.mxu0 0
      %656 = vmatpush2.bf16.msra.mxu0 0
      %657 = vmatprep.subr.bf16.mxu0 0
      %658 = vmatpush2.bf16.msra.mxu0 0
      %659 = vmatprep.mubr.bf16.mxu0 0
      %660 = vmatmul.mubr.bf16.gmra.mxu0 %v330
      %v661 = vpop.f32.mrf.mxu0
      %v662 = vadd.f32 0.0, %v661
      %v663 = vpop.f32.mrf.mxu0
      %v664 = vadd.f32 0.0, %v663
      %v665 = vpop.f32.mrf.mxu0
      %v666 = vpop.f32.mrf.mxu0
      %667 = vdwg.mxu0
      %668 = vmatprep.subr.bf16.mxu0 0
      %669 = vmatpush1.bf16.msra.mxu0 0
      %670 = vmatprep.subr.bf16.mxu0 0
      %671 = vmatpush1.bf16.msra.mxu0 0
      %672 = vmatprep.subr.bf16.mxu0 0
      %673 = vmatpush1.bf16.msra.mxu0 0
      %674 = vmatprep.subr.bf16.mxu0 0
      %675 = vmatpush1.bf16.msra.mxu0 0
      %676 = vmatprep.subr.bf16.mxu0 0
      %677 = vmatpush1.bf16.msra.mxu0 0
      %678 = vmatprep.subr.bf16.mxu0 0
      %679 = vmatpush1.bf16.msra.mxu0 0
      %680 = vmatprep.subr.bf16.mxu0 0
      %681 = vmatpush1.bf16.msra.mxu0 0
      %682 = vmatprep.subr.bf16.mxu0 %v379
      %683 = vmatpush1.bf16.msra.mxu0 %v376
      %684 = vmatprep.subr.bf16.mxu0 0
      %685 = vmatpush2.bf16.msra.mxu0 0
      %686 = vmatprep.subr.bf16.mxu0 0
      %687 = vmatpush2.bf16.msra.mxu0 0
      %688 = vmatprep.subr.bf16.mxu0 0
      %689 = vmatpush2.bf16.msra.mxu0 0
      %690 = vmatprep.subr.bf16.mxu0 0
      %691 = vmatpush2.bf16.msra.mxu0 0
      %692 = vmatprep.subr.bf16.mxu0 0
      %693 = vmatpush2.bf16.msra.mxu0 0
      %694 = vmatprep.subr.bf16.mxu0 0
      %695 = vmatpush2.bf16.msra.mxu0 0
      %696 = vmatprep.subr.bf16.mxu0 0
      %697 = vmatpush2.bf16.msra.mxu0 0
      %698 = vmatprep.subr.bf16.mxu0 0
      %699 = vmatpush2.bf16.msra.mxu0 0
      %700 = vmatprep.mubr.bf16.mxu0 0
      %701 = vmatmul.mubr.bf16.gmra.mxu0 %v330
      %v702 = vpop.f32.mrf.mxu0
      %v703 = vadd.f32 0.0, %v702
      %v704 = vpop.f32.mrf.mxu0
      %v705 = vadd.f32 0.0, %v704
      %v706 = vpop.f32.mrf.mxu0
      %v707 = vpop.f32.mrf.mxu0
      %708 = vdwg.mxu0
      %v709 = vpack.c.bf16 %v416, %v416
      %v710 = vpack.c.bf16 %v418, %v418
      %v711 = vpack.c.bf16 %v457, %v457
      %v712 = vpack.c.bf16 %v459, %v459
      %v713 = vpack.c.bf16 %v498, %v498
      %v714 = vpack.c.bf16 %v500, %v500
      %v715 = vpack.c.bf16 %v539, %v539
      %v716 = vpack.c.bf16 %v541, %v541
      %v717 = vpack.c.bf16 %v580, %v580
      %v718 = vpack.c.bf16 %v582, %v582
      %v719 = vpack.c.bf16 %v621, %v621
      %v720 = vpack.c.bf16 %v623, %v623
      %v721 = vpack.c.bf16 %v662, %v662
      %v722 = vpack.c.bf16 %v664, %v664
      %v723 = vpack.c.bf16 %v703, %v703
      %v724 = vpack.c.bf16 %v705, %v705
      %v741 = vunpack.c.l.b16 %v709
      %v742 = vunpack.c.l.b16 %v710
      %v743 = vunpack.c.l.b16 %v711
      %v744 = vunpack.c.l.b16 %v712
      %v745 = vunpack.c.l.b16 %v713
      %v746 = vunpack.c.l.b16 %v714
      %v747 = vunpack.c.l.b16 %v715
      %v748 = vunpack.c.l.b16 %v716
      %v749 = vunpack.c.l.b16 %v717
      %v750 = vunpack.c.l.b16 %v718
      %v751 = vunpack.c.l.b16 %v719
      %v752 = vunpack.c.l.b16 %v720
      %v753 = vunpack.c.l.b16 %v721
      %v754 = vunpack.c.l.b16 %v722
      %v755 = vunpack.c.l.b16 %v723
      %v756 = vunpack.c.l.b16 %v724
      %v757 = vpack.c.b16 %v742, %v741
      %v758 = vpack.c.b16 %v744, %v743
      %v759 = vpack.c.b16 %v746, %v745
      %v760 = vpack.c.b16 %v748, %v747
      %v761 = vpack.c.b16 %v750, %v749
      %v762 = vpack.c.b16 %v752, %v751
      %v763 = vpack.c.b16 %v754, %v753
      %v764 = vpack.c.b16 %v756, %v755
      %773 = vst [vmem:[%s260] sm:$0xff] %v757
      %774 = vst [vmem:[%s260 + $0x8] sm:$0xff] %v758
      %775 = vst [vmem:[%s260 + $0x10] sm:$0xff] %v759
      %776 = vst [vmem:[%s260 + $0x18] sm:$0xff] %v760
      %777 = vst [vmem:[%s260 + $0x20] sm:$0xff] %v761
      %778 = vst [vmem:[%s260 + $0x28] sm:$0xff] %v762
      %779 = vst [vmem:[%s260 + $0x30] sm:$0xff] %v763
      %780 = vst [vmem:[%s260 + $0x38] sm:$0xff] %v764
      %v781 = vadd.f32 %v416, %v418
      %v782 = vadd.f32 %v781, %v457
      %v783 = vadd.f32 %v782, %v459
      %v784 = vadd.f32 %v783, %v498
      %v785 = vadd.f32 %v784, %v500
      %v786 = vadd.f32 %v785, %v539
      %v787 = vadd.f32 %v786, %v541
      %v788 = vadd.f32 %v787, %v580
      %v789 = vadd.f32 %v788, %v582
      %v790 = vadd.f32 %v789, %v621
      %v791 = vadd.f32 %v790, %v623
      %v792 = vadd.f32 %v791, %v662
      %v793 = vadd.f32 %v792, %v664
      %v794 = vadd.f32 %v793, %v703
      %v795 = vadd.f32 %v794, %v705
      %796 = vadd.xlane.f32.xlu0 %v795
      %v797 = vpop.xlane.xlu0 %796
      %vm798 = vcmask 7168
      %799 = vst.msk [vmem:[%s269] sm:$0xff] %vm798, %v797
      %v800 = vmul.f32 %v416, %v416
      %v801 = vmul.f32 %v418, %v418
      %v802 = vmul.f32 %v457, %v457
      %v803 = vmul.f32 %v459, %v459
      %v804 = vmul.f32 %v498, %v498
      %v805 = vmul.f32 %v500, %v500
      %v806 = vmul.f32 %v539, %v539
      %v807 = vmul.f32 %v541, %v541
      %v808 = vmul.f32 %v580, %v580
      %v809 = vmul.f32 %v582, %v582
      %v810 = vmul.f32 %v621, %v621
      %v811 = vmul.f32 %v623, %v623
      %v812 = vmul.f32 %v662, %v662
      %v813 = vmul.f32 %v664, %v664
      %v814 = vmul.f32 %v703, %v703
      %v815 = vmul.f32 %v705, %v705
      %v816 = vadd.f32 %v800, %v801
      %v817 = vadd.f32 %v816, %v802
      %v818 = vadd.f32 %v817, %v803
      %v819 = vadd.f32 %v818, %v804
      %v820 = vadd.f32 %v819, %v805
      %v821 = vadd.f32 %v820, %v806
      %v822 = vadd.f32 %v821, %v807
      %v823 = vadd.f32 %v822, %v808
      %v824 = vadd.f32 %v823, %v809
      %v825 = vadd.f32 %v824, %v810
      %v826 = vadd.f32 %v825, %v811
      %v827 = vadd.f32 %v826, %v812
      %v828 = vadd.f32 %v827, %v813
      %v829 = vadd.f32 %v828, %v814
      %v830 = vadd.f32 %v829, %v815
      %831 = vadd.xlane.f32.xlu0 %v830
      %v832 = vpop.xlane.xlu0 %831
      %833 = vst.msk [vmem:[%s277] sm:$0xff] %vm798, %v832
      %s834 = smul.u32 16, %s21
      %p835 = scmp.lt.s32.totalorder %s20, 1
      %s836 = scalar_select %p835, %s20, 1
      %p837 = scmp.lt.s32.totalorder %s834, 31
      %s838 = scalar_select %p837, %s834, 31
      %s839 = smul.addr %s836, 32
      %s840 = sadd.s32 %s838, %s839
      %s841 = smul.addr %s840, 4
      %s842 = scalar_lea.vmem %s2, %s841
      %p843 = scmp.lt.s32.totalorder %s20, 1
      %s844 = scalar_select %p843, %s20, 1
      %p845 = scmp.lt.s32.totalorder %s21, 1
      %s846 = scalar_select %p845, %s21, 1
      %s847 = smul.addr %s844, 2
      %s848 = sadd.s32 %s846, %s847
      %s849 = smul.addr %s848, 8
      %s850 = scalar_lea.vmem %s3, %s849
      %p851 = scmp.lt.s32.totalorder %s20, 1
      %s852 = scalar_select %p851, %s20, 1
      %p853 = scmp.lt.s32.totalorder %s21, 1
      %s854 = scalar_select %p853, %s21, 1
      %s855 = smul.addr %s852, 2
      %s856 = sadd.s32 %s854, %s855
      %s857 = smul.addr %s856, 8
      %s858 = scalar_lea.vmem %s4, %s857
      // Predicated region
      $region29: #{up_relu_conv_bn.4} parent=27 // pred_check
        %p859 = pneg %p97
      $region30: #{up_relu_conv_bn.4} parent=27 // pred_check_branch
        %861 = sbr.rel (%p859) target = $region32
      $region31: #{up_relu_conv_bn.4} parent=27 // pred_region
        %s862 = smul.u32 16, %s21
      $region32: #{up_relu_conv_bn.4} parent=27 // pred_fallthru
        _
      // Predicated region
      $region33: #{up_relu_conv_bn.4} parent=27 // pred_check
        %p863 = pneg %p125
      $region34: #{up_relu_conv_bn.4} parent=27 // pred_check_branch
        %865 = sbr.rel (%p863) target = $region36
      $region35: #{up_relu_conv_bn.4} parent=27 // pred_region
        _
      $region36: #{up_relu_conv_bn.4} parent=27 // pred_fallthru
        _
      // Predicated region
      $region37: #{up_relu_conv_bn.4} parent=27 // pred_check
        %p866 = pneg %p153
      $region38: #{up_relu_conv_bn.4} parent=27 // pred_check_branch
        %868 = sbr.rel (%p866) target = $region40
      $region39: #{up_relu_conv_bn.4} parent=27 // pred_region
        _
      $region40: #{up_relu_conv_bn.4} parent=27 // pred_fallthru
        _
    $region28: #{up_relu_conv_bn.4} parent=5 // pred_fallthru
      _
    %p869 = scmp.le.s32.totalorder 2, %s11
    // Predicated region
    $region41: #{up_relu_conv_bn.4} parent=5 // pred_check
      %p870 = pneg %p869
    $region42: #{up_relu_conv_bn.4} parent=5 // pred_check_branch
      %872 = sbr.rel (%p870) target = $region44
    $region43: #{up_relu_conv_bn.4} parent=5 // pred_region
      %s873 = ssub.s32 %s11, 2
      // Predicated region
      $region45: #{up_relu_conv_bn.4} parent=43 // pred_check
        %p874 = pneg %p103
      $region46: #{up_relu_conv_bn.4} parent=43 // pred_check_branch
        %876 = sbr.rel (%p874) target = $region48
      $region47: #{up_relu_conv_bn.4} parent=43 // pred_region
        %s877 = smul.u32 16, %s23
        %p878 = scmp.lt.s32.totalorder %s22, 1
        %s879 = scalar_select %p878, %s22, 1
        %p880 = scmp.lt.s32.totalorder %s877, 31
        %s881 = scalar_select %p880, %s877, 31
        %s882 = smul.addr %s879, 32
        %s883 = sadd.s32 %s881, %s882
        %s884 = smul.addr %s883, 4
        %s885 = scalar_lea.vmem %s2, %s884
      $region48: #{up_relu_conv_bn.4} parent=43 // pred_fallthru
        _
      // Predicated region
      $region49: #{up_relu_conv_bn.4} parent=43 // pred_check
        %p886 = pneg %p131
      $region50: #{up_relu_conv_bn.4} parent=43 // pred_check_branch
        %888 = sbr.rel (%p886) target = $region52
      $region51: #{up_relu_conv_bn.4} parent=43 // pred_region
        %p889 = scmp.lt.s32.totalorder %s22, 1
        %s890 = scalar_select %p889, %s22, 1
        %p891 = scmp.lt.s32.totalorder %s23, 1
        %s892 = scalar_select %p891, %s23, 1
        %s893 = smul.addr %s890, 2
        %s894 = sadd.s32 %s892, %s893
        %s895 = smul.addr %s894, 8
        %s896 = scalar_lea.vmem %s3, %s895
      $region52: #{up_relu_conv_bn.4} parent=43 // pred_fallthru
        _
      // Predicated region
      $region53: #{up_relu_conv_bn.4} parent=43 // pred_check
        %p897 = pneg %p159
      $region54: #{up_relu_conv_bn.4} parent=43 // pred_check_branch
        %899 = sbr.rel (%p897) target = $region56
      $region55: #{up_relu_conv_bn.4} parent=43 // pred_region
        %p900 = scmp.lt.s32.totalorder %s22, 1
        %s901 = scalar_select %p900, %s22, 1
        %p902 = scmp.lt.s32.totalorder %s23, 1
        %s903 = scalar_select %p902, %s23, 1
        %s904 = smul.addr %s901, 2
        %s905 = sadd.s32 %s903, %s904
        %s906 = smul.addr %s905, 8
        %s907 = scalar_lea.vmem %s4, %s906
      $region56: #{up_relu_conv_bn.4} parent=43 // pred_fallthru
        _
    $region44: #{up_relu_conv_bn.4} parent=5 // pred_fallthru
      _
  $region6: #{up_relu_conv_bn.4} parent=0 // loop_footer
    %s15 = sadd.s32 1, %s11
  $region7: #{up_relu_conv_bn.4} parent=0 // loop_footer_branch
    %10 = sbr.rel target = $region3
  $region8: #{up_relu_conv_bn.4} parent=0 // loop_exit
    _

// kernel: up_relu_conv_bn.3
$region0: #{up_relu_conv_bn.3}
  #allocation0 [shape = 'u32[]', space=smem, size = 0x4, offset = 0x4, fixed_abs, tag = 'smem constant byte address 0x4 - core index']
  #allocation1 [shape = 'u32[144,128]{1,0:T(1,128)}', space=vmem, size = 0x12000, scoped, tag = 'internal scratch']
  %s0 = inlined_call_operand.hbm [shape: f32[2,4,8,8,8], index: 0, kind: input, shape index: {}]
  %s1 = inlined_call_operand.vmem [shape: bf16[16,8], index: 1, kind: input, shape index: {}]
  %s2 = inlined_call_operand.vmem [shape: bf16[8,16], index: 2, kind: input, shape index: {}]
  %s3 = inlined_call_operand.vmem [shape: bf16[2,4,16,16,16], index: 3, kind: output, shape index: {}]
  %s4 = sld [smem:[#allocation0]]
  $region49: #{up_relu_conv_bn.3} parent=0
    _
  %s6 = ssub.s32 1, %s4
  %s7 = scalar_select 0, %s6, %s4
  $region1: #{up_relu_conv_bn.3} parent=0
    #allocation2 [shape = 'u8[65536]{0}', space=vmem, size = 0x10000, scoped, tag = 'input window, operand 0']
    #allocation3 [shape = 's32[2]{0}', space=sflag, size = 0x8, scoped, tag = 'scoped memory for up_relu_conv_bn.3']
    %8 = vsyncpa [#allocation3], 0
    %s9 = scalar_lea.sflag [#allocation3], 1
    %10 = vsyncpa %s9, 0
    loop: start=0, step=1, limit=10
    $region2: #{up_relu_conv_bn.3} parent=1 // loop_pre_header
      _
    $region3: #{up_relu_conv_bn.3} parent=1 // loop_header
      %s12 = sphi 0, %s16
      %p13 = scmp.ge.s32.totalorder %s12, 10
      %s19 = sphi 0, %s31
      %s20 = sphi 0, %s27
      %s21 = sphi 0, %s19
      %s22 = sphi 0, %s20
      %s23 = sphi 0, %s21
      %s24 = sphi 0, %s22
      %s36 = sphi 0, %s38
      %s39 = sphi 0, %s36
      %s40 = sphi 0, %s39
      %s56 = sphi 0, %s40
      %s60 = sphi 0, %s60
      %s62 = sphi 0, %s60
      %s63 = sphi 0, %s62
      %s77 = sphi 0, %s63
      %s81 = sphi 0, %s81
      %s83 = sphi 0, %s81
      %s84 = sphi 0, %s83
      %s98 = sphi 0, %s84
      %s106 = sphi 0, %s108
      %s109 = sphi 0, %s106
      %s110 = sphi 0, %s109
      %s126 = sphi 0, %s110
    $region4: #{up_relu_conv_bn.3} parent=1 // loop_header_branch
      %15 = sbr.rel (%p13) target = $region8
    $region5: #{up_relu_conv_bn.3} parent=1 // loop_body
      %s17 = ssub.s32 %s12, 1
      %s18 = ssub.s32 %s12, 2
      %s25 = sadd.s32 1, %s20
      %p26 = scmp.ge.s32.totalorder %s25, 4
      %s27 = scalar_select %p26, 0, %s25
      %s28 = sadd.s32 1, %s19
      %s29 = scalar_select %p26, %s28, %s19
      %p30 = scmp.ge.s32.totalorder %s29, 2
      %s31 = scalar_select %p30, 0, %s29
      %s32 = ssub.s32 %s19, %s31
      %s33 = ssub.s32 %s20, %s27
      %s34 = sor.u32 %s32, %s33
      %p35 = scmp.eq.s32.totalorder %s34, 0
      %s37 = sadd.s32 %s36, 1
      %s38 = scalar_select %p35, %s36, %s37
      %p41 = pneg %p35
      %p42 = scmp.eq.s32.totalorder %s12, 7
      %p43 = por %p41, %p42
      %p44 = scmp.ne.s32.totalorder %s36, %s39
      %p45 = scmp.eq.s32.totalorder %s12, 0
      %p46 = por %p44, %p45
      %p47 = scmp.ne.s32.totalorder %s36, %s39
      %p48 = scmp.eq.s32.totalorder %s17, 7
      %p49 = por %p47, %p48
      %p50 = scmp.ne.s32.totalorder %s39, %s40
      %p51 = scmp.eq.s32.totalorder %s17, 0
      %p52 = por %p50, %p51
      %p53 = scmp.ne.s32.totalorder %s39, %s40
      %p54 = scmp.eq.s32.totalorder %s18, 7
      %p55 = por %p53, %p54
      %p57 = scmp.ne.s32.totalorder %s40, %s56
      %p58 = scmp.eq.s32.totalorder %s18, 0
      %p59 = por %p57, %p58
      %s61 = sadd.s32 %s60, 1
      %p64 = scmp.eq.s32.totalorder %s12, 7
      %p65 = scmp.ne.s32.totalorder %s60, %s62
      %p66 = scmp.eq.s32.totalorder %s12, 0
      %p67 = por %p65, %p66
      %p68 = scmp.ne.s32.totalorder %s60, %s62
      %p69 = scmp.eq.s32.totalorder %s17, 7
      %p70 = por %p68, %p69
      %p71 = scmp.ne.s32.totalorder %s62, %s63
      %p72 = scmp.eq.s32.totalorder %s17, 0
      %p73 = por %p71, %p72
      %p74 = scmp.ne.s32.totalorder %s62, %s63
      %p75 = scmp.eq.s32.totalorder %s18, 7
      %p76 = por %p74, %p75
      %p78 = scmp.ne.s32.totalorder %s63, %s77
      %p79 = scmp.eq.s32.totalorder %s18, 0
      %p80 = por %p78, %p79
      %s82 = sadd.s32 %s81, 1
      %p85 = scmp.eq.s32.totalorder %s12, 7
      %p86 = scmp.ne.s32.totalorder %s81, %s83
      %p87 = scmp.eq.s32.totalorder %s12, 0
      %p88 = por %p86, %p87
      %p89 = scmp.ne.s32.totalorder %s81, %s83
      %p90 = scmp.eq.s32.totalorder %s17, 7
      %p91 = por %p89, %p90
      %p92 = scmp.ne.s32.totalorder %s83, %s84
      %p93 = scmp.eq.s32.totalorder %s17, 0
      %p94 = por %p92, %p93
      %p95 = scmp.ne.s32.totalorder %s83, %s84
      %p96 = scmp.eq.s32.totalorder %s18, 7
      %p97 = por %p95, %p96
      %p99 = scmp.ne.s32.totalorder %s84, %s98
      %p100 = scmp.eq.s32.totalorder %s18, 0
      %p101 = por %p99, %p100
      %s102 = ssub.s32 %s19, %s31
      %s103 = ssub.s32 %s20, %s27
      %s104 = sor.u32 %s102, %s103
      %p105 = scmp.eq.s32.totalorder %s104, 0
      %s107 = sadd.s32 %s106, 1
      %s108 = scalar_select %p105, %s106, %s107
      %p111 = pneg %p105
      %p112 = scmp.eq.s32.totalorder %s12, 7
      %p113 = por %p111, %p112
      %p114 = scmp.ne.s32.totalorder %s106, %s109
      %p115 = scmp.eq.s32.totalorder %s12, 0
      %p116 = por %p114, %p115
      %p117 = scmp.ne.s32.totalorder %s106, %s109
      %p118 = scmp.eq.s32.totalorder %s17, 7
      %p119 = por %p117, %p118
      %p120 = scmp.ne.s32.totalorder %s109, %s110
      %p121 = scmp.eq.s32.totalorder %s17, 0
      %p122 = por %p120, %p121
      %p123 = scmp.ne.s32.totalorder %s109, %s110
      %p124 = scmp.eq.s32.totalorder %s18, 7
      %p125 = por %p123, %p124
      %p127 = scmp.ne.s32.totalorder %s110, %s126
      %p128 = scmp.eq.s32.totalorder %s18, 0
      %p129 = por %p127, %p128
      %p130 = scmp.le.s32.totalorder 1, %s12
      %p131 = scmp.lt.s32.totalorder %s12, 9
      %p132 = pnand %p130, %p131
      %p133 = pneg %p132
      // Predicated region
      $region9: #{up_relu_conv_bn.3} parent=5 // pred_check
        _
      $region10: #{up_relu_conv_bn.3} parent=5 // pred_check_branch
        %135 = sbr.rel (%p132) target = $region12
      $region11: #{up_relu_conv_bn.3} parent=5 // pred_region
        %s136 = ssub.s32 %s12, 1
        // Predicated region
        $region13: #{up_relu_conv_bn.3} parent=11 // pred_check
          %p137 = pneg %p73
        $region14: #{up_relu_conv_bn.3} parent=11 // pred_check_branch
          %139 = sbr.rel (%p137) target = $region16
        $region15: #{up_relu_conv_bn.3} parent=11 // pred_region
          _
        $region16: #{up_relu_conv_bn.3} parent=11 // pred_fallthru
          _
        // Predicated region
        $region17: #{up_relu_conv_bn.3} parent=11 // pred_check
          %p140 = pneg %p94
        $region18: #{up_relu_conv_bn.3} parent=11 // pred_check_branch
          %142 = sbr.rel (%p140) target = $region20
        $region19: #{up_relu_conv_bn.3} parent=11 // pred_region
          _
        $region20: #{up_relu_conv_bn.3} parent=11 // pred_fallthru
          _
      $region12: #{up_relu_conv_bn.3} parent=5 // pred_fallthru
        _
      %p143 = scmp.lt.s32.totalorder %s12, 8
      // Predicated region
      $region21: #{up_relu_conv_bn.3} parent=5 // pred_check
        %p144 = pneg %p143
      $region22: #{up_relu_conv_bn.3} parent=5 // pred_check_branch
        %146 = sbr.rel (%p144) target = $region24
      $region23: #{up_relu_conv_bn.3} parent=5 // pred_region
        // Predicated region
        $region25: #{up_relu_conv_bn.3} parent=23 // pred_check
          %p147 = pneg %p46
        $region26: #{up_relu_conv_bn.3} parent=23 // pred_check_branch
          %149 = sbr.rel (%p147) target = $region28
        $region27: #{up_relu_conv_bn.3} parent=23 // pred_region
          %s150 = sand.u32 %s36, 1
          %s151 = scalar_lea.sflag [#allocation3], %s150
          %s152 = sand.u32 %s36, 1
          %s153 = smul.addr %s152, 64
          %s154 = scalar_lea.vmem [#allocation2], %s153
          %s156 = ssub.s32 1024, 1024
          %157 = vsyncadd %s151, %s156
          %s158 = smul.addr %s20, 8
          %s159 = smul.addr %s19, 32
          %s160 = sadd.s32 %s158, %s159
          %s161 = smul.addr %s160, 128
          %s162 = scalar_lea.hbm %s0, %s161
          %s163 = sshll.u32 %s154, 4
          %s164 = int_to_ptr.vmem [resolvable:$true] %s163
          %169 = dma.hbm_to_vmem [thread:$0]  %s162, 1024, %s164, %s151, 128, 128, 8
        $region28: #{up_relu_conv_bn.3} parent=23 // pred_fallthru
          _
      $region24: #{up_relu_conv_bn.3} parent=5 // pred_fallthru
        _
      %p170 = scmp.le.s32.totalorder 1, %s12
      %p171 = scmp.lt.s32.totalorder %s12, 9
      %p172 = pnand %p170, %p171
      %p173 = pneg %p172
      // Predicated region
      $region29: #{up_relu_conv_bn.3} parent=5 // pred_check
        _
      $region30: #{up_relu_conv_bn.3} parent=5 // pred_check_branch
        %175 = sbr.rel (%p172) target = $region32
      $region31: #{up_relu_conv_bn.3} parent=5 // pred_region
        %s176 = ssub.s32 %s12, 1
        %s177 = sand.u32 %s39, 1
        %s178 = scalar_lea.sflag [#allocation3], %s177
        %s179 = sand.u32 %s39, 1
        %s180 = smul.addr %s179, 64
        %s181 = scalar_lea.vmem [#allocation2], %s180
        // Predicated region
        $region33: #{up_relu_conv_bn.3} parent=31 // pred_check
          %p182 = pneg %p52
        $region34: #{up_relu_conv_bn.3} parent=31 // pred_check_branch
          %184 = sbr.rel (%p182) target = $region36
        $region35: #{up_relu_conv_bn.3} parent=31 // pred_region
          %185 = dma.done %s178, 1024
        $region36: #{up_relu_conv_bn.3} parent=31 // pred_fallthru
          _
        %s186 = sand.u32 %s39, 1
        %s187 = scalar_lea.sflag [#allocation3], %s186
        %s188 = sand.u32 %s39, 1
        %s189 = smul.addr %s188, 64
        %s190 = scalar_lea.vmem [#allocation2], %s189
        %p191 = pneg %p52
        %p192 = pneg %p49
        %p193 = pneg %p73
        %p194 = pneg %p70
        %p195 = pneg %p94
        %p196 = pneg %p91
        %p197 = pneg %p122
        %p198 = pneg %p119
        %p199 = scmp.lt.s32.totalorder %s21, 1
        %s200 = scalar_select %p199, %s21, 1
        %p201 = scmp.lt.s32.totalorder %s22, 3
        %s202 = scalar_select %p201, %s22, 3
        %s203 = smul.addr %s202, 32
        %s204 = smul.addr %s200, 128
        %s205 = sadd.s32 %s203, %s204
        %s206 = smul.addr %s205, 4
        %s207 = scalar_lea.vmem %s3, %s206
        %p208 = scmp.lt.s32.totalorder %s21, 1
        %s209 = scalar_select %p208, %s21, 1
        %p210 = scmp.lt.s32.totalorder %s22, 3
        %s211 = scalar_select %p210, %s22, 3
        %s212 = smul.addr %s211, 32
        %s213 = smul.addr %s209, 128
        %s214 = sadd.s32 %s212, %s213
        %s215 = smul.addr %s214, 4
        %s216 = scalar_lea.vmem %s3, %s215
        %v218 = vld [vmem:[%s181] sm:$0xff]
        %v219 = vld [vmem:[%s181 + $0x8] sm:$0xff]
        %v220 = vld [vmem:[%s181 + $0x10] sm:$0xff]
        %v221 = vld [vmem:[%s181 + $0x18] sm:$0xff]
        %v222 = vld [vmem:[%s181 + $0x20] sm:$0xff]
        %v223 = vld [vmem:[%s181 + $0x28] sm:$0xff]
        %v224 = vld [vmem:[%s181 + $0x30] sm:$0xff]
        %v225 = vld [vmem:[%s181 + $0x38] sm:$0xff]
        %v226 = vpack.c.bf16 %v218, %v218
        %v227 = vpack.c.bf16 %v219, %v219
        %v228 = vpack.c.bf16 %v220, %v220
        %v229 = vpack.c.bf16 %v221, %v221
        %v230 = vpack.c.bf16 %v222, %v222
        %v231 = vpack.c.bf16 %v223, %v223
        %v232 = vpack.c.bf16 %v224, %v224
        %v233 = vpack.c.bf16 %v225, %v225
        %v234 = vld [vmem:[%s1] sm:$0xf]
        %v235 = vld [vmem:[%s1 + $0x4] sm:$0xf]
        %v236 = vld [vmem:[%s2] sm:$0xf]
        %v239 = vunpack.c.l.b16 %v234
        %v240 = vunpack.c.l.b16 %v235
        %v241 = vpack.c.b16 %v240, %v239
        %vm242 = vcmask 64512
        %v244 = vsel %vm242, %v241, 0
        %vm246 = vcmask 1043456
        %v248 = vsel %vm246, %v226, 0
        %250 = vmatprep.subr.bf16.mxu0 0
        %251 = vmatpush1.bf16.msra.mxu0 0
        %252 = vmatprep.subr.bf16.mxu0 0
        %253 = vmatpush1.bf16.msra.mxu0 0
        %254 = vmatprep.subr.bf16.mxu0 0
        %255 = vmatpush1.bf16.msra.mxu0 0
        %256 = vmatprep.subr.bf16.mxu0 0
        %257 = vmatpush1.bf16.msra.mxu0 0
        %258 = vmatprep.subr.bf16.mxu0 0
        %259 = vmatpush1.bf16.msra.mxu0 0
        %260 = vmatprep.subr.bf16.mxu0 0
        %261 = vmatpush1.bf16.msra.mxu0 0
        %262 = vmatprep.subr.bf16.mxu0 0
        %263 = vmatpush1.bf16.msra.mxu0 0
        %264 = vmatprep.subr.bf16.mxu0 0
        %265 = vmatpush1.bf16.msra.mxu0 %v248
        %266 = vmatprep.subr.bf16.mxu0 0
        %267 = vmatpush2.bf16.msra.mxu0 0
        %268 = vmatprep.subr.bf16.mxu0 0
        %269 = vmatpush2.bf16.msra.mxu0 0
        %270 = vmatprep.subr.bf16.mxu0 0
        %271 = vmatpush2.bf16.msra.mxu0 0
        %272 = vmatprep.subr.bf16.mxu0 0
        %273 = vmatpush2.bf16.msra.mxu0 0
        %274 = vmatprep.subr.bf16.mxu0 0
        %275 = vmatpush2.bf16.msra.mxu0 0
        %276 = vmatprep.subr.bf16.mxu0 0
        %277 = vmatpush2.bf16.msra.mxu0 0
        %278 = vmatprep.subr.bf16.mxu0 0
        %279 = vmatpush2.bf16.msra.mxu0 0
        %280 = vmatprep.subr.bf16.mxu0 0
        %281 = vmatpush2.bf16.msra.mxu0 0
        %282 = vmatprep.mubr.bf16.mxu0 0
        %283 = vmatmul.mubr.bf16.gmra.mxu0 %v244
        %v284 = vpop.f32.mrf.mxu0
        %v285 = vadd.f32 0.0, %v284
        %v286 = vpop.f32.mrf.mxu0
        %v287 = vpop.f32.mrf.mxu0
        %v288 = vadd.f32 0.0, %v287
        %v289 = vpop.f32.mrf.mxu0
        %290 = vdwg.mxu0
        %v292 = vsel %vm246, %v227, 0
        %294 = vmatprep.subr.bf16.mxu0 0
        %295 = vmatpush1.bf16.msra.mxu0 0
        %296 = vmatprep.subr.bf16.mxu0 0
        %297 = vmatpush1.bf16.msra.mxu0 0
        %298 = vmatprep.subr.bf16.mxu0 0
        %299 = vmatpush1.bf16.msra.mxu0 0
        %300 = vmatprep.subr.bf16.mxu0 0
        %301 = vmatpush1.bf16.msra.mxu0 0
        %302 = vmatprep.subr.bf16.mxu0 0
        %303 = vmatpush1.bf16.msra.mxu0 0
        %304 = vmatprep.subr.bf16.mxu0 0
        %305 = vmatpush1.bf16.msra.mxu0 0
        %306 = vmatprep.subr.bf16.mxu0 0
        %307 = vmatpush1.bf16.msra.mxu0 0
        %308 = vmatprep.subr.bf16.mxu0 0
        %309 = vmatpush1.bf16.msra.mxu0 %v292
        %310 = vmatprep.subr.bf16.mxu0 0
        %311 = vmatpush2.bf16.msra.mxu0 0
        %312 = vmatprep.subr.bf16.mxu0 0
        %313 = vmatpush2.bf16.msra.mxu0 0
        %314 = vmatprep.subr.bf16.mxu0 0
        %315 = vmatpush2.bf16.msra.mxu0 0
        %316 = vmatprep.subr.bf16.mxu0 0
        %317 = vmatpush2.bf16.msra.mxu0 0
        %318 = vmatprep.subr.bf16.mxu0 0
        %319 = vmatpush2.bf16.msra.mxu0 0
        %320 = vmatprep.subr.bf16.mxu0 0
        %321 = vmatpush2.bf16.msra.mxu0 0
        %322 = vmatprep.subr.bf16.mxu0 0
        %323 = vmatpush2.bf16.msra.mxu0 0
        %324 = vmatprep.subr.bf16.mxu0 0
        %325 = vmatpush2.bf16.msra.mxu0 0
        %326 = vmatprep.mubr.bf16.mxu0 0
        %327 = vmatmul.mubr.bf16.gmra.mxu0 %v244
        %v328 = vpop.f32.mrf.mxu0
        %v329 = vadd.f32 0.0, %v328
        %v330 = vpop.f32.mrf.mxu0
        %v331 = vpop.f32.mrf.mxu0
        %v332 = vadd.f32 0.0, %v331
        %v333 = vpop.f32.mrf.mxu0
        %334 = vdwg.mxu0
        %v336 = vsel %vm246, %v228, 0
        %338 = vmatprep.subr.bf16.mxu0 0
        %339 = vmatpush1.bf16.msra.mxu0 0
        %340 = vmatprep.subr.bf16.mxu0 0
        %341 = vmatpush1.bf16.msra.mxu0 0
        %342 = vmatprep.subr.bf16.mxu0 0
        %343 = vmatpush1.bf16.msra.mxu0 0
        %344 = vmatprep.subr.bf16.mxu0 0
        %345 = vmatpush1.bf16.msra.mxu0 0
        %346 = vmatprep.subr.bf16.mxu0 0
        %347 = vmatpush1.bf16.msra.mxu0 0
        %348 = vmatprep.subr.bf16.mxu0 0
        %349 = vmatpush1.bf16.msra.mxu0 0
        %350 = vmatprep.subr.bf16.mxu0 0
        %351 = vmatpush1.bf16.msra.mxu0 0
        %352 = vmatprep.subr.bf16.mxu0 0
        %353 = vmatpush1.bf16.msra.mxu0 %v336
        %354 = vmatprep.subr.bf16.mxu0 0
        %355 = vmatpush2.bf16.msra.mxu0 0
        %356 = vmatprep.subr.bf16.mxu0 0
        %357 = vmatpush2.bf16.msra.mxu0 0
        %358 = vmatprep.subr.bf16.mxu0 0
        %359 = vmatpush2.bf16.msra.mxu0 0
        %360 = vmatprep.subr.bf16.mxu0 0
        %361 = vmatpush2.bf16.msra.mxu0 0
        %362 = vmatprep.subr.bf16.mxu0 0
        %363 = vmatpush2.bf16.msra.mxu0 0
        %364 = vmatprep.subr.bf16.mxu0 0
        %365 = vmatpush2.bf16.msra.mxu0 0
        %366 = vmatprep.subr.bf16.mxu0 0
        %367 = vmatpush2.bf16.msra.mxu0 0
        %368 = vmatprep.subr.bf16.mxu0 0
        %369 = vmatpush2.bf16.msra.mxu0 0
        %370 = vmatprep.mubr.bf16.mxu0 0
        %371 = vmatmul.mubr.bf16.gmra.mxu0 %v244
        %v372 = vpop.f32.mrf.mxu0
        %v373 = vadd.f32 0.0, %v372
        %v374 = vpop.f32.mrf.mxu0
        %v375 = vpop.f32.mrf.mxu0
        %v376 = vadd.f32 0.0, %v375
        %v377 = vpop.f32.mrf.mxu0
        %378 = vdwg.mxu0
        %v380 = vsel %vm246, %v229, 0
        %382 = vmatprep.subr.bf16.mxu0 0
        %383 = vmatpush1.bf16.msra.mxu0 0
        %384 = vmatprep.subr.bf16.mxu0 0
        %385 = vmatpush1.bf16.msra.mxu0 0
        %386 = vmatprep.subr.bf16.mxu0 0
        %387 = vmatpush1.bf16.msra.mxu0 0
        %388 = vmatprep.subr.bf16.mxu0 0
        %389 = vmatpush1.bf16.msra.mxu0 0
        %390 = vmatprep.subr.bf16.mxu0 0
        %391 = vmatpush1.bf16.msra.mxu0 0
        %392 = vmatprep.subr.bf16.mxu0 0
        %393 = vmatpush1.bf16.msra.mxu0 0
        %394 = vmatprep.subr.bf16.mxu0 0
        %395 = vmatpush1.bf16.msra.mxu0 0
        %396 = vmatprep.subr.bf16.mxu0 0
        %397 = vmatpush1.bf16.msra.mxu0 %v380
        %398 = vmatprep.subr.bf16.mxu0 0
        %399 = vmatpush2.bf16.msra.mxu0 0
        %400 = vmatprep.subr.bf16.mxu0 0
        %401 = vmatpush2.bf16.msra.mxu0 0
        %402 = vmatprep.subr.bf16.mxu0 0
        %403 = vmatpush2.bf16.msra.mxu0 0
        %404 = vmatprep.subr.bf16.mxu0 0
        %405 = vmatpush2.bf16.msra.mxu0 0
        %406 = vmatprep.subr.bf16.mxu0 0
        %407 = vmatpush2.bf16.msra.mxu0 0
        %408 = vmatprep.subr.bf16.mxu0 0
        %409 = vmatpush2.bf16.msra.mxu0 0
        %410 = vmatprep.subr.bf16.mxu0 0
        %411 = vmatpush2.bf16.msra.mxu0 0
        %412 = vmatprep.subr.bf16.mxu0 0
        %413 = vmatpush2.bf16.msra.mxu0 0
        %414 = vmatprep.mubr.bf16.mxu0 0
        %415 = vmatmul.mubr.bf16.gmra.mxu0 %v244
        %v416 = vpop.f32.mrf.mxu0
        %v417 = vadd.f32 0.0, %v416
        %v418 = vpop.f32.mrf.mxu0
        %v419 = vpop.f32.mrf.mxu0
        %v420 = vadd.f32 0.0, %v419
        %v421 = vpop.f32.mrf.mxu0
        %422 = vdwg.mxu0
        %v424 = vsel %vm246, %v230, 0
        %426 = vmatprep.subr.bf16.mxu0 0
        %427 = vmatpush1.bf16.msra.mxu0 0
        %428 = vmatprep.subr.bf16.mxu0 0
        %429 = vmatpush1.bf16.msra.mxu0 0
        %430 = vmatprep.subr.bf16.mxu0 0
        %431 = vmatpush1.bf16.msra.mxu0 0
        %432 = vmatprep.subr.bf16.mxu0 0
        %433 = vmatpush1.bf16.msra.mxu0 0
        %434 = vmatprep.subr.bf16.mxu0 0
        %435 = vmatpush1.bf16.msra.mxu0 0
        %436 = vmatprep.subr.bf16.mxu0 0
        %437 = vmatpush1.bf16.msra.mxu0 0
        %438 = vmatprep.subr.bf16.mxu0 0
        %439 = vmatpush1.bf16.msra.mxu0 0
        %440 = vmatprep.subr.bf16.mxu0 0
        %441 = vmatpush1.bf16.msra.mxu0 %v424
        %442 = vmatprep.subr.bf16.mxu0 0
        %443 = vmatpush2.bf16.msra.mxu0 0
        %444 = vmatprep.subr.bf16.mxu0 0
        %445 = vmatpush2.bf16.msra.mxu0 0
        %446 = vmatprep.subr.bf16.mxu0 0
        %447 = vmatpush2.bf16.msra.mxu0 0
        %448 = vmatprep.subr.bf16.mxu0 0
        %449 = vmatpush2.bf16.msra.mxu0 0
        %450 = vmatprep.subr.bf16.mxu0 0
        %451 = vmatpush2.bf16.msra.mxu0 0
        %452 = vmatprep.subr.bf16.mxu0 0
        %453 = vmatpush2.bf16.msra.mxu0 0
        %454 = vmatprep.subr.bf16.mxu0 0
        %455 = vmatpush2.bf16.msra.mxu0 0
        %456 = vmatprep.subr.bf16.mxu0 0
        %457 = vmatpush2.bf16.msra.mxu0 0
        %458 = vmatprep.mubr.bf16.mxu0 0
        %459 = vmatmul.mubr.bf16.gmra.mxu0 %v244
        %v460 = vpop.f32.mrf.mxu0
        %v461 = vadd.f32 0.0, %v460
        %v462 = vpop.f32.mrf.mxu0
        %v463 = vpop.f32.mrf.mxu0
        %v464 = vadd.f32 0.0, %v463
        %v465 = vpop.f32.mrf.mxu0
        %466 = vdwg.mxu0
        %v468 = vsel %vm246, %v231, 0
        %470 = vmatprep.subr.bf16.mxu0 0
        %471 = vmatpush1.bf16.msra.mxu0 0
        %472 = vmatprep.subr.bf16.mxu0 0
        %473 = vmatpush1.bf16.msra.mxu0 0
        %474 = vmatprep.subr.bf16.mxu0 0
        %475 = vmatpush1.bf16.msra.mxu0 0
        %476 = vmatprep.subr.bf16.mxu0 0
        %477 = vmatpush1.bf16.msra.mxu0 0
        %478 = vmatprep.subr.bf16.mxu0 0
        %479 = vmatpush1.bf16.msra.mxu0 0
        %480 = vmatprep.subr.bf16.mxu0 0
        %481 = vmatpush1.bf16.msra.mxu0 0
        %482 = vmatprep.subr.bf16.mxu0 0
        %483 = vmatpush1.bf16.msra.mxu0 0
        %484 = vmatprep.subr.bf16.mxu0 0
        %485 = vmatpush1.bf16.msra.mxu0 %v468
        %486 = vmatprep.subr.bf16.mxu0 0
        %487 = vmatpush2.bf16.msra.mxu0 0
        %488 = vmatprep.subr.bf16.mxu0 0
        %489 = vmatpush2.bf16.msra.mxu0 0
        %490 = vmatprep.subr.bf16.mxu0 0
        %491 = vmatpush2.bf16.msra.mxu0 0
        %492 = vmatprep.subr.bf16.mxu0 0
        %493 = vmatpush2.bf16.msra.mxu0 0
        %494 = vmatprep.subr.bf16.mxu0 0
        %495 = vmatpush2.bf16.msra.mxu0 0
        %496 = vmatprep.subr.bf16.mxu0 0
        %497 = vmatpush2.bf16.msra.mxu0 0
        %498 = vmatprep.subr.bf16.mxu0 0
        %499 = vmatpush2.bf16.msra.mxu0 0
        %500 = vmatprep.subr.bf16.mxu0 0
        %501 = vmatpush2.bf16.msra.mxu0 0
        %502 = vmatprep.mubr.bf16.mxu0 0
        %503 = vmatmul.mubr.bf16.gmra.mxu0 %v244
        %v504 = vpop.f32.mrf.mxu0
        %v505 = vadd.f32 0.0, %v504
        %v506 = vpop.f32.mrf.mxu0
        %v507 = vpop.f32.mrf.mxu0
        %v508 = vadd.f32 0.0, %v507
        %v509 = vpop.f32.mrf.mxu0
        %510 = vdwg.mxu0
        %v512 = vsel %vm246, %v232, 0
        %514 = vmatprep.subr.bf16.mxu0 0
        %515 = vmatpush1.bf16.msra.mxu0 0
        %516 = vmatprep.subr.bf16.mxu0 0
        %517 = vmatpush1.bf16.msra.mxu0 0
        %518 = vmatprep.subr.bf16.mxu0 0
        %519 = vmatpush1.bf16.msra.mxu0 0
        %520 = vmatprep.subr.bf16.mxu0 0
        %521 = vmatpush1.bf16.msra.mxu0 0
        %522 = vmatprep.subr.bf16.mxu0 0
        %523 = vmatpush1.bf16.msra.mxu0 0
        %524 = vmatprep.subr.bf16.mxu0 0
        %525 = vmatpush1.bf16.msra.mxu0 0
        %526 = vmatprep.subr.bf16.mxu0 0
        %527 = vmatpush1.bf16.msra.mxu0 0
        %528 = vmatprep.subr.bf16.mxu0 0
        %529 = vmatpush1.bf16.msra.mxu0 %v512
        %530 = vmatprep.subr.bf16.mxu0 0
        %531 = vmatpush2.bf16.msra.mxu0 0
        %532 = vmatprep.subr.bf16.mxu0 0
        %533 = vmatpush2.bf16.msra.mxu0 0
        %534 = vmatprep.subr.bf16.mxu0 0
        %535 = vmatpush2.bf16.msra.mxu0 0
        %536 = vmatprep.subr.bf16.mxu0 0
        %537 = vmatpush2.bf16.msra.mxu0 0
        %538 = vmatprep.subr.bf16.mxu0 0
        %539 = vmatpush2.bf16.msra.mxu0 0
        %540 = vmatprep.subr.bf16.mxu0 0
        %541 = vmatpush2.bf16.msra.mxu0 0
        %542 = vmatprep.subr.bf16.mxu0 0
        %543 = vmatpush2.bf16.msra.mxu0 0
        %544 = vmatprep.subr.bf16.mxu0 0
        %545 = vmatpush2.bf16.msra.mxu0 0
        %546 = vmatprep.mubr.bf16.mxu0 0
        %547 = vmatmul.mubr.bf16.gmra.mxu0 %v244
        %v548 = vpop.f32.mrf.mxu0
        %v549 = vadd.f32 0.0, %v548
        %v550 = vpop.f32.mrf.mxu0
        %v551 = vpop.f32.mrf.mxu0
        %v552 = vadd.f32 0.0, %v551
        %v553 = vpop.f32.mrf.mxu0
        %554 = vdwg.mxu0
        %v556 = vsel %vm246, %v233, 0
        %558 = vmatprep.subr.bf16.mxu0 0
        %559 = vmatpush1.bf16.msra.mxu0 0
        %560 = vmatprep.subr.bf16.mxu0 0
        %561 = vmatpush1.bf16.msra.mxu0 0
        %562 = vmatprep.subr.bf16.mxu0 0
        %563 = vmatpush1.bf16.msra.mxu0 0
        %564 = vmatprep.subr.bf16.mxu0 0
        %565 = vmatpush1.bf16.msra.mxu0 0
        %566 = vmatprep.subr.bf16.mxu0 0
        %567 = vmatpush1.bf16.msra.mxu0 0
        %568 = vmatprep.subr.bf16.mxu0 0
        %569 = vmatpush1.bf16.msra.mxu0 0
        %570 = vmatprep.subr.bf16.mxu0 0
        %571 = vmatpush1.bf16.msra.mxu0 0
        %572 = vmatprep.subr.bf16.mxu0 0
        %573 = vmatpush1.bf16.msra.mxu0 %v556
        %574 = vmatprep.subr.bf16.mxu0 0
        %575 = vmatpush2.bf16.msra.mxu0 0
        %576 = vmatprep.subr.bf16.mxu0 0
        %577 = vmatpush2.bf16.msra.mxu0 0
        %578 = vmatprep.subr.bf16.mxu0 0
        %579 = vmatpush2.bf16.msra.mxu0 0
        %580 = vmatprep.subr.bf16.mxu0 0
        %581 = vmatpush2.bf16.msra.mxu0 0
        %582 = vmatprep.subr.bf16.mxu0 0
        %583 = vmatpush2.bf16.msra.mxu0 0
        %584 = vmatprep.subr.bf16.mxu0 0
        %585 = vmatpush2.bf16.msra.mxu0 0
        %586 = vmatprep.subr.bf16.mxu0 0
        %587 = vmatpush2.bf16.msra.mxu0 0
        %588 = vmatprep.subr.bf16.mxu0 0
        %589 = vmatpush2.bf16.msra.mxu0 0
        %590 = vmatprep.mubr.bf16.mxu0 0
        %591 = vmatmul.mubr.bf16.gmra.mxu0 %v244
        %v592 = vpop.f32.mrf.mxu0
        %v593 = vadd.f32 0.0, %v592
        %v594 = vpop.f32.mrf.mxu0
        %v595 = vpop.f32.mrf.mxu0
        %v596 = vadd.f32 0.0, %v595
        %v597 = vpop.f32.mrf.mxu0
        %598 = vdwg.mxu0
        %v599 = vpack.c.bf16 %v288, %v285
        %v600 = vpack.c.bf16 %v332, %v329
        %v601 = vpack.c.bf16 %v376, %v373
        %v602 = vpack.c.bf16 %v420, %v417
        %v603 = vpack.c.bf16 %v464, %v461
        %v604 = vpack.c.bf16 %v508, %v505
        %v605 = vpack.c.bf16 %v552, %v549
        %v606 = vpack.c.bf16 %v596, %v593
        %v608 = vsel %vm242, %v599, 0
        %v611 = vsel %vm246, %v236, 0
        %613 = vmatprep.subr.bf16.mxu0 0
        %614 = vmatpush1.bf16.msra.mxu0 0
        %615 = vmatprep.subr.bf16.mxu0 0
        %616 = vmatpush1.bf16.msra.mxu0 0
        %617 = vmatprep.subr.bf16.mxu0 0
        %618 = vmatpush1.bf16.msra.mxu0 0
        %619 = vmatprep.subr.bf16.mxu0 0
        %620 = vmatpush1.bf16.msra.mxu0 0
        %621 = vmatprep.subr.bf16.mxu0 0
        %622 = vmatpush1.bf16.msra.mxu0 0
        %623 = vmatprep.subr.bf16.mxu0 0
        %624 = vmatpush1.bf16.msra.mxu0 0
        %625 = vmatprep.subr.bf16.mxu0 0
        %626 = vmatpush1.bf16.msra.mxu0 0
        %627 = vmatprep.subr.bf16.mxu0 0
        %628 = vmatpush1.bf16.msra.mxu0 %v611
        %629 = vmatprep.subr.bf16.mxu0 0
        %630 = vmatpush2.bf16.msra.mxu0 0
        %631 = vmatprep.subr.bf16.mxu0 0
        %632 = vmatpush2.bf16.msra.mxu0 0
        %633 = vmatprep.subr.bf16.mxu0 0
        %634 = vmatpush2.bf16.msra.mxu0 0
        %635 = vmatprep.subr.bf16.mxu0 0
        %636 = vmatpush2.bf16.msra.mxu0 0
        %637 = vmatprep.subr.bf16.mxu0 0
        %638 = vmatpush2.bf16.msra.mxu0 0
        %639 = vmatprep.subr.bf16.mxu0 0
        %640 = vmatpush2.bf16.msra.mxu0 0
        %641 = vmatprep.subr.bf16.mxu0 0
        %642 = vmatpush2.bf16.msra.mxu0 0
        %643 = vmatprep.subr.bf16.mxu0 0
        %644 = vmatpush2.bf16.msra.mxu0 0
        %645 = vmatprep.mubr.bf16.mxu0 0
        %646 = vmatmul.mubr.bf16.gmra.mxu0 %v608
        %v647 = vpop.f32.mrf.mxu0
        %v648 = vadd.f32 0.0, %v647
        %v649 = vpop.f32.mrf.mxu0
        %v650 = vpop.f32.mrf.mxu0
        %v651 = vadd.f32 0.0, %v650
        %v652 = vpop.f32.mrf.mxu0
        %653 = vdwg.mxu0
        %v655 = vsel %vm242, %v600, 0
        %657 = vmatprep.subr.bf16.mxu0 0
        %658 = vmatpush1.bf16.msra.mxu0 0
        %659 = vmatprep.subr.bf16.mxu0 0
        %660 = vmatpush1.bf16.msra.mxu0 0
        %661 = vmatprep.subr.bf16.mxu0 0
        %662 = vmatpush1.bf16.msra.mxu0 0
        %663 = vmatprep.subr.bf16.mxu0 0
        %664 = vmatpush1.bf16.msra.mxu0 0
        %665 = vmatprep.subr.bf16.mxu0 0
        %666 = vmatpush1.bf16.msra.mxu0 0
        %667 = vmatprep.subr.bf16.mxu0 0
        %668 = vmatpush1.bf16.msra.mxu0 0
        %669 = vmatprep.subr.bf16.mxu0 0
        %670 = vmatpush1.bf16.msra.mxu0 0
        %671 = vmatprep.subr.bf16.mxu0 0
        %672 = vmatpush1.bf16.msra.mxu0 %v611
        %673 = vmatprep.subr.bf16.mxu0 0
        %674 = vmatpush2.bf16.msra.mxu0 0
        %675 = vmatprep.subr.bf16.mxu0 0
        %676 = vmatpush2.bf16.msra.mxu0 0
        %677 = vmatprep.subr.bf16.mxu0 0
        %678 = vmatpush2.bf16.msra.mxu0 0
        %679 = vmatprep.subr.bf16.mxu0 0
        %680 = vmatpush2.bf16.msra.mxu0 0
        %681 = vmatprep.subr.bf16.mxu0 0
        %682 = vmatpush2.bf16.msra.mxu0 0
        %683 = vmatprep.subr.bf16.mxu0 0
        %684 = vmatpush2.bf16.msra.mxu0 0
        %685 = vmatprep.subr.bf16.mxu0 0
        %686 = vmatpush2.bf16.msra.mxu0 0
        %687 = vmatprep.subr.bf16.mxu0 0
        %688 = vmatpush2.bf16.msra.mxu0 0
        %689 = vmatprep.mubr.bf16.mxu0 0
        %690 = vmatmul.mubr.bf16.gmra.mxu0 %v655
        %v691 = vpop.f32.mrf.mxu0
        %v692 = vadd.f32 0.0, %v691
        %v693 = vpop.f32.mrf.mxu0
        %v694 = vpop.f32.mrf.mxu0
        %v695 = vadd.f32 0.0, %v694
        %v696 = vpop.f32.mrf.mxu0
        %697 = vdwg.mxu0
        %v699 = vsel %vm242, %v601, 0
        %701 = vmatprep.subr.bf16.mxu0 0
        %702 = vmatpush1.bf16.msra.mxu0 0
        %703 = vmatprep.subr.bf16.mxu0 0
        %704 = vmatpush1.bf16.msra.mxu0 0
        %705 = vmatprep.subr.bf16.mxu0 0
        %706 = vmatpush1.bf16.msra.mxu0 0
        %707 = vmatprep.subr.bf16.mxu0 0
        %708 = vmatpush1.bf16.msra.mxu0 0
        %709 = vmatprep.subr.bf16.mxu0 0
        %710 = vmatpush1.bf16.msra.mxu0 0
        %711 = vmatprep.subr.bf16.mxu0 0
        %712 = vmatpush1.bf16.msra.mxu0 0
        %713 = vmatprep.subr.bf16.mxu0 0
        %714 = vmatpush1.bf16.msra.mxu0 0
        %715 = vmatprep.subr.bf16.mxu0 0
        %716 = vmatpush1.bf16.msra.mxu0 %v611
        %717 = vmatprep.subr.bf16.mxu0 0
        %718 = vmatpush2.bf16.msra.mxu0 0
        %719 = vmatprep.subr.bf16.mxu0 0
        %720 = vmatpush2.bf16.msra.mxu0 0
        %721 = vmatprep.subr.bf16.mxu0 0
        %722 = vmatpush2.bf16.msra.mxu0 0
        %723 = vmatprep.subr.bf16.mxu0 0
        %724 = vmatpush2.bf16.msra.mxu0 0
        %725 = vmatprep.subr.bf16.mxu0 0
        %726 = vmatpush2.bf16.msra.mxu0 0
        %727 = vmatprep.subr.bf16.mxu0 0
        %728 = vmatpush2.bf16.msra.mxu0 0
        %729 = vmatprep.subr.bf16.mxu0 0
        %730 = vmatpush2.bf16.msra.mxu0 0
        %731 = vmatprep.subr.bf16.mxu0 0
        %732 = vmatpush2.bf16.msra.mxu0 0
        %733 = vmatprep.mubr.bf16.mxu0 0
        %734 = vmatmul.mubr.bf16.gmra.mxu0 %v699
        %v735 = vpop.f32.mrf.mxu0
        %v736 = vadd.f32 0.0, %v735
        %v737 = vpop.f32.mrf.mxu0
        %v738 = vpop.f32.mrf.mxu0
        %v739 = vadd.f32 0.0, %v738
        %v740 = vpop.f32.mrf.mxu0
        %741 = vdwg.mxu0
        %v743 = vsel %vm242, %v602, 0
        %745 = vmatprep.subr.bf16.mxu0 0
        %746 = vmatpush1.bf16.msra.mxu0 0
        %747 = vmatprep.subr.bf16.mxu0 0
        %748 = vmatpush1.bf16.msra.mxu0 0
        %749 = vmatprep.subr.bf16.mxu0 0
        %750 = vmatpush1.bf16.msra.mxu0 0
        %751 = vmatprep.subr.bf16.mxu0 0
        %752 = vmatpush1.bf16.msra.mxu0 0
        %753 = vmatprep.subr.bf16.mxu0 0
        %754 = vmatpush1.bf16.msra.mxu0 0
        %755 = vmatprep.subr.bf16.mxu0 0
        %756 = vmatpush1.bf16.msra.mxu0 0
        %757 = vmatprep.subr.bf16.mxu0 0
        %758 = vmatpush1.bf16.msra.mxu0 0
        %759 = vmatprep.subr.bf16.mxu0 0
        %760 = vmatpush1.bf16.msra.mxu0 %v611
        %761 = vmatprep.subr.bf16.mxu0 0
        %762 = vmatpush2.bf16.msra.mxu0 0
        %763 = vmatprep.subr.bf16.mxu0 0
        %764 = vmatpush2.bf16.msra.mxu0 0
        %765 = vmatprep.subr.bf16.mxu0 0
        %766 = vmatpush2.bf16.msra.mxu0 0
        %767 = vmatprep.subr.bf16.mxu0 0
        %768 = vmatpush2.bf16.msra.mxu0 0
        %769 = vmatprep.subr.bf16.mxu0 0
        %770 = vmatpush2.bf16.msra.mxu0 0
        %771 = vmatprep.subr.bf16.mxu0 0
        %772 = vmatpush2.bf16.msra.mxu0 0
        %773 = vmatprep.subr.bf16.mxu0 0
        %774 = vmatpush2.bf16.msra.mxu0 0
        %775 = vmatprep.subr.bf16.mxu0 0
        %776 = vmatpush2.bf16.msra.mxu0 0
        %777 = vmatprep.mubr.bf16.mxu0 0
        %778 = vmatmul.mubr.bf16.gmra.mxu0 %v743
        %v779 = vpop.f32.mrf.mxu0
        %v780 = vadd.f32 0.0, %v779
        %v781 = vpop.f32.mrf.mxu0
        %v782 = vpop.f32.mrf.mxu0
        %v783 = vadd.f32 0.0, %v782
        %v784 = vpop.f32.mrf.mxu0
        %785 = vdwg.mxu0
        %v787 = vsel %vm242, %v603, 0
        %789 = vmatprep.subr.bf16.mxu0 0
        %790 = vmatpush1.bf16.msra.mxu0 0
        %791 = vmatprep.subr.bf16.mxu0 0
        %792 = vmatpush1.bf16.msra.mxu0 0
        %793 = vmatprep.subr.bf16.mxu0 0
        %794 = vmatpush1.bf16.msra.mxu0 0
        %795 = vmatprep.subr.bf16.mxu0 0
        %796 = vmatpush1.bf16.msra.mxu0 0
        %797 = vmatprep.subr.bf16.mxu0 0
        %798 = vmatpush1.bf16.msra.mxu0 0
        %799 = vmatprep.subr.bf16.mxu0 0
        %800 = vmatpush1.bf16.msra.mxu0 0
        %801 = vmatprep.subr.bf16.mxu0 0
        %802 = vmatpush1.bf16.msra.mxu0 0
        %803 = vmatprep.subr.bf16.mxu0 0
        %804 = vmatpush1.bf16.msra.mxu0 %v611
        %805 = vmatprep.subr.bf16.mxu0 0
        %806 = vmatpush2.bf16.msra.mxu0 0
        %807 = vmatprep.subr.bf16.mxu0 0
        %808 = vmatpush2.bf16.msra.mxu0 0
        %809 = vmatprep.subr.bf16.mxu0 0
        %810 = vmatpush2.bf16.msra.mxu0 0
        %811 = vmatprep.subr.bf16.mxu0 0
        %812 = vmatpush2.bf16.msra.mxu0 0
        %813 = vmatprep.subr.bf16.mxu0 0
        %814 = vmatpush2.bf16.msra.mxu0 0
        %815 = vmatprep.subr.bf16.mxu0 0
        %816 = vmatpush2.bf16.msra.mxu0 0
        %817 = vmatprep.subr.bf16.mxu0 0
        %818 = vmatpush2.bf16.msra.mxu0 0
        %819 = vmatprep.subr.bf16.mxu0 0
        %820 = vmatpush2.bf16.msra.mxu0 0
        %821 = vmatprep.mubr.bf16.mxu0 0
        %822 = vmatmul.mubr.bf16.gmra.mxu0 %v787
        %v823 = vpop.f32.mrf.mxu0
        %v824 = vadd.f32 0.0, %v823
        %v825 = vpop.f32.mrf.mxu0
        %v826 = vpop.f32.mrf.mxu0
        %v827 = vadd.f32 0.0, %v826
        %v828 = vpop.f32.mrf.mxu0
        %829 = vdwg.mxu0
        %v831 = vsel %vm242, %v604, 0
        %833 = vmatprep.subr.bf16.mxu0 0
        %834 = vmatpush1.bf16.msra.mxu0 0
        %835 = vmatprep.subr.bf16.mxu0 0
        %836 = vmatpush1.bf16.msra.mxu0 0
        %837 = vmatprep.subr.bf16.mxu0 0
        %838 = vmatpush1.bf16.msra.mxu0 0
        %839 = vmatprep.subr.bf16.mxu0 0
        %840 = vmatpush1.bf16.msra.mxu0 0
        %841 = vmatprep.subr.bf16.mxu0 0
        %842 = vmatpush1.bf16.msra.mxu0 0
        %843 = vmatprep.subr.bf16.mxu0 0
        %844 = vmatpush1.bf16.msra.mxu0 0
        %845 = vmatprep.subr.bf16.mxu0 0
        %846 = vmatpush1.bf16.msra.mxu0 0
        %847 = vmatprep.subr.bf16.mxu0 0
        %848 = vmatpush1.bf16.msra.mxu0 %v611
        %849 = vmatprep.subr.bf16.mxu0 0
        %850 = vmatpush2.bf16.msra.mxu0 0
        %851 = vmatprep.subr.bf16.mxu0 0
        %852 = vmatpush2.bf16.msra.mxu0 0
        %853 = vmatprep.subr.bf16.mxu0 0
        %854 = vmatpush2.bf16.msra.mxu0 0
        %855 = vmatprep.subr.bf16.mxu0 0
        %856 = vmatpush2.bf16.msra.mxu0 0
        %857 = vmatprep.subr.bf16.mxu0 0
        %858 = vmatpush2.bf16.msra.mxu0 0
        %859 = vmatprep.subr.bf16.mxu0 0
        %860 = vmatpush2.bf16.msra.mxu0 0
        %861 = vmatprep.subr.bf16.mxu0 0
        %862 = vmatpush2.bf16.msra.mxu0 0
        %863 = vmatprep.subr.bf16.mxu0 0
        %864 = vmatpush2.bf16.msra.mxu0 0
        %865 = vmatprep.mubr.bf16.mxu0 0
        %866 = vmatmul.mubr.bf16.gmra.mxu0 %v831
        %v867 = vpop.f32.mrf.mxu0
        %v868 = vadd.f32 0.0, %v867
        %v869 = vpop.f32.mrf.mxu0
        %v870 = vpop.f32.mrf.mxu0
        %v871 = vadd.f32 0.0, %v870
        %v872 = vpop.f32.mrf.mxu0
        %873 = vdwg.mxu0
        %v875 = vsel %vm242, %v605, 0
        %877 = vmatprep.subr.bf16.mxu0 0
        %878 = vmatpush1.bf16.msra.mxu0 0
        %879 = vmatprep.subr.bf16.mxu0 0
        %880 = vmatpush1.bf16.msra.mxu0 0
        %881 = vmatprep.subr.bf16.mxu0 0
        %882 = vmatpush1.bf16.msra.mxu0 0
        %883 = vmatprep.subr.bf16.mxu0 0
        %884 = vmatpush1.bf16.msra.mxu0 0
        %885 = vmatprep.subr.bf16.mxu0 0
        %886 = vmatpush1.bf16.msra.mxu0 0
        %887 = vmatprep.subr.bf16.mxu0 0
        %888 = vmatpush1.bf16.msra.mxu0 0
        %889 = vmatprep.subr.bf16.mxu0 0
        %890 = vmatpush1.bf16.msra.mxu0 0
        %891 = vmatprep.subr.bf16.mxu0 0
        %892 = vmatpush1.bf16.msra.mxu0 %v611
        %893 = vmatprep.subr.bf16.mxu0 0
        %894 = vmatpush2.bf16.msra.mxu0 0
        %895 = vmatprep.subr.bf16.mxu0 0
        %896 = vmatpush2.bf16.msra.mxu0 0
        %897 = vmatprep.subr.bf16.mxu0 0
        %898 = vmatpush2.bf16.msra.mxu0 0
        %899 = vmatprep.subr.bf16.mxu0 0
        %900 = vmatpush2.bf16.msra.mxu0 0
        %901 = vmatprep.subr.bf16.mxu0 0
        %902 = vmatpush2.bf16.msra.mxu0 0
        %903 = vmatprep.subr.bf16.mxu0 0
        %904 = vmatpush2.bf16.msra.mxu0 0
        %905 = vmatprep.subr.bf16.mxu0 0
        %906 = vmatpush2.bf16.msra.mxu0 0
        %907 = vmatprep.subr.bf16.mxu0 0
        %908 = vmatpush2.bf16.msra.mxu0 0
        %909 = vmatprep.mubr.bf16.mxu0 0
        %910 = vmatmul.mubr.bf16.gmra.mxu0 %v875
        %v911 = vpop.f32.mrf.mxu0
        %v912 = vadd.f32 0.0, %v911
        %v913 = vpop.f32.mrf.mxu0
        %v914 = vpop.f32.mrf.mxu0
        %v915 = vadd.f32 0.0, %v914
        %v916 = vpop.f32.mrf.mxu0
        %917 = vdwg.mxu0
        %v919 = vsel %vm242, %v606, 0
        %921 = vmatprep.subr.bf16.mxu0 0
        %922 = vmatpush1.bf16.msra.mxu0 0
        %923 = vmatprep.subr.bf16.mxu0 0
        %924 = vmatpush1.bf16.msra.mxu0 0
        %925 = vmatprep.subr.bf16.mxu0 0
        %926 = vmatpush1.bf16.msra.mxu0 0
        %927 = vmatprep.subr.bf16.mxu0 0
        %928 = vmatpush1.bf16.msra.mxu0 0
        %929 = vmatprep.subr.bf16.mxu0 0
        %930 = vmatpush1.bf16.msra.mxu0 0
        %931 = vmatprep.subr.bf16.mxu0 0
        %932 = vmatpush1.bf16.msra.mxu0 0
        %933 = vmatprep.subr.bf16.mxu0 0
        %934 = vmatpush1.bf16.msra.mxu0 0
        %935 = vmatprep.subr.bf16.mxu0 0
        %936 = vmatpush1.bf16.msra.mxu0 %v611
        %937 = vmatprep.subr.bf16.mxu0 0
        %938 = vmatpush2.bf16.msra.mxu0 0
        %939 = vmatprep.subr.bf16.mxu0 0
        %940 = vmatpush2.bf16.msra.mxu0 0
        %941 = vmatprep.subr.bf16.mxu0 0
        %942 = vmatpush2.bf16.msra.mxu0 0
        %943 = vmatprep.subr.bf16.mxu0 0
        %944 = vmatpush2.bf16.msra.mxu0 0
        %945 = vmatprep.subr.bf16.mxu0 0
        %946 = vmatpush2.bf16.msra.mxu0 0
        %947 = vmatprep.subr.bf16.mxu0 0
        %948 = vmatpush2.bf16.msra.mxu0 0
        %949 = vmatprep.subr.bf16.mxu0 0
        %950 = vmatpush2.bf16.msra.mxu0 0
        %951 = vmatprep.subr.bf16.mxu0 0
        %952 = vmatpush2.bf16.msra.mxu0 0
        %953 = vmatprep.mubr.bf16.mxu0 0
        %954 = vmatmul.mubr.bf16.gmra.mxu0 %v919
        %v955 = vpop.f32.mrf.mxu0
        %v956 = vadd.f32 0.0, %v955
        %v957 = vpop.f32.mrf.mxu0
        %v958 = vpop.f32.mrf.mxu0
        %v959 = vadd.f32 0.0, %v958
        %v960 = vpop.f32.mrf.mxu0
        %961 = vdwg.mxu0
        %vm962 = vcmp.ge.f32.partialorder %v648, 0.0
        %vm963 = vcmp.ge.f32.partialorder %v651, 0.0
        %v964 = vmul.f32 %v648, 0.01
        %v965 = vmul.f32 %v651, 0.01
        %v966 = vsel %vm962, %v648, %v964
        %v967 = vsel %vm963, %v651, %v965
        %v968 = vpack.c.bf16 %v967, %v966
        %v970 = vunpack.c.l.b16 %v968
        %v971 = vunpack.c.h.b16 %v968
        %v972 = vpack.c.b16 %v970, %v970
        %v973 = vpack.c.b16 %v971, %v971
        %vm976 = vcmask 125952
        %977 = vst.msk [vmem:[%s216] sm:$0xf] %vm976, %v972
        %978 = vst.msk [vmem:[%s216 + $0x4] sm:$0xf] %vm976, %v973
        %v979 = vmul.f32 %v648, 0.53333336
        %v980 = vmul.f32 %v651, 0.53333336
        %v981 = vmul.f32 %v692, 0.46666667
        %v982 = vmul.f32 %v695, 0.46666667
        %v983 = vadd.f32 %v979, %v981
        %v984 = vadd.f32 %v980, %v982
        %vm985 = vcmp.ge.f32.partialorder %v983, 0.0
        %vm986 = vcmp.ge.f32.partialorder %v984, 0.0
        %v987 = vmul.f32 %v983, 0.01
        %v988 = vmul.f32 %v984, 0.01
        %v989 = vsel %vm985, %v983, %v987
        %v990 = vsel %vm986, %v984, %v988
        %v991 = vpack.c.bf16 %v990, %v989
        %v993 = vunpack.c.l.b16 %v991
        %v994 = vunpack.c.h.b16 %v991
        %v995 = vpack.c.b16 %v993, %v993
        %v996 = vpack.c.b16 %v994, %v994
        %s999 = scalar_lea.vmem %s216, 8
        %1000 = vst.msk [vmem:[%s999] sm:$0xf] %vm976, %v995
        %1001 = vst.msk [vmem:[%s999 + $0x4] sm:$0xf] %vm976, %v996
        %v1002 = vmul.f32 %v648, 0.06666667
        %v1003 = vmul.f32 %v651, 0.06666667
        %v1004 = vmul.f32 %v692, 0.93333334
        %v1005 = vmul.f32 %v695, 0.93333334
        %v1006 = vadd.f32 %v1002, %v1004
        %v1007 = vadd.f32 %v1003, %v1005
        %vm1008 = vcmp.ge.f32.partialorder %v1006, 0.0
        %vm1009 = vcmp.ge.f32.partialorder %v1007, 0.0
        %v1010 = vmul.f32 %v1006, 0.01
        %v1011 = vmul.f32 %v1007, 0.01
        %v1012 = vsel %vm1008, %v1006, %v1010
        %v1013 = vsel %vm1009, %v1007, %v1011
        %v1014 = vpack.c.bf16 %v1013, %v1012
        %v1016 = vunpack.c.l.b16 %v1014
        %v1017 = vunpack.c.h.b16 %v1014
        %v1018 = vpack.c.b16 %v1016, %v1016
        %v1019 = vpack.c.b16 %v1017, %v1017
        %s1022 = scalar_lea.vmem %s216, 16
        %1023 = vst.msk [vmem:[%s1022] sm:$0xf] %vm976, %v1018
        %1024 = vst.msk [vmem:[%s1022 + $0x4] sm:$0xf] %vm976, %v1019
        %v1025 = vmul.f32 %v692, 0.6
        %v1026 = vmul.f32 %v695, 0.6
        %v1027 = vmul.f32 %v736, 0.4
        %v1028 = vmul.f32 %v739, 0.4
        %v1029 = vadd.f32 %v1025, %v1027
        %v1030 = vadd.f32 %v1026, %v1028
        %vm1031 = vcmp.ge.f32.partialorder %v1029, 0.0
        %vm1032 = vcmp.ge.f32.partialorder %v1030, 0.0
        %v1033 = vmul.f32 %v1029, 0.01
        %v1034 = vmul.f32 %v1030, 0.01
        %v1035 = vsel %vm1031, %v1029, %v1033
        %v1036 = vsel %vm1032, %v1030, %v1034
        %v1037 = vpack.c.bf16 %v1036, %v1035
        %v1039 = vunpack.c.l.b16 %v1037
        %v1040 = vunpack.c.h.b16 %v1037
        %v1041 = vpack.c.b16 %v1039, %v1039
        %v1042 = vpack.c.b16 %v1040, %v1040
        %s1045 = scalar_lea.vmem %s216, 24
        %1046 = vst.msk [vmem:[%s1045] sm:$0xf] %vm976, %v1041
        %1047 = vst.msk [vmem:[%s1045 + $0x4] sm:$0xf] %vm976, %v1042
        %v1048 = vmul.f32 %v692, 0.13333334
        %v1049 = vmul.f32 %v695, 0.13333334
        %v1050 = vmul.f32 %v736, 0.8666667
        %v1051 = vmul.f32 %v739, 0.8666667
        %v1052 = vadd.f32 %v1048, %v1050
        %v1053 = vadd.f32 %v1049, %v1051
        %vm1054 = vcmp.ge.f32.partialorder %v1052, 0.0
        %vm1055 = vcmp.ge.f32.partialorder %v1053, 0.0
        %v1056 = vmul.f32 %v1052, 0.01
        %v1057 = vmul.f32 %v1053, 0.01
        %v1058 = vsel %vm1054, %v1052, %v1056
        %v1059 = vsel %vm1055, %v1053, %v1057
        %v1060 = vpack.c.bf16 %v1059, %v1058
        %v1062 = vunpack.c.l.b16 %v1060
        %v1063 = vunpack.c.h.b16 %v1060
        %v1064 = vpack.c.b16 %v1062, %v1062
        %v1065 = vpack.c.b16 %v1063, %v1063
        %s1068 = scalar_lea.vmem %s216, 32
        %1069 = vst.msk [vmem:[%s1068] sm:$0xf] %vm976, %v1064
        %1070 = vst.msk [vmem:[%s1068 + $0x4] sm:$0xf] %vm976, %v1065
        %v1071 = vmul.f32 %v736, 0.6666667
        %v1072 = vmul.f32 %v739, 0.6666667
        %v1073 = vmul.f32 %v780, 0.33333334
        %v1074 = vmul.f32 %v783, 0.33333334
        %v1075 = vadd.f32 %v1071, %v1073
        %v1076 = vadd.f32 %v1072, %v1074
        %vm1077 = vcmp.ge.f32.partialorder %v1075, 0.0
        %vm1078 = vcmp.ge.f32.partialorder %v1076, 0.0
        %v1079 = vmul.f32 %v1075, 0.01
        %v1080 = vmul.f32 %v1076, 0.01
        %v1081 = vsel %vm1077, %v1075, %v1079
        %v1082 = vsel %vm1078, %v1076, %v1080
        %v1083 = vpack.c.bf16 %v1082, %v1081
        %v1085 = vunpack.c.l.b16 %v1083
        %v1086 = vunpack.c.h.b16 %v1083
        %v1087 = vpack.c.b16 %v1085, %v1085
        %v1088 = vpack.c.b16 %v1086, %v1086
        %s1091 = scalar_lea.vmem %s216, 40
        %1092 = vst.msk [vmem:[%s1091] sm:$0xf] %vm976, %v1087
        %1093 = vst.msk [vmem:[%s1091 + $0x4] sm:$0xf] %vm976, %v1088
        %v1094 = vmul.f32 %v736, 0.2
        %v1095 = vmul.f32 %v739, 0.2
        %v1096 = vmul.f32 %v780, 0.8
        %v1097 = vmul.f32 %v783, 0.8
        %v1098 = vadd.f32 %v1094, %v1096
        %v1099 = vadd.f32 %v1095, %v1097
        %vm1100 = vcmp.ge.f32.partialorder %v1098, 0.0
        %vm1101 = vcmp.ge.f32.partialorder %v1099, 0.0
        %v1102 = vmul.f32 %v1098, 0.01
        %v1103 = vmul.f32 %v1099, 0.01
        %v1104 = vsel %vm1100, %v1098, %v1102
        %v1105 = vsel %vm1101, %v1099, %v1103
        %v1106 = vpack.c.bf16 %v1105, %v1104
        %v1108 = vunpack.c.l.b16 %v1106
        %v1109 = vunpack.c.h.b16 %v1106
        %v1110 = vpack.c.b16 %v1108, %v1108
        %v1111 = vpack.c.b16 %v1109, %v1109
        %s1114 = scalar_lea.vmem %s216, 48
        %1115 = vst.msk [vmem:[%s1114] sm:$0xf] %vm976, %v1110
        %1116 = vst.msk [vmem:[%s1114 + $0x4] sm:$0xf] %vm976, %v1111
        %v1117 = vmul.f32 %v780, 0.73333335
        %v1118 = vmul.f32 %v783, 0.73333335
        %v1119 = vmul.f32 %v824, 0.26666668
        %v1120 = vmul.f32 %v827, 0.26666668
        %v1121 = vadd.f32 %v1117, %v1119
        %v1122 = vadd.f32 %v1118, %v1120
        %vm1123 = vcmp.ge.f32.partialorder %v1121, 0.0
        %vm1124 = vcmp.ge.f32.partialorder %v1122, 0.0
        %v1125 = vmul.f32 %v1121, 0.01
        %v1126 = vmul.f32 %v1122, 0.01
        %v1127 = vsel %vm1123, %v1121, %v1125
        %v1128 = vsel %vm1124, %v1122, %v1126
        %v1129 = vpack.c.bf16 %v1128, %v1127
        %v1131 = vunpack.c.l.b16 %v1129
        %v1132 = vunpack.c.h.b16 %v1129
        %v1133 = vpack.c.b16 %v1131, %v1131
        %v1134 = vpack.c.b16 %v1132, %v1132
        %s1137 = scalar_lea.vmem %s216, 56
        %1138 = vst.msk [vmem:[%s1137] sm:$0xf] %vm976, %v1133
        %1139 = vst.msk [vmem:[%s1137 + $0x4] sm:$0xf] %vm976, %v1134
        %v1140 = vmul.f32 %v780, 0.26666668
        %v1141 = vmul.f32 %v783, 0.26666668
        %v1142 = vmul.f32 %v824, 0.73333335
        %v1143 = vmul.f32 %v827, 0.73333335
        %v1144 = vadd.f32 %v1140, %v1142
        %v1145 = vadd.f32 %v1141, %v1143
        %vm1146 = vcmp.ge.f32.partialorder %v1144, 0.0
        %vm1147 = vcmp.ge.f32.partialorder %v1145, 0.0
        %v1148 = vmul.f32 %v1144, 0.01
        %v1149 = vmul.f32 %v1145, 0.01
        %v1150 = vsel %vm1146, %v1144, %v1148
        %v1151 = vsel %vm1147, %v1145, %v1149
        %v1152 = vpack.c.bf16 %v1151, %v1150
        %v1154 = vunpack.c.l.b16 %v1152
        %v1155 = vunpack.c.h.b16 %v1152
        %v1156 = vpack.c.b16 %v1154, %v1154
        %v1157 = vpack.c.b16 %v1155, %v1155
        %s1160 = scalar_lea.vmem %s216, 64
        %1161 = vst.msk [vmem:[%s1160] sm:$0xf] %vm976, %v1156
        %1162 = vst.msk [vmem:[%s1160 + $0x4] sm:$0xf] %vm976, %v1157
        %v1163 = vmul.f32 %v824, 0.8
        %v1164 = vmul.f32 %v827, 0.8
        %v1165 = vmul.f32 %v868, 0.2
        %v1166 = vmul.f32 %v871, 0.2
        %v1167 = vadd.f32 %v1163, %v1165
        %v1168 = vadd.f32 %v1164, %v1166
        %vm1169 = vcmp.ge.f32.partialorder %v1167, 0.0
        %vm1170 = vcmp.ge.f32.partialorder %v1168, 0.0
        %v1171 = vmul.f32 %v1167, 0.01
        %v1172 = vmul.f32 %v1168, 0.01
        %v1173 = vsel %vm1169, %v1167, %v1171
        %v1174 = vsel %vm1170, %v1168, %v1172
        %v1175 = vpack.c.bf16 %v1174, %v1173
        %v1177 = vunpack.c.l.b16 %v1175
        %v1178 = vunpack.c.h.b16 %v1175
        %v1179 = vpack.c.b16 %v1177, %v1177
        %v1180 = vpack.c.b16 %v1178, %v1178
        %s1183 = scalar_lea.vmem %s216, 72
        %1184 = vst.msk [vmem:[%s1183] sm:$0xf] %vm976, %v1179
        %1185 = vst.msk [vmem:[%s1183 + $0x4] sm:$0xf] %vm976, %v1180
        %v1186 = vmul.f32 %v824, 0.33333334
        %v1187 = vmul.f32 %v827, 0.33333334
        %v1188 = vmul.f32 %v868, 0.6666667
        %v1189 = vmul.f32 %v871, 0.6666667
        %v1190 = vadd.f32 %v1186, %v1188
        %v1191 = vadd.f32 %v1187, %v1189
        %vm1192 = vcmp.ge.f32.partialorder %v1190, 0.0
        %vm1193 = vcmp.ge.f32.partialorder %v1191, 0.0
        %v1194 = vmul.f32 %v1190, 0.01
        %v1195 = vmul.f32 %v1191, 0.01
        %v1196 = vsel %vm1192, %v1190, %v1194
        %v1197 = vsel %vm1193, %v1191, %v1195
        %v1198 = vpack.c.bf16 %v1197, %v1196
        %v1200 = vunpack.c.l.b16 %v1198
        %v1201 = vunpack.c.h.b16 %v1198
        %v1202 = vpack.c.b16 %v1200, %v1200
        %v1203 = vpack.c.b16 %v1201, %v1201
        %s1206 = scalar_lea.vmem %s216, 80
        %1207 = vst.msk [vmem:[%s1206] sm:$0xf] %vm976, %v1202
        %1208 = vst.msk [vmem:[%s1206 + $0x4] sm:$0xf] %vm976, %v1203
        %v1209 = vmul.f32 %v868, 0.8666667
        %v1210 = vmul.f32 %v871, 0.8666667
        %v1211 = vmul.f32 %v912, 0.13333334
        %v1212 = vmul.f32 %v915, 0.13333334
        %v1213 = vadd.f32 %v1209, %v1211
        %v1214 = vadd.f32 %v1210, %v1212
        %vm1215 = vcmp.ge.f32.partialorder %v1213, 0.0
        %vm1216 = vcmp.ge.f32.partialorder %v1214, 0.0
        %v1217 = vmul.f32 %v1213, 0.01
        %v1218 = vmul.f32 %v1214, 0.01
        %v1219 = vsel %vm1215, %v1213, %v1217
        %v1220 = vsel %vm1216, %v1214, %v1218
        %v1221 = vpack.c.bf16 %v1220, %v1219
        %v1223 = vunpack.c.l.b16 %v1221
        %v1224 = vunpack.c.h.b16 %v1221
        %v1225 = vpack.c.b16 %v1223, %v1223
        %v1226 = vpack.c.b16 %v1224, %v1224
        %s1229 = scalar_lea.vmem %s216, 88
        %1230 = vst.msk [vmem:[%s1229] sm:$0xf] %vm976, %v1225
        %1231 = vst.msk [vmem:[%s1229 + $0x4] sm:$0xf] %vm976, %v1226
        %v1232 = vmul.f32 %v868, 0.4
        %v1233 = vmul.f32 %v871, 0.4
        %v1234 = vmul.f32 %v912, 0.6
        %v1235 = vmul.f32 %v915, 0.6
        %v1236 = vadd.f32 %v1232, %v1234
        %v1237 = vadd.f32 %v1233, %v1235
        %vm1238 = vcmp.ge.f32.partialorder %v1236, 0.0
        %vm1239 = vcmp.ge.f32.partialorder %v1237, 0.0
        %v1240 = vmul.f32 %v1236, 0.01
        %v1241 = vmul.f32 %v1237, 0.01
        %v1242 = vsel %vm1238, %v1236, %v1240
        %v1243 = vsel %vm1239, %v1237, %v1241
        %v1244 = vpack.c.bf16 %v1243, %v1242
        %v1246 = vunpack.c.l.b16 %v1244
        %v1247 = vunpack.c.h.b16 %v1244
        %v1248 = vpack.c.b16 %v1246, %v1246
        %v1249 = vpack.c.b16 %v1247, %v1247
        %s1252 = scalar_lea.vmem %s216, 96
        %1253 = vst.msk [vmem:[%s1252] sm:$0xf] %vm976, %v1248
        %1254 = vst.msk [vmem:[%s1252 + $0x4] sm:$0xf] %vm976, %v1249
        %v1255 = vmul.f32 %v912, 0.93333334
        %v1256 = vmul.f32 %v915, 0.93333334
        %v1257 = vmul.f32 %v956, 0.06666667
        %v1258 = vmul.f32 %v959, 0.06666667
        %v1259 = vadd.f32 %v1255, %v1257
        %v1260 = vadd.f32 %v1256, %v1258
        %vm1261 = vcmp.ge.f32.partialorder %v1259, 0.0
        %vm1262 = vcmp.ge.f32.partialorder %v1260, 0.0
        %v1263 = vmul.f32 %v1259, 0.01
        %v1264 = vmul.f32 %v1260, 0.01
        %v1265 = vsel %vm1261, %v1259, %v1263
        %v1266 = vsel %vm1262, %v1260, %v1264
        %v1267 = vpack.c.bf16 %v1266, %v1265
        %v1269 = vunpack.c.l.b16 %v1267
        %v1270 = vunpack.c.h.b16 %v1267
        %v1271 = vpack.c.b16 %v1269, %v1269
        %v1272 = vpack.c.b16 %v1270, %v1270
        %s1275 = scalar_lea.vmem %s216, 104
        %1276 = vst.msk [vmem:[%s1275] sm:$0xf] %vm976, %v1271
        %1277 = vst.msk [vmem:[%s1275 + $0x4] sm:$0xf] %vm976, %v1272
        %v1278 = vmul.f32 %v912, 0.46666667
        %v1279 = vmul.f32 %v915, 0.46666667
        %v1280 = vmul.f32 %v956, 0.53333336
        %v1281 = vmul.f32 %v959, 0.53333336
        %v1282 = vadd.f32 %v1278, %v1280
        %v1283 = vadd.f32 %v1279, %v1281
        %vm1284 = vcmp.ge.f32.partialorder %v1282, 0.0
        %vm1285 = vcmp.ge.f32.partialorder %v1283, 0.0
        %v1286 = vmul.f32 %v1282, 0.01
        %v1287 = vmul.f32 %v1283, 0.01
        %v1288 = vsel %vm1284, %v1282, %v1286
        %v1289 = vsel %vm1285, %v1283, %v1287
        %v1290 = vpack.c.bf16 %v1289, %v1288
        %v1292 = vunpack.c.l.b16 %v1290
        %v1293 = vunpack.c.h.b16 %v1290
        %v1294 = vpack.c.b16 %v1292, %v1292
        %v1295 = vpack.c.b16 %v1293, %v1293
        %s1298 = scalar_lea.vmem %s216, 112
        %1299 = vst.msk [vmem:[%s1298] sm:$0xf] %vm976, %v1294
        %1300 = vst.msk [vmem:[%s1298 + $0x4] sm:$0xf] %vm976, %v1295
        %vm1301 = vcmp.ge.f32.partialorder %v956, 0.0
        %vm1302 = vcmp.ge.f32.partialorder %v959, 0.0
        %v1303 = vmul.f32 %v956, 0.01
        %v1304 = vmul.f32 %v959, 0.01
        %v1305 = vsel %vm1301, %v956, %v1303
        %v1306 = vsel %vm1302, %v959, %v1304
        %v1307 = vpack.c.bf16 %v1306, %v1305
        %v1309 = vunpack.c.l.b16 %v1307
        %v1310 = vunpack.c.h.b16 %v1307
        %v1311 = vpack.c.b16 %v1309, %v1309
        %v1312 = vpack.c.b16 %v1310, %v1310
        %s1315 = scalar_lea.vmem %s216, 120
        %1316 = vst.msk [vmem:[%s1315] sm:$0xf] %vm976, %v1311
        %1317 = vst.msk [vmem:[%s1315 + $0x4] sm:$0xf] %vm976, %v1312
        %p1318 = scmp.lt.s32.totalorder %s21, 1
        %s1319 = scalar_select %p1318, %s21, 1
        %p1320 = scmp.lt.s32.totalorder %s22, 3
        %s1321 = scalar_select %p1320, %s22, 3
        %s1322 = smul.addr %s1321, 32
        %s1323 = smul.addr %s1319, 128
        %s1324 = sadd.s32 %s1322, %s1323
        %s1325 = smul.addr %s1324, 4
        %s1326 = scalar_lea.vmem %s3, %s1325
        // Predicated region
        $region37: #{up_relu_conv_bn.3} parent=31 // pred_check
          %p1327 = pneg %p119
        $region38: #{up_relu_conv_bn.3} parent=31 // pred_check_branch
          %1329 = sbr.rel (%p1327) target = $region40
        $region39: #{up_relu_conv_bn.3} parent=31 // pred_region
          _
        $region40: #{up_relu_conv_bn.3} parent=31 // pred_fallthru
          _
      $region32: #{up_relu_conv_bn.3} parent=5 // pred_fallthru
        _
      %p1330 = scmp.le.s32.totalorder 2, %s12
      // Predicated region
      $region41: #{up_relu_conv_bn.3} parent=5 // pred_check
        %p1331 = pneg %p1330
      $region42: #{up_relu_conv_bn.3} parent=5 // pred_check_branch
        %1333 = sbr.rel (%p1331) target = $region44
      $region43: #{up_relu_conv_bn.3} parent=5 // pred_region
        %s1334 = ssub.s32 %s12, 2
        // Predicated region
        $region45: #{up_relu_conv_bn.3} parent=43 // pred_check
          %p1335 = pneg %p125
        $region46: #{up_relu_conv_bn.3} parent=43 // pred_check_branch
          %1337 = sbr.rel (%p1335) target = $region48
        $region47: #{up_relu_conv_bn.3} parent=43 // pred_region
          %p1338 = scmp.lt.s32.totalorder %s23, 1
          %s1339 = scalar_select %p1338, %s23, 1
          %p1340 = scmp.lt.s32.totalorder %s24, 3
          %s1341 = scalar_select %p1340, %s24, 3
          %s1342 = smul.addr %s1341, 32
          %s1343 = smul.addr %s1339, 128
          %s1344 = sadd.s32 %s1342, %s1343
          %s1345 = smul.addr %s1344, 4
          %s1346 = scalar_lea.vmem %s3, %s1345
        $region48: #{up_relu_conv_bn.3} parent=43 // pred_fallthru
          _
      $region44: #{up_relu_conv_bn.3} parent=5 // pred_fallthru
        _
    $region6: #{up_relu_conv_bn.3} parent=1 // loop_footer
      %s16 = sadd.s32 1, %s12
    $region7: #{up_relu_conv_bn.3} parent=1 // loop_footer_branch
      %11 = sbr.rel target = $region3
    $region8: #{up_relu_conv_bn.3} parent=1 // loop_exit
      _
    %1347 = vsyncpa [#allocation3], 1
    %s1348 = scalar_lea.sflag [#allocation3], 1
    %1349 = vsyncpa %s1348, 1

</llo_original>
